<compile_context>
chip_gen: v7x
topology: tpu7x:2x2x1
jax: 0.10.0
libtpu: 0.0.40
codegen_flags: <defaults>
</compile_context>

<pallas_src>
import jax
import jax.numpy as jnp
from jax.experimental import pallas as pl
from jax.experimental.pallas import tpu as pltpu

INPUT_DIM = 40
HIDDEN_DIM = 32
OUT_DIM = 47
OUT_PAD = 128        # lane-dense projection width (sliced back to OUT_DIM outside)
SUBLANE = 8          # f32 sublane tile


# --------------------------------- fused kernel ---------------------------------
def wsj_fused_kernel(x_ref, nf_ref,
                     wih0_ref, whh0_ref, b0_ref,
                     wih1_ref, whh1_ref, b1_ref,
                     wih2_ref, whh2_ref, b2_ref,
                     wp_ref, bp_ref,
                     out_ref,
                     gx_ref, hseq_ref):
    """All refs are whole-array VMEM blocks (gridless call).

    x_ref    : (T*Bp, D)      flattened time-major input, batch padded to Bp
    nf_ref   : (Bp, 1) int32  valid frame counts (0 for padded batch rows)
    wih*_ref : (D_in, 4H)     input->gate weights, gate order (i, f, o, g)
    whh*_ref : (H, 4H)        hidden->gate weights, same gate order
    b*_ref   : (1, 4H)        b_ih + b_hh, same gate order
    wp_ref   : (H, OUT_PAD)   projection weight, zero-padded past OUT_DIM
    bp_ref   : (1, OUT_PAD)
    out_ref  : (T*Bp, OUT_PAD)
    gx_ref   : VMEM scratch (T*Bp, 4H)  hoisted input-gate pre-activations
    hseq_ref : VMEM scratch (T*Bp, H)   per-layer hidden sequence
    """
    Bp = nf_ref.shape[0]
    H = whh0_ref.shape[0]
    T = hseq_ref.shape[0] // Bp
    # Full unroll for short sequences; partial unroll keeps code size bounded
    # while still letting the LLO scheduler overlap steps for long sequences.
    unroll = True if T <= 16 else 8

    nf = nf_ref[...]                                    # (Bp, 1) int32, loaded once

    def run_layer(whh_ref, apply_mask):
        """Serial recurrence over T; reads gx_ref, writes hseq_ref."""
        whh = whh_ref[...]                              # hoisted out of the loop

        def step(t, carry):
            h_prev, c_prev = carry
            row = pl.multiple_of(t * Bp, SUBLANE)       # aligned 8-sublane slice
            gates = gx_ref[pl.ds(row, Bp), :] + jnp.dot(
                h_prev, whh, preferred_element_type=jnp.float32)
            sig = jax.nn.sigmoid(gates[:, : 3 * H])     # i | f | o in one EUP slab
            i_g = sig[:, 0 * H:1 * H]
            f_g = sig[:, 1 * H:2 * H]
            o_g = sig[:, 2 * H:3 * H]
            g_g = jnp.tanh(gates[:, 3 * H:])
            c = f_g * c_prev + i_g * g_g
            h = o_g * jnp.tanh(c)
            if apply_mask:
                # pad_packed_sequence: zero hidden where t >= num_frames[b]
                h_store = jnp.where(nf > t, h, 0.0)
            else:
                h_store = h
            hseq_ref[pl.ds(row, Bp), :] = h_store
            return h, c

        zeros = jnp.zeros((Bp, H), jnp.float32)
        jax.lax.fori_loop(0, T, step, (zeros, zeros), unroll=unroll)

    # layer 0: hoisted input projection (one MXU matmul over the whole sequence)
    gx_ref[...] = jnp.dot(x_ref[...], wih0_ref[...],
                          preferred_element_type=jnp.float32) + b0_ref[...]
    run_layer(whh0_ref, apply_mask=False)

    # layer 1
    gx_ref[...] = jnp.dot(hseq_ref[...], wih1_ref[...],
                          preferred_element_type=jnp.float32) + b1_ref[...]
    run_layer(whh1_ref, apply_mask=False)

    # layer 2 (mask padded frames while writing the final hidden sequence)
    gx_ref[...] = jnp.dot(hseq_ref[...], wih2_ref[...],
                          preferred_element_type=jnp.float32) + b2_ref[...]
    run_layer(whh2_ref, apply_mask=True)

    # final projection: one lane-dense (T*Bp, H) @ (H, OUT_PAD) matmul
    out_ref[...] = (jnp.dot(hseq_ref[...], wp_ref[...],
                            preferred_element_type=jnp.float32)
                    + bp_ref[...]).astype(out_ref.dtype)


# --------------------------------- wrapper ---------------------------------
def _round_up(n, m):
    return ((n + m - 1) // m) * m


@jax.jit
def wsj_forward(params, x, num_frames, num_phonemes):
    """x: (T, B, INPUT_DIM) f32; num_frames: (B,) int32 (sorted descending)."""
    T, B, D = x.shape
    H = params["lstm"][0]["w_hh_t"].shape[0]
    OP = params["proj"]["w_t"].shape[1]

    Bp = _round_up(B, SUBLANE)                                   # pad batch to 8 sublanes
    x2d = jnp.pad(x, ((0, 0), (0, Bp - B), (0, 0))).reshape(T * Bp, D)
    nf_p = jnp.pad(num_frames.astype(jnp.int32), (0, Bp - B)).reshape(Bp, 1)

    vmem = pl.BlockSpec(memory_space=pltpu.MemorySpace.VMEM)
    l0, l1, l2 = params["lstm"]

    out2d = pl.pallas_call(
        wsj_fused_kernel,
        out_shape=jax.ShapeDtypeStruct((T * Bp, OP), jnp.float32),
        in_specs=[vmem] * 13,
        out_specs=vmem,
        scratch_shapes=[
            pltpu.VMEM((T * Bp, 4 * H), jnp.float32),            # gx
            pltpu.VMEM((T * Bp, H), jnp.float32),                # hidden sequence
        ],
    )(x2d, nf_p,
      l0["w_ih_t"], l0["w_hh_t"], l0["b"],
      l1["w_ih_t"], l1["w_hh_t"], l1["b"],
      l2["w_ih_t"], l2["w_hh_t"], l2["b"],
      params["proj"]["w_t"], params["proj"]["b"])

    logits = out2d.reshape(T, Bp, OP)[:, :B, :OUT_DIM]
    return logits, num_frames, num_phonemes


# ------------------------------ parameter packing ------------------------------
def _pack_lstm(w_ih, w_hh, b_ih, b_hh):
    """PyTorch layout (gate order i,f,g,o; shapes (4H,D_in),(4H,H),(4H,),(4H,)) ->
    kernel layout: gate order (i,f,o,g), transposed, biases folded together.
    Apply this SAME permutation when loading real PyTorch weights."""
    H = w_ih.shape[0] // 4
    perm = jnp.concatenate([jnp.arange(0, 2 * H),        # i, f
                            jnp.arange(3 * H, 4 * H),    # o
                            jnp.arange(2 * H, 3 * H)])   # g
    return dict(
        w_ih_t=jnp.transpose(w_ih[perm]),                # (D_in, 4H)
        w_hh_t=jnp.transpose(w_hh[perm]),                # (H, 4H)
        b=(b_ih + b_hh)[perm].reshape(1, 4 * H),         # (1, 4H)
    )


def _pack_proj(w, b, out_pad=OUT_PAD):
    """PyTorch Linear (OUT_DIM, H)/(OUT_DIM,) -> lane-dense (H, OUT_PAD)/(1, OUT_PAD)."""
    H = w.shape[1]
    w_t = jnp.zeros((H, out_pad), jnp.float32).at[:, :w.shape[0]].set(jnp.transpose(w))
    b_p = jnp.zeros((1, out_pad), jnp.float32).at[:, :b.shape[0]].set(b)
    return dict(w_t=w_t, b=b_p)


def init_params(key, hidden_dim):
    """Deterministic init mimicking PyTorch's U(-1/sqrt(H), 1/sqrt(H))."""
    H = hidden_dim
    scale = 1.0 / jnp.sqrt(jnp.float32(H))
    sizes_in = [INPUT_DIM, H, H]
    keys = jax.random.split(key, 4 * len(sizes_in) + 2)

    def u(k, shape):
        return jax.random.uniform(k, shape, jnp.float32, -scale, scale)

    params = {"lstm": [], "proj": None}
    ki = 0
    for d_in in sizes_in:
        w_ih = u(keys[ki], (4 * H, d_in)); ki += 1
        w_hh = u(keys[ki], (4 * H, H));    ki += 1
        b_ih = u(keys[ki], (4 * H,));      ki += 1
        b_hh = u(keys[ki], (4 * H,));      ki += 1
        params["lstm"].append(_pack_lstm(w_ih, w_hh, b_ih, b_hh))
    w_proj = u(keys[ki], (OUT_DIM, H)); ki += 1
    b_proj = u(keys[ki], (OUT_DIM,));   ki += 1
    params["proj"] = _pack_proj(w_proj, b_proj)
    return params


if __name__ == "__main__":
    T, B = 8, 2
    key = jax.random.PRNGKey(0)
    k_x, k_p = jax.random.split(key)

    x = jax.random.normal(k_x, (T, B, INPUT_DIM), jnp.float32)
    num_frames = jnp.array([8, 5], dtype=jnp.int32)    # sorted descending, as pack requires
    num_phonemes = jnp.array([6, 4], dtype=jnp.int32)
    params = init_params(k_p, HIDDEN_DIM)

    logits, nf, nph = wsj_forward(params, x, num_frames, num_phonemes)
    jax.block_until_ready(logits)

    assert logits.shape == (T, B, OUT_DIM)
    assert logits.dtype == jnp.float32
    assert bool(jnp.all(jnp.isfinite(logits)))
    print("KERNEL_OK")
</pallas_src>

<mosaic_0001>
module attributes {stable_mosaic.version = 11 : i64} {
  func.func @wsj_fused_kernel(%arg0: memref<64x40xf32, #tpu.memory_space<vmem>>, %arg1: memref<8x1xi32, #tpu.memory_space<vmem>>, %arg2: memref<40x128xf32, #tpu.memory_space<vmem>>, %arg3: memref<32x128xf32, #tpu.memory_space<vmem>>, %arg4: memref<1x128xf32, #tpu.memory_space<vmem>>, %arg5: memref<32x128xf32, #tpu.memory_space<vmem>>, %arg6: memref<32x128xf32, #tpu.memory_space<vmem>>, %arg7: memref<1x128xf32, #tpu.memory_space<vmem>>, %arg8: memref<32x128xf32, #tpu.memory_space<vmem>>, %arg9: memref<32x128xf32, #tpu.memory_space<vmem>>, %arg10: memref<1x128xf32, #tpu.memory_space<vmem>>, %arg11: memref<32x128xf32, #tpu.memory_space<vmem>>, %arg12: memref<1x128xf32, #tpu.memory_space<vmem>>, %arg13: memref<64x128xf32, #tpu.memory_space<vmem>>, %arg14: memref<64x128xf32, #tpu.memory_space<vmem>>, %arg15: memref<64x32xf32, #tpu.memory_space<vmem>>) attributes {dimension_semantics = [], scalar_prefetch = 0 : i64, scratch_operands = 2 : i64, tpu.core_type = #tpu.core_type<tc>} {
    %c0 = arith.constant 0 : index
    %c0_0 = arith.constant 0 : index
    %0 = vector.load %arg1[%c0, %c0_0] : memref<8x1xi32, #tpu.memory_space<vmem>>, vector<8x1xi32>
    %c0_1 = arith.constant 0 : index
    %c0_2 = arith.constant 0 : index
    %1 = vector.load %arg0[%c0_1, %c0_2] : memref<64x40xf32, #tpu.memory_space<vmem>>, vector<64x40xf32>
    %c0_3 = arith.constant 0 : index
    %c0_4 = arith.constant 0 : index
    %2 = vector.load %arg2[%c0_3, %c0_4] : memref<40x128xf32, #tpu.memory_space<vmem>>, vector<40x128xf32>
    %cst = arith.constant dense<0.000000e+00> : vector<64x128xf32>
    %3 = tpu.matmul %1, %2, %cst {dimension_numbers = #tpu.dot_dimension_numbers<[1], [0], [0], [1], [0, 0, 1, 1], [], []>} : vector<64x40xf32>, vector<40x128xf32>, vector<64x128xf32> -> vector<64x128xf32>
    %c0_5 = arith.constant 0 : index
    %c0_6 = arith.constant 0 : index
    %4 = vector.load %arg4[%c0_5, %c0_6] : memref<1x128xf32, #tpu.memory_space<vmem>>, vector<1x128xf32>
    %5 = vector.broadcast %4 : vector<1x128xf32> to vector<64x128xf32>
    %6 = arith.addf %3, %5 : vector<64x128xf32>
    %c0_7 = arith.constant 0 : index
    %c0_8 = arith.constant 0 : index
    %7 = vector.load %arg14[%c0_7, %c0_8] : memref<64x128xf32, #tpu.memory_space<vmem>>, vector<64x128xf32>
    tpu.vector_store %arg14[%c0_7, %c0_8], %6 {strides = array<i32>} : memref<64x128xf32, #tpu.memory_space<vmem>>, vector<64x128xf32>,
    %c0_9 = arith.constant 0 : index
    %c0_10 = arith.constant 0 : index
    %8 = vector.load %arg3[%c0_9, %c0_10] : memref<32x128xf32, #tpu.memory_space<vmem>>, vector<32x128xf32>
    %cst_11 = arith.constant 0.000000e+00 : f32
    %9 = vector.broadcast %cst_11 : f32 to vector<8x32xf32>
    %c0_i32 = arith.constant 0 : i32
    %c8_i32 = arith.constant 8 : i32
    %10 = arith.muli %c0_i32, %c8_i32 : i32
    %11 = tpu.assume_multiple %10, 8 : i32
    %12 = arith.index_cast %11 : i32 to index
    %c0_12 = arith.constant 0 : index
    %13 = vector.load %arg14[%12, %c0_12] : memref<64x128xf32, #tpu.memory_space<vmem>>, vector<8x128xf32>
    %cst_13 = arith.constant dense<0.000000e+00> : vector<8x128xf32>
    %14 = tpu.matmul %9, %8, %cst_13 {dimension_numbers = #tpu.dot_dimension_numbers<[1], [0], [0], [1], [0, 0, 1, 1], [], []>} : vector<8x32xf32>, vector<32x128xf32>, vector<8x128xf32> -> vector<8x128xf32>
    %15 = arith.addf %13, %14 : vector<8x128xf32>
    %16 = vector.extract_strided_slice %15 {offsets = [0, 0], sizes = [8, 96], strides = [1, 1]} : vector<8x128xf32> to vector<8x96xf32>
    %17 = arith.negf %16 : vector<8x96xf32>
    %18 = math.exp %17 : vector<8x96xf32>
    %cst_14 = arith.constant 1.000000e+00 : f32
    %19 = vector.broadcast %cst_14 : f32 to vector<8x96xf32>
    %20 = arith.addf %19, %18 : vector<8x96xf32>
    %21 = arith.divf %19, %20 : vector<8x96xf32>
    %22 = vector.extract_strided_slice %21 {offsets = [0, 0], sizes = [8, 32], strides = [1, 1]} : vector<8x96xf32> to vector<8x32xf32>
    %23 = vector.extract_strided_slice %21 {offsets = [0, 32], sizes = [8, 32], strides = [1, 1]} : vector<8x96xf32> to vector<8x32xf32>
    %24 = vector.extract_strided_slice %21 {offsets = [0, 64], sizes = [8, 32], strides = [1, 1]} : vector<8x96xf32> to vector<8x32xf32>
    %25 = vector.extract_strided_slice %15 {offsets = [0, 96], sizes = [8, 32], strides = [1, 1]} : vector<8x128xf32> to vector<8x32xf32>
    %26 = math.tanh %25 : vector<8x32xf32>
    %27 = arith.mulf %23, %9 : vector<8x32xf32>
    %28 = arith.mulf %22, %26 : vector<8x32xf32>
    %29 = arith.addf %27, %28 : vector<8x32xf32>
    %30 = math.tanh %29 : vector<8x32xf32>
    %31 = arith.mulf %24, %30 : vector<8x32xf32>
    %32 = arith.index_cast %11 : i32 to index
    %c0_15 = arith.constant 0 : index
    %33 = vector.load %arg15[%32, %c0_15] : memref<64x32xf32, #tpu.memory_space<vmem>>, vector<8x32xf32>
    tpu.vector_store %arg15[%32, %c0_15], %31 {strides = array<i32>} : memref<64x32xf32, #tpu.memory_space<vmem>>, vector<8x32xf32>,
    %c1_i32 = arith.constant 1 : i32
    %c8_i32_16 = arith.constant 8 : i32
    %34 = arith.muli %c1_i32, %c8_i32_16 : i32
    %35 = tpu.assume_multiple %34, 8 : i32
    %36 = arith.index_cast %35 : i32 to index
    %c0_17 = arith.constant 0 : index
    %37 = vector.load %arg14[%36, %c0_17] : memref<64x128xf32, #tpu.memory_space<vmem>>, vector<8x128xf32>
    %cst_18 = arith.constant dense<0.000000e+00> : vector<8x128xf32>
    %38 = tpu.matmul %31, %8, %cst_18 {dimension_numbers = #tpu.dot_dimension_numbers<[1], [0], [0], [1], [0, 0, 1, 1], [], []>} : vector<8x32xf32>, vector<32x128xf32>, vector<8x128xf32> -> vector<8x128xf32>
    %39 = arith.addf %37, %38 : vector<8x128xf32>
    %40 = vector.extract_strided_slice %39 {offsets = [0, 0], sizes = [8, 96], strides = [1, 1]} : vector<8x128xf32> to vector<8x96xf32>
    %41 = arith.negf %40 : vector<8x96xf32>
    %42 = math.exp %41 : vector<8x96xf32>
    %cst_19 = arith.constant 1.000000e+00 : f32
    %43 = vector.broadcast %cst_19 : f32 to vector<8x96xf32>
    %44 = arith.addf %43, %42 : vector<8x96xf32>
    %45 = arith.divf %43, %44 : vector<8x96xf32>
    %46 = vector.extract_strided_slice %45 {offsets = [0, 0], sizes = [8, 32], strides = [1, 1]} : vector<8x96xf32> to vector<8x32xf32>
    %47 = vector.extract_strided_slice %45 {offsets = [0, 32], sizes = [8, 32], strides = [1, 1]} : vector<8x96xf32> to vector<8x32xf32>
    %48 = vector.extract_strided_slice %45 {offsets = [0, 64], sizes = [8, 32], strides = [1, 1]} : vector<8x96xf32> to vector<8x32xf32>
    %49 = vector.extract_strided_slice %39 {offsets = [0, 96], sizes = [8, 32], strides = [1, 1]} : vector<8x128xf32> to vector<8x32xf32>
    %50 = math.tanh %49 : vector<8x32xf32>
    %51 = arith.mulf %47, %29 : vector<8x32xf32>
    %52 = arith.mulf %46, %50 : vector<8x32xf32>
    %53 = arith.addf %51, %52 : vector<8x32xf32>
    %54 = math.tanh %53 : vector<8x32xf32>
    %55 = arith.mulf %48, %54 : vector<8x32xf32>
    %56 = arith.index_cast %35 : i32 to index
    %c0_20 = arith.constant 0 : index
    %57 = vector.load %arg15[%56, %c0_20] : memref<64x32xf32, #tpu.memory_space<vmem>>, vector<8x32xf32>
    tpu.vector_store %arg15[%56, %c0_20], %55 {strides = array<i32>} : memref<64x32xf32, #tpu.memory_space<vmem>>, vector<8x32xf32>,
    %c2_i32 = arith.constant 2 : i32
    %c8_i32_21 = arith.constant 8 : i32
    %58 = arith.muli %c2_i32, %c8_i32_21 : i32
    %59 = tpu.assume_multiple %58, 8 : i32
    %60 = arith.index_cast %59 : i32 to index
    %c0_22 = arith.constant 0 : index
    %61 = vector.load %arg14[%60, %c0_22] : memref<64x128xf32, #tpu.memory_space<vmem>>, vector<8x128xf32>
    %cst_23 = arith.constant dense<0.000000e+00> : vector<8x128xf32>
    %62 = tpu.matmul %55, %8, %cst_23 {dimension_numbers = #tpu.dot_dimension_numbers<[1], [0], [0], [1], [0, 0, 1, 1], [], []>} : vector<8x32xf32>, vector<32x128xf32>, vector<8x128xf32> -> vector<8x128xf32>
    %63 = arith.addf %61, %62 : vector<8x128xf32>
    %64 = vector.extract_strided_slice %63 {offsets = [0, 0], sizes = [8, 96], strides = [1, 1]} : vector<8x128xf32> to vector<8x96xf32>
    %65 = arith.negf %64 : vector<8x96xf32>
    %66 = math.exp %65 : vector<8x96xf32>
    %cst_24 = arith.constant 1.000000e+00 : f32
    %67 = vector.broadcast %cst_24 : f32 to vector<8x96xf32>
    %68 = arith.addf %67, %66 : vector<8x96xf32>
    %69 = arith.divf %67, %68 : vector<8x96xf32>
    %70 = vector.extract_strided_slice %69 {offsets = [0, 0], sizes = [8, 32], strides = [1, 1]} : vector<8x96xf32> to vector<8x32xf32>
    %71 = vector.extract_strided_slice %69 {offsets = [0, 32], sizes = [8, 32], strides = [1, 1]} : vector<8x96xf32> to vector<8x32xf32>
    %72 = vector.extract_strided_slice %69 {offsets = [0, 64], sizes = [8, 32], strides = [1, 1]} : vector<8x96xf32> to vector<8x32xf32>
    %73 = vector.extract_strided_slice %63 {offsets = [0, 96], sizes = [8, 32], strides = [1, 1]} : vector<8x128xf32> to vector<8x32xf32>
    %74 = math.tanh %73 : vector<8x32xf32>
    %75 = arith.mulf %71, %53 : vector<8x32xf32>
    %76 = arith.mulf %70, %74 : vector<8x32xf32>
    %77 = arith.addf %75, %76 : vector<8x32xf32>
    %78 = math.tanh %77 : vector<8x32xf32>
    %79 = arith.mulf %72, %78 : vector<8x32xf32>
    %80 = arith.index_cast %59 : i32 to index
    %c0_25 = arith.constant 0 : index
    %81 = vector.load %arg15[%80, %c0_25] : memref<64x32xf32, #tpu.memory_space<vmem>>, vector<8x32xf32>
    tpu.vector_store %arg15[%80, %c0_25], %79 {strides = array<i32>} : memref<64x32xf32, #tpu.memory_space<vmem>>, vector<8x32xf32>,
    %c3_i32 = arith.constant 3 : i32
    %c8_i32_26 = arith.constant 8 : i32
    %82 = arith.muli %c3_i32, %c8_i32_26 : i32
    %83 = tpu.assume_multiple %82, 8 : i32
    %84 = arith.index_cast %83 : i32 to index
    %c0_27 = arith.constant 0 : index
    %85 = vector.load %arg14[%84, %c0_27] : memref<64x128xf32, #tpu.memory_space<vmem>>, vector<8x128xf32>
    %cst_28 = arith.constant dense<0.000000e+00> : vector<8x128xf32>
    %86 = tpu.matmul %79, %8, %cst_28 {dimension_numbers = #tpu.dot_dimension_numbers<[1], [0], [0], [1], [0, 0, 1, 1], [], []>} : vector<8x32xf32>, vector<32x128xf32>, vector<8x128xf32> -> vector<8x128xf32>
    %87 = arith.addf %85, %86 : vector<8x128xf32>
    %88 = vector.extract_strided_slice %87 {offsets = [0, 0], sizes = [8, 96], strides = [1, 1]} : vector<8x128xf32> to vector<8x96xf32>
    %89 = arith.negf %88 : vector<8x96xf32>
    %90 = math.exp %89 : vector<8x96xf32>
    %cst_29 = arith.constant 1.000000e+00 : f32
    %91 = vector.broadcast %cst_29 : f32 to vector<8x96xf32>
    %92 = arith.addf %91, %90 : vector<8x96xf32>
    %93 = arith.divf %91, %92 : vector<8x96xf32>
    %94 = vector.extract_strided_slice %93 {offsets = [0, 0], sizes = [8, 32], strides = [1, 1]} : vector<8x96xf32> to vector<8x32xf32>
    %95 = vector.extract_strided_slice %93 {offsets = [0, 32], sizes = [8, 32], strides = [1, 1]} : vector<8x96xf32> to vector<8x32xf32>
    %96 = vector.extract_strided_slice %93 {offsets = [0, 64], sizes = [8, 32], strides = [1, 1]} : vector<8x96xf32> to vector<8x32xf32>
    %97 = vector.extract_strided_slice %87 {offsets = [0, 96], sizes = [8, 32], strides = [1, 1]} : vector<8x128xf32> to vector<8x32xf32>
    %98 = math.tanh %97 : vector<8x32xf32>
    %99 = arith.mulf %95, %77 : vector<8x32xf32>
    %100 = arith.mulf %94, %98 : vector<8x32xf32>
    %101 = arith.addf %99, %100 : vector<8x32xf32>
    %102 = math.tanh %101 : vector<8x32xf32>
    %103 = arith.mulf %96, %102 : vector<8x32xf32>
    %104 = arith.index_cast %83 : i32 to index
    %c0_30 = arith.constant 0 : index
    %105 = vector.load %arg15[%104, %c0_30] : memref<64x32xf32, #tpu.memory_space<vmem>>, vector<8x32xf32>
    tpu.vector_store %arg15[%104, %c0_30], %103 {strides = array<i32>} : memref<64x32xf32, #tpu.memory_space<vmem>>, vector<8x32xf32>,
    %c4_i32 = arith.constant 4 : i32
    %c8_i32_31 = arith.constant 8 : i32
    %106 = arith.muli %c4_i32, %c8_i32_31 : i32
    %107 = tpu.assume_multiple %106, 8 : i32
    %108 = arith.index_cast %107 : i32 to index
    %c0_32 = arith.constant 0 : index
    %109 = vector.load %arg14[%108, %c0_32] : memref<64x128xf32, #tpu.memory_space<vmem>>, vector<8x128xf32>
    %cst_33 = arith.constant dense<0.000000e+00> : vector<8x128xf32>
    %110 = tpu.matmul %103, %8, %cst_33 {dimension_numbers = #tpu.dot_dimension_numbers<[1], [0], [0], [1], [0, 0, 1, 1], [], []>} : vector<8x32xf32>, vector<32x128xf32>, vector<8x128xf32> -> vector<8x128xf32>
    %111 = arith.addf %109, %110 : vector<8x128xf32>
    %112 = vector.extract_strided_slice %111 {offsets = [0, 0], sizes = [8, 96], strides = [1, 1]} : vector<8x128xf32> to vector<8x96xf32>
    %113 = arith.negf %112 : vector<8x96xf32>
    %114 = math.exp %113 : vector<8x96xf32>
    %cst_34 = arith.constant 1.000000e+00 : f32
    %115 = vector.broadcast %cst_34 : f32 to vector<8x96xf32>
    %116 = arith.addf %115, %114 : vector<8x96xf32>
    %117 = arith.divf %115, %116 : vector<8x96xf32>
    %118 = vector.extract_strided_slice %117 {offsets = [0, 0], sizes = [8, 32], strides = [1, 1]} : vector<8x96xf32> to vector<8x32xf32>
    %119 = vector.extract_strided_slice %117 {offsets = [0, 32], sizes = [8, 32], strides = [1, 1]} : vector<8x96xf32> to vector<8x32xf32>
    %120 = vector.extract_strided_slice %117 {offsets = [0, 64], sizes = [8, 32], strides = [1, 1]} : vector<8x96xf32> to vector<8x32xf32>
    %121 = vector.extract_strided_slice %111 {offsets = [0, 96], sizes = [8, 32], strides = [1, 1]} : vector<8x128xf32> to vector<8x32xf32>
    %122 = math.tanh %121 : vector<8x32xf32>
    %123 = arith.mulf %119, %101 : vector<8x32xf32>
    %124 = arith.mulf %118, %122 : vector<8x32xf32>
    %125 = arith.addf %123, %124 : vector<8x32xf32>
    %126 = math.tanh %125 : vector<8x32xf32>
    %127 = arith.mulf %120, %126 : vector<8x32xf32>
    %128 = arith.index_cast %107 : i32 to index
    %c0_35 = arith.constant 0 : index
    %129 = vector.load %arg15[%128, %c0_35] : memref<64x32xf32, #tpu.memory_space<vmem>>, vector<8x32xf32>
    tpu.vector_store %arg15[%128, %c0_35], %127 {strides = array<i32>} : memref<64x32xf32, #tpu.memory_space<vmem>>, vector<8x32xf32>,
    %c5_i32 = arith.constant 5 : i32
    %c8_i32_36 = arith.constant 8 : i32
    %130 = arith.muli %c5_i32, %c8_i32_36 : i32
    %131 = tpu.assume_multiple %130, 8 : i32
    %132 = arith.index_cast %131 : i32 to index
    %c0_37 = arith.constant 0 : index
    %133 = vector.load %arg14[%132, %c0_37] : memref<64x128xf32, #tpu.memory_space<vmem>>, vector<8x128xf32>
    %cst_38 = arith.constant dense<0.000000e+00> : vector<8x128xf32>
    %134 = tpu.matmul %127, %8, %cst_38 {dimension_numbers = #tpu.dot_dimension_numbers<[1], [0], [0], [1], [0, 0, 1, 1], [], []>} : vector<8x32xf32>, vector<32x128xf32>, vector<8x128xf32> -> vector<8x128xf32>
    %135 = arith.addf %133, %134 : vector<8x128xf32>
    %136 = vector.extract_strided_slice %135 {offsets = [0, 0], sizes = [8, 96], strides = [1, 1]} : vector<8x128xf32> to vector<8x96xf32>
    %137 = arith.negf %136 : vector<8x96xf32>
    %138 = math.exp %137 : vector<8x96xf32>
    %cst_39 = arith.constant 1.000000e+00 : f32
    %139 = vector.broadcast %cst_39 : f32 to vector<8x96xf32>
    %140 = arith.addf %139, %138 : vector<8x96xf32>
    %141 = arith.divf %139, %140 : vector<8x96xf32>
    %142 = vector.extract_strided_slice %141 {offsets = [0, 0], sizes = [8, 32], strides = [1, 1]} : vector<8x96xf32> to vector<8x32xf32>
    %143 = vector.extract_strided_slice %141 {offsets = [0, 32], sizes = [8, 32], strides = [1, 1]} : vector<8x96xf32> to vector<8x32xf32>
    %144 = vector.extract_strided_slice %141 {offsets = [0, 64], sizes = [8, 32], strides = [1, 1]} : vector<8x96xf32> to vector<8x32xf32>
    %145 = vector.extract_strided_slice %135 {offsets = [0, 96], sizes = [8, 32], strides = [1, 1]} : vector<8x128xf32> to vector<8x32xf32>
    %146 = math.tanh %145 : vector<8x32xf32>
    %147 = arith.mulf %143, %125 : vector<8x32xf32>
    %148 = arith.mulf %142, %146 : vector<8x32xf32>
    %149 = arith.addf %147, %148 : vector<8x32xf32>
    %150 = math.tanh %149 : vector<8x32xf32>
    %151 = arith.mulf %144, %150 : vector<8x32xf32>
    %152 = arith.index_cast %131 : i32 to index
    %c0_40 = arith.constant 0 : index
    %153 = vector.load %arg15[%152, %c0_40] : memref<64x32xf32, #tpu.memory_space<vmem>>, vector<8x32xf32>
    tpu.vector_store %arg15[%152, %c0_40], %151 {strides = array<i32>} : memref<64x32xf32, #tpu.memory_space<vmem>>, vector<8x32xf32>,
    %c6_i32 = arith.constant 6 : i32
    %c8_i32_41 = arith.constant 8 : i32
    %154 = arith.muli %c6_i32, %c8_i32_41 : i32
    %155 = tpu.assume_multiple %154, 8 : i32
    %156 = arith.index_cast %155 : i32 to index
    %c0_42 = arith.constant 0 : index
    %157 = vector.load %arg14[%156, %c0_42] : memref<64x128xf32, #tpu.memory_space<vmem>>, vector<8x128xf32>
    %cst_43 = arith.constant dense<0.000000e+00> : vector<8x128xf32>
    %158 = tpu.matmul %151, %8, %cst_43 {dimension_numbers = #tpu.dot_dimension_numbers<[1], [0], [0], [1], [0, 0, 1, 1], [], []>} : vector<8x32xf32>, vector<32x128xf32>, vector<8x128xf32> -> vector<8x128xf32>
    %159 = arith.addf %157, %158 : vector<8x128xf32>
    %160 = vector.extract_strided_slice %159 {offsets = [0, 0], sizes = [8, 96], strides = [1, 1]} : vector<8x128xf32> to vector<8x96xf32>
    %161 = arith.negf %160 : vector<8x96xf32>
    %162 = math.exp %161 : vector<8x96xf32>
    %cst_44 = arith.constant 1.000000e+00 : f32
    %163 = vector.broadcast %cst_44 : f32 to vector<8x96xf32>
    %164 = arith.addf %163, %162 : vector<8x96xf32>
    %165 = arith.divf %163, %164 : vector<8x96xf32>
    %166 = vector.extract_strided_slice %165 {offsets = [0, 0], sizes = [8, 32], strides = [1, 1]} : vector<8x96xf32> to vector<8x32xf32>
    %167 = vector.extract_strided_slice %165 {offsets = [0, 32], sizes = [8, 32], strides = [1, 1]} : vector<8x96xf32> to vector<8x32xf32>
    %168 = vector.extract_strided_slice %165 {offsets = [0, 64], sizes = [8, 32], strides = [1, 1]} : vector<8x96xf32> to vector<8x32xf32>
    %169 = vector.extract_strided_slice %159 {offsets = [0, 96], sizes = [8, 32], strides = [1, 1]} : vector<8x128xf32> to vector<8x32xf32>
    %170 = math.tanh %169 : vector<8x32xf32>
    %171 = arith.mulf %167, %149 : vector<8x32xf32>
    %172 = arith.mulf %166, %170 : vector<8x32xf32>
    %173 = arith.addf %171, %172 : vector<8x32xf32>
    %174 = math.tanh %173 : vector<8x32xf32>
    %175 = arith.mulf %168, %174 : vector<8x32xf32>
    %176 = arith.index_cast %155 : i32 to index
    %c0_45 = arith.constant 0 : index
    %177 = vector.load %arg15[%176, %c0_45] : memref<64x32xf32, #tpu.memory_space<vmem>>, vector<8x32xf32>
    tpu.vector_store %arg15[%176, %c0_45], %175 {strides = array<i32>} : memref<64x32xf32, #tpu.memory_space<vmem>>, vector<8x32xf32>,
    %c7_i32 = arith.constant 7 : i32
    %c8_i32_46 = arith.constant 8 : i32
    %178 = arith.muli %c7_i32, %c8_i32_46 : i32
    %179 = tpu.assume_multiple %178, 8 : i32
    %180 = arith.index_cast %179 : i32 to index
    %c0_47 = arith.constant 0 : index
    %181 = vector.load %arg14[%180, %c0_47] : memref<64x128xf32, #tpu.memory_space<vmem>>, vector<8x128xf32>
    %cst_48 = arith.constant dense<0.000000e+00> : vector<8x128xf32>
    %182 = tpu.matmul %175, %8, %cst_48 {dimension_numbers = #tpu.dot_dimension_numbers<[1], [0], [0], [1], [0, 0, 1, 1], [], []>} : vector<8x32xf32>, vector<32x128xf32>, vector<8x128xf32> -> vector<8x128xf32>
    %183 = arith.addf %181, %182 : vector<8x128xf32>
    %184 = vector.extract_strided_slice %183 {offsets = [0, 0], sizes = [8, 96], strides = [1, 1]} : vector<8x128xf32> to vector<8x96xf32>
    %185 = arith.negf %184 : vector<8x96xf32>
    %186 = math.exp %185 : vector<8x96xf32>
    %cst_49 = arith.constant 1.000000e+00 : f32
    %187 = vector.broadcast %cst_49 : f32 to vector<8x96xf32>
    %188 = arith.addf %187, %186 : vector<8x96xf32>
    %189 = arith.divf %187, %188 : vector<8x96xf32>
    %190 = vector.extract_strided_slice %189 {offsets = [0, 0], sizes = [8, 32], strides = [1, 1]} : vector<8x96xf32> to vector<8x32xf32>
    %191 = vector.extract_strided_slice %189 {offsets = [0, 32], sizes = [8, 32], strides = [1, 1]} : vector<8x96xf32> to vector<8x32xf32>
    %192 = vector.extract_strided_slice %189 {offsets = [0, 64], sizes = [8, 32], strides = [1, 1]} : vector<8x96xf32> to vector<8x32xf32>
    %193 = vector.extract_strided_slice %183 {offsets = [0, 96], sizes = [8, 32], strides = [1, 1]} : vector<8x128xf32> to vector<8x32xf32>
    %194 = math.tanh %193 : vector<8x32xf32>
    %195 = arith.mulf %191, %173 : vector<8x32xf32>
    %196 = arith.mulf %190, %194 : vector<8x32xf32>
    %197 = arith.addf %195, %196 : vector<8x32xf32>
    %198 = math.tanh %197 : vector<8x32xf32>
    %199 = arith.mulf %192, %198 : vector<8x32xf32>
    %200 = arith.index_cast %179 : i32 to index
    %c0_50 = arith.constant 0 : index
    %201 = vector.load %arg15[%200, %c0_50] : memref<64x32xf32, #tpu.memory_space<vmem>>, vector<8x32xf32>
    tpu.vector_store %arg15[%200, %c0_50], %199 {strides = array<i32>} : memref<64x32xf32, #tpu.memory_space<vmem>>, vector<8x32xf32>,
    %c8_i32_51 = arith.constant 8 : i32
    %c0_52 = arith.constant 0 : index
    %c0_53 = arith.constant 0 : index
    %202 = vector.load %arg15[%c0_52, %c0_53] : memref<64x32xf32, #tpu.memory_space<vmem>>, vector<64x32xf32>
    %c0_54 = arith.constant 0 : index
    %c0_55 = arith.constant 0 : index
    %203 = vector.load %arg5[%c0_54, %c0_55] : memref<32x128xf32, #tpu.memory_space<vmem>>, vector<32x128xf32>
    %cst_56 = arith.constant dense<0.000000e+00> : vector<64x128xf32>
    %204 = tpu.matmul %202, %203, %cst_56 {dimension_numbers = #tpu.dot_dimension_numbers<[1], [0], [0], [1], [0, 0, 1, 1], [], []>} : vector<64x32xf32>, vector<32x128xf32>, vector<64x128xf32> -> vector<64x128xf32>
    %c0_57 = arith.constant 0 : index
    %c0_58 = arith.constant 0 : index
    %205 = vector.load %arg7[%c0_57, %c0_58] : memref<1x128xf32, #tpu.memory_space<vmem>>, vector<1x128xf32>
    %206 = vector.broadcast %205 : vector<1x128xf32> to vector<64x128xf32>
    %207 = arith.addf %204, %206 : vector<64x128xf32>
    %c0_59 = arith.constant 0 : index
    %c0_60 = arith.constant 0 : index
    %208 = vector.load %arg14[%c0_59, %c0_60] : memref<64x128xf32, #tpu.memory_space<vmem>>, vector<64x128xf32>
    tpu.vector_store %arg14[%c0_59, %c0_60], %207 {strides = array<i32>} : memref<64x128xf32, #tpu.memory_space<vmem>>, vector<64x128xf32>,
    %c0_61 = arith.constant 0 : index
    %c0_62 = arith.constant 0 : index
    %209 = vector.load %arg6[%c0_61, %c0_62] : memref<32x128xf32, #tpu.memory_space<vmem>>, vector<32x128xf32>
    %cst_63 = arith.constant 0.000000e+00 : f32
    %210 = vector.broadcast %cst_63 : f32 to vector<8x32xf32>
    %c0_i32_64 = arith.constant 0 : i32
    %c8_i32_65 = arith.constant 8 : i32
    %211 = arith.muli %c0_i32_64, %c8_i32_65 : i32
    %212 = tpu.assume_multiple %211, 8 : i32
    %213 = arith.index_cast %212 : i32 to index
    %c0_66 = arith.constant 0 : index
    %214 = vector.load %arg14[%213, %c0_66] : memref<64x128xf32, #tpu.memory_space<vmem>>, vector<8x128xf32>
    %cst_67 = arith.constant dense<0.000000e+00> : vector<8x128xf32>
    %215 = tpu.matmul %210, %209, %cst_67 {dimension_numbers = #tpu.dot_dimension_numbers<[1], [0], [0], [1], [0, 0, 1, 1], [], []>} : vector<8x32xf32>, vector<32x128xf32>, vector<8x128xf32> -> vector<8x128xf32>
    %216 = arith.addf %214, %215 : vector<8x128xf32>
    %217 = vector.extract_strided_slice %216 {offsets = [0, 0], sizes = [8, 96], strides = [1, 1]} : vector<8x128xf32> to vector<8x96xf32>
    %218 = arith.negf %217 : vector<8x96xf32>
    %219 = math.exp %218 : vector<8x96xf32>
    %cst_68 = arith.constant 1.000000e+00 : f32
    %220 = vector.broadcast %cst_68 : f32 to vector<8x96xf32>
    %221 = arith.addf %220, %219 : vector<8x96xf32>
    %222 = arith.divf %220, %221 : vector<8x96xf32>
    %223 = vector.extract_strided_slice %222 {offsets = [0, 0], sizes = [8, 32], strides = [1, 1]} : vector<8x96xf32> to vector<8x32xf32>
    %224 = vector.extract_strided_slice %222 {offsets = [0, 32], sizes = [8, 32], strides = [1, 1]} : vector<8x96xf32> to vector<8x32xf32>
    %225 = vector.extract_strided_slice %222 {offsets = [0, 64], sizes = [8, 32], strides = [1, 1]} : vector<8x96xf32> to vector<8x32xf32>
    %226 = vector.extract_strided_slice %216 {offsets = [0, 96], sizes = [8, 32], strides = [1, 1]} : vector<8x128xf32> to vector<8x32xf32>
    %227 = math.tanh %226 : vector<8x32xf32>
    %228 = arith.mulf %224, %210 : vector<8x32xf32>
    %229 = arith.mulf %223, %227 : vector<8x32xf32>
    %230 = arith.addf %228, %229 : vector<8x32xf32>
    %231 = math.tanh %230 : vector<8x32xf32>
    %232 = arith.mulf %225, %231 : vector<8x32xf32>
    %233 = arith.index_cast %212 : i32 to index
    %c0_69 = arith.constant 0 : index
    %234 = vector.load %arg15[%233, %c0_69] : memref<64x32xf32, #tpu.memory_space<vmem>>, vector<8x32xf32>
    tpu.vector_store %arg15[%233, %c0_69], %232 {strides = array<i32>} : memref<64x32xf32, #tpu.memory_space<vmem>>, vector<8x32xf32>,
    %c1_i32_70 = arith.constant 1 : i32
    %c8_i32_71 = arith.constant 8 : i32
    %235 = arith.muli %c1_i32_70, %c8_i32_71 : i32
    %236 = tpu.assume_multiple %235, 8 : i32
    %237 = arith.index_cast %236 : i32 to index
    %c0_72 = arith.constant 0 : index
    %238 = vector.load %arg14[%237, %c0_72] : memref<64x128xf32, #tpu.memory_space<vmem>>, vector<8x128xf32>
    %cst_73 = arith.constant dense<0.000000e+00> : vector<8x128xf32>
    %239 = tpu.matmul %232, %209, %cst_73 {dimension_numbers = #tpu.dot_dimension_numbers<[1], [0], [0], [1], [0, 0, 1, 1], [], []>} : vector<8x32xf32>, vector<32x128xf32>, vector<8x128xf32> -> vector<8x128xf32>
    %240 = arith.addf %238, %239 : vector<8x128xf32>
    %241 = vector.extract_strided_slice %240 {offsets = [0, 0], sizes = [8, 96], strides = [1, 1]} : vector<8x128xf32> to vector<8x96xf32>
    %242 = arith.negf %241 : vector<8x96xf32>
    %243 = math.exp %242 : vector<8x96xf32>
    %cst_74 = arith.constant 1.000000e+00 : f32
    %244 = vector.broadcast %cst_74 : f32 to vector<8x96xf32>
    %245 = arith.addf %244, %243 : vector<8x96xf32>
    %246 = arith.divf %244, %245 : vector<8x96xf32>
    %247 = vector.extract_strided_slice %246 {offsets = [0, 0], sizes = [8, 32], strides = [1, 1]} : vector<8x96xf32> to vector<8x32xf32>
    %248 = vector.extract_strided_slice %246 {offsets = [0, 32], sizes = [8, 32], strides = [1, 1]} : vector<8x96xf32> to vector<8x32xf32>
    %249 = vector.extract_strided_slice %246 {offsets = [0, 64], sizes = [8, 32], strides = [1, 1]} : vector<8x96xf32> to vector<8x32xf32>
    %250 = vector.extract_strided_slice %240 {offsets = [0, 96], sizes = [8, 32], strides = [1, 1]} : vector<8x128xf32> to vector<8x32xf32>
    %251 = math.tanh %250 : vector<8x32xf32>
    %252 = arith.mulf %248, %230 : vector<8x32xf32>
    %253 = arith.mulf %247, %251 : vector<8x32xf32>
    %254 = arith.addf %252, %253 : vector<8x32xf32>
    %255 = math.tanh %254 : vector<8x32xf32>
    %256 = arith.mulf %249, %255 : vector<8x32xf32>
    %257 = arith.index_cast %236 : i32 to index
    %c0_75 = arith.constant 0 : index
    %258 = vector.load %arg15[%257, %c0_75] : memref<64x32xf32, #tpu.memory_space<vmem>>, vector<8x32xf32>
    tpu.vector_store %arg15[%257, %c0_75], %256 {strides = array<i32>} : memref<64x32xf32, #tpu.memory_space<vmem>>, vector<8x32xf32>,
    %c2_i32_76 = arith.constant 2 : i32
    %c8_i32_77 = arith.constant 8 : i32
    %259 = arith.muli %c2_i32_76, %c8_i32_77 : i32
    %260 = tpu.assume_multiple %259, 8 : i32
    %261 = arith.index_cast %260 : i32 to index
    %c0_78 = arith.constant 0 : index
    %262 = vector.load %arg14[%261, %c0_78] : memref<64x128xf32, #tpu.memory_space<vmem>>, vector<8x128xf32>
    %cst_79 = arith.constant dense<0.000000e+00> : vector<8x128xf32>
    %263 = tpu.matmul %256, %209, %cst_79 {dimension_numbers = #tpu.dot_dimension_numbers<[1], [0], [0], [1], [0, 0, 1, 1], [], []>} : vector<8x32xf32>, vector<32x128xf32>, vector<8x128xf32> -> vector<8x128xf32>
    %264 = arith.addf %262, %263 : vector<8x128xf32>
    %265 = vector.extract_strided_slice %264 {offsets = [0, 0], sizes = [8, 96], strides = [1, 1]} : vector<8x128xf32> to vector<8x96xf32>
    %266 = arith.negf %265 : vector<8x96xf32>
    %267 = math.exp %266 : vector<8x96xf32>
    %cst_80 = arith.constant 1.000000e+00 : f32
    %268 = vector.broadcast %cst_80 : f32 to vector<8x96xf32>
    %269 = arith.addf %268, %267 : vector<8x96xf32>
    %270 = arith.divf %268, %269 : vector<8x96xf32>
    %271 = vector.extract_strided_slice %270 {offsets = [0, 0], sizes = [8, 32], strides = [1, 1]} : vector<8x96xf32> to vector<8x32xf32>
    %272 = vector.extract_strided_slice %270 {offsets = [0, 32], sizes = [8, 32], strides = [1, 1]} : vector<8x96xf32> to vector<8x32xf32>
    %273 = vector.extract_strided_slice %270 {offsets = [0, 64], sizes = [8, 32], strides = [1, 1]} : vector<8x96xf32> to vector<8x32xf32>
    %274 = vector.extract_strided_slice %264 {offsets = [0, 96], sizes = [8, 32], strides = [1, 1]} : vector<8x128xf32> to vector<8x32xf32>
    %275 = math.tanh %274 : vector<8x32xf32>
    %276 = arith.mulf %272, %254 : vector<8x32xf32>
    %277 = arith.mulf %271, %275 : vector<8x32xf32>
    %278 = arith.addf %276, %277 : vector<8x32xf32>
    %279 = math.tanh %278 : vector<8x32xf32>
    %280 = arith.mulf %273, %279 : vector<8x32xf32>
    %281 = arith.index_cast %260 : i32 to index
    %c0_81 = arith.constant 0 : index
    %282 = vector.load %arg15[%281, %c0_81] : memref<64x32xf32, #tpu.memory_space<vmem>>, vector<8x32xf32>
    tpu.vector_store %arg15[%281, %c0_81], %280 {strides = array<i32>} : memref<64x32xf32, #tpu.memory_space<vmem>>, vector<8x32xf32>,
    %c3_i32_82 = arith.constant 3 : i32
    %c8_i32_83 = arith.constant 8 : i32
    %283 = arith.muli %c3_i32_82, %c8_i32_83 : i32
    %284 = tpu.assume_multiple %283, 8 : i32
    %285 = arith.index_cast %284 : i32 to index
    %c0_84 = arith.constant 0 : index
    %286 = vector.load %arg14[%285, %c0_84] : memref<64x128xf32, #tpu.memory_space<vmem>>, vector<8x128xf32>
    %cst_85 = arith.constant dense<0.000000e+00> : vector<8x128xf32>
    %287 = tpu.matmul %280, %209, %cst_85 {dimension_numbers = #tpu.dot_dimension_numbers<[1], [0], [0], [1], [0, 0, 1, 1], [], []>} : vector<8x32xf32>, vector<32x128xf32>, vector<8x128xf32> -> vector<8x128xf32>
    %288 = arith.addf %286, %287 : vector<8x128xf32>
    %289 = vector.extract_strided_slice %288 {offsets = [0, 0], sizes = [8, 96], strides = [1, 1]} : vector<8x128xf32> to vector<8x96xf32>
    %290 = arith.negf %289 : vector<8x96xf32>
    %291 = math.exp %290 : vector<8x96xf32>
    %cst_86 = arith.constant 1.000000e+00 : f32
    %292 = vector.broadcast %cst_86 : f32 to vector<8x96xf32>
    %293 = arith.addf %292, %291 : vector<8x96xf32>
    %294 = arith.divf %292, %293 : vector<8x96xf32>
    %295 = vector.extract_strided_slice %294 {offsets = [0, 0], sizes = [8, 32], strides = [1, 1]} : vector<8x96xf32> to vector<8x32xf32>
    %296 = vector.extract_strided_slice %294 {offsets = [0, 32], sizes = [8, 32], strides = [1, 1]} : vector<8x96xf32> to vector<8x32xf32>
    %297 = vector.extract_strided_slice %294 {offsets = [0, 64], sizes = [8, 32], strides = [1, 1]} : vector<8x96xf32> to vector<8x32xf32>
    %298 = vector.extract_strided_slice %288 {offsets = [0, 96], sizes = [8, 32], strides = [1, 1]} : vector<8x128xf32> to vector<8x32xf32>
    %299 = math.tanh %298 : vector<8x32xf32>
    %300 = arith.mulf %296, %278 : vector<8x32xf32>
    %301 = arith.mulf %295, %299 : vector<8x32xf32>
    %302 = arith.addf %300, %301 : vector<8x32xf32>
    %303 = math.tanh %302 : vector<8x32xf32>
    %304 = arith.mulf %297, %303 : vector<8x32xf32>
    %305 = arith.index_cast %284 : i32 to index
    %c0_87 = arith.constant 0 : index
    %306 = vector.load %arg15[%305, %c0_87] : memref<64x32xf32, #tpu.memory_space<vmem>>, vector<8x32xf32>
    tpu.vector_store %arg15[%305, %c0_87], %304 {strides = array<i32>} : memref<64x32xf32, #tpu.memory_space<vmem>>, vector<8x32xf32>,
    %c4_i32_88 = arith.constant 4 : i32
    %c8_i32_89 = arith.constant 8 : i32
    %307 = arith.muli %c4_i32_88, %c8_i32_89 : i32
    %308 = tpu.assume_multiple %307, 8 : i32
    %309 = arith.index_cast %308 : i32 to index
    %c0_90 = arith.constant 0 : index
    %310 = vector.load %arg14[%309, %c0_90] : memref<64x128xf32, #tpu.memory_space<vmem>>, vector<8x128xf32>
    %cst_91 = arith.constant dense<0.000000e+00> : vector<8x128xf32>
    %311 = tpu.matmul %304, %209, %cst_91 {dimension_numbers = #tpu.dot_dimension_numbers<[1], [0], [0], [1], [0, 0, 1, 1], [], []>} : vector<8x32xf32>, vector<32x128xf32>, vector<8x128xf32> -> vector<8x128xf32>
    %312 = arith.addf %310, %311 : vector<8x128xf32>
    %313 = vector.extract_strided_slice %312 {offsets = [0, 0], sizes = [8, 96], strides = [1, 1]} : vector<8x128xf32> to vector<8x96xf32>
    %314 = arith.negf %313 : vector<8x96xf32>
    %315 = math.exp %314 : vector<8x96xf32>
    %cst_92 = arith.constant 1.000000e+00 : f32
    %316 = vector.broadcast %cst_92 : f32 to vector<8x96xf32>
    %317 = arith.addf %316, %315 : vector<8x96xf32>
    %318 = arith.divf %316, %317 : vector<8x96xf32>
    %319 = vector.extract_strided_slice %318 {offsets = [0, 0], sizes = [8, 32], strides = [1, 1]} : vector<8x96xf32> to vector<8x32xf32>
    %320 = vector.extract_strided_slice %318 {offsets = [0, 32], sizes = [8, 32], strides = [1, 1]} : vector<8x96xf32> to vector<8x32xf32>
    %321 = vector.extract_strided_slice %318 {offsets = [0, 64], sizes = [8, 32], strides = [1, 1]} : vector<8x96xf32> to vector<8x32xf32>
    %322 = vector.extract_strided_slice %312 {offsets = [0, 96], sizes = [8, 32], strides = [1, 1]} : vector<8x128xf32> to vector<8x32xf32>
    %323 = math.tanh %322 : vector<8x32xf32>
    %324 = arith.mulf %320, %302 : vector<8x32xf32>
    %325 = arith.mulf %319, %323 : vector<8x32xf32>
    %326 = arith.addf %324, %325 : vector<8x32xf32>
    %327 = math.tanh %326 : vector<8x32xf32>
    %328 = arith.mulf %321, %327 : vector<8x32xf32>
    %329 = arith.index_cast %308 : i32 to index
    %c0_93 = arith.constant 0 : index
    %330 = vector.load %arg15[%329, %c0_93] : memref<64x32xf32, #tpu.memory_space<vmem>>, vector<8x32xf32>
    tpu.vector_store %arg15[%329, %c0_93], %328 {strides = array<i32>} : memref<64x32xf32, #tpu.memory_space<vmem>>, vector<8x32xf32>,
    %c5_i32_94 = arith.constant 5 : i32
    %c8_i32_95 = arith.constant 8 : i32
    %331 = arith.muli %c5_i32_94, %c8_i32_95 : i32
    %332 = tpu.assume_multiple %331, 8 : i32
    %333 = arith.index_cast %332 : i32 to index
    %c0_96 = arith.constant 0 : index
    %334 = vector.load %arg14[%333, %c0_96] : memref<64x128xf32, #tpu.memory_space<vmem>>, vector<8x128xf32>
    %cst_97 = arith.constant dense<0.000000e+00> : vector<8x128xf32>
    %335 = tpu.matmul %328, %209, %cst_97 {dimension_numbers = #tpu.dot_dimension_numbers<[1], [0], [0], [1], [0, 0, 1, 1], [], []>} : vector<8x32xf32>, vector<32x128xf32>, vector<8x128xf32> -> vector<8x128xf32>
    %336 = arith.addf %334, %335 : vector<8x128xf32>
    %337 = vector.extract_strided_slice %336 {offsets = [0, 0], sizes = [8, 96], strides = [1, 1]} : vector<8x128xf32> to vector<8x96xf32>
    %338 = arith.negf %337 : vector<8x96xf32>
    %339 = math.exp %338 : vector<8x96xf32>
    %cst_98 = arith.constant 1.000000e+00 : f32
    %340 = vector.broadcast %cst_98 : f32 to vector<8x96xf32>
    %341 = arith.addf %340, %339 : vector<8x96xf32>
    %342 = arith.divf %340, %341 : vector<8x96xf32>
    %343 = vector.extract_strided_slice %342 {offsets = [0, 0], sizes = [8, 32], strides = [1, 1]} : vector<8x96xf32> to vector<8x32xf32>
    %344 = vector.extract_strided_slice %342 {offsets = [0, 32], sizes = [8, 32], strides = [1, 1]} : vector<8x96xf32> to vector<8x32xf32>
    %345 = vector.extract_strided_slice %342 {offsets = [0, 64], sizes = [8, 32], strides = [1, 1]} : vector<8x96xf32> to vector<8x32xf32>
    %346 = vector.extract_strided_slice %336 {offsets = [0, 96], sizes = [8, 32], strides = [1, 1]} : vector<8x128xf32> to vector<8x32xf32>
    %347 = math.tanh %346 : vector<8x32xf32>
    %348 = arith.mulf %344, %326 : vector<8x32xf32>
    %349 = arith.mulf %343, %347 : vector<8x32xf32>
    %350 = arith.addf %348, %349 : vector<8x32xf32>
    %351 = math.tanh %350 : vector<8x32xf32>
    %352 = arith.mulf %345, %351 : vector<8x32xf32>
    %353 = arith.index_cast %332 : i32 to index
    %c0_99 = arith.constant 0 : index
    %354 = vector.load %arg15[%353, %c0_99] : memref<64x32xf32, #tpu.memory_space<vmem>>, vector<8x32xf32>
    tpu.vector_store %arg15[%353, %c0_99], %352 {strides = array<i32>} : memref<64x32xf32, #tpu.memory_space<vmem>>, vector<8x32xf32>,
    %c6_i32_100 = arith.constant 6 : i32
    %c8_i32_101 = arith.constant 8 : i32
    %355 = arith.muli %c6_i32_100, %c8_i32_101 : i32
    %356 = tpu.assume_multiple %355, 8 : i32
    %357 = arith.index_cast %356 : i32 to index
    %c0_102 = arith.constant 0 : index
    %358 = vector.load %arg14[%357, %c0_102] : memref<64x128xf32, #tpu.memory_space<vmem>>, vector<8x128xf32>
    %cst_103 = arith.constant dense<0.000000e+00> : vector<8x128xf32>
    %359 = tpu.matmul %352, %209, %cst_103 {dimension_numbers = #tpu.dot_dimension_numbers<[1], [0], [0], [1], [0, 0, 1, 1], [], []>} : vector<8x32xf32>, vector<32x128xf32>, vector<8x128xf32> -> vector<8x128xf32>
    %360 = arith.addf %358, %359 : vector<8x128xf32>
    %361 = vector.extract_strided_slice %360 {offsets = [0, 0], sizes = [8, 96], strides = [1, 1]} : vector<8x128xf32> to vector<8x96xf32>
    %362 = arith.negf %361 : vector<8x96xf32>
    %363 = math.exp %362 : vector<8x96xf32>
    %cst_104 = arith.constant 1.000000e+00 : f32
    %364 = vector.broadcast %cst_104 : f32 to vector<8x96xf32>
    %365 = arith.addf %364, %363 : vector<8x96xf32>
    %366 = arith.divf %364, %365 : vector<8x96xf32>
    %367 = vector.extract_strided_slice %366 {offsets = [0, 0], sizes = [8, 32], strides = [1, 1]} : vector<8x96xf32> to vector<8x32xf32>
    %368 = vector.extract_strided_slice %366 {offsets = [0, 32], sizes = [8, 32], strides = [1, 1]} : vector<8x96xf32> to vector<8x32xf32>
    %369 = vector.extract_strided_slice %366 {offsets = [0, 64], sizes = [8, 32], strides = [1, 1]} : vector<8x96xf32> to vector<8x32xf32>
    %370 = vector.extract_strided_slice %360 {offsets = [0, 96], sizes = [8, 32], strides = [1, 1]} : vector<8x128xf32> to vector<8x32xf32>
    %371 = math.tanh %370 : vector<8x32xf32>
    %372 = arith.mulf %368, %350 : vector<8x32xf32>
    %373 = arith.mulf %367, %371 : vector<8x32xf32>
    %374 = arith.addf %372, %373 : vector<8x32xf32>
    %375 = math.tanh %374 : vector<8x32xf32>
    %376 = arith.mulf %369, %375 : vector<8x32xf32>
    %377 = arith.index_cast %356 : i32 to index
    %c0_105 = arith.constant 0 : index
    %378 = vector.load %arg15[%377, %c0_105] : memref<64x32xf32, #tpu.memory_space<vmem>>, vector<8x32xf32>
    tpu.vector_store %arg15[%377, %c0_105], %376 {strides = array<i32>} : memref<64x32xf32, #tpu.memory_space<vmem>>, vector<8x32xf32>,
    %c7_i32_106 = arith.constant 7 : i32
    %c8_i32_107 = arith.constant 8 : i32
    %379 = arith.muli %c7_i32_106, %c8_i32_107 : i32
    %380 = tpu.assume_multiple %379, 8 : i32
    %381 = arith.index_cast %380 : i32 to index
    %c0_108 = arith.constant 0 : index
    %382 = vector.load %arg14[%381, %c0_108] : memref<64x128xf32, #tpu.memory_space<vmem>>, vector<8x128xf32>
    %cst_109 = arith.constant dense<0.000000e+00> : vector<8x128xf32>
    %383 = tpu.matmul %376, %209, %cst_109 {dimension_numbers = #tpu.dot_dimension_numbers<[1], [0], [0], [1], [0, 0, 1, 1], [], []>} : vector<8x32xf32>, vector<32x128xf32>, vector<8x128xf32> -> vector<8x128xf32>
    %384 = arith.addf %382, %383 : vector<8x128xf32>
    %385 = vector.extract_strided_slice %384 {offsets = [0, 0], sizes = [8, 96], strides = [1, 1]} : vector<8x128xf32> to vector<8x96xf32>
    %386 = arith.negf %385 : vector<8x96xf32>
    %387 = math.exp %386 : vector<8x96xf32>
    %cst_110 = arith.constant 1.000000e+00 : f32
    %388 = vector.broadcast %cst_110 : f32 to vector<8x96xf32>
    %389 = arith.addf %388, %387 : vector<8x96xf32>
    %390 = arith.divf %388, %389 : vector<8x96xf32>
    %391 = vector.extract_strided_slice %390 {offsets = [0, 0], sizes = [8, 32], strides = [1, 1]} : vector<8x96xf32> to vector<8x32xf32>
    %392 = vector.extract_strided_slice %390 {offsets = [0, 32], sizes = [8, 32], strides = [1, 1]} : vector<8x96xf32> to vector<8x32xf32>
    %393 = vector.extract_strided_slice %390 {offsets = [0, 64], sizes = [8, 32], strides = [1, 1]} : vector<8x96xf32> to vector<8x32xf32>
    %394 = vector.extract_strided_slice %384 {offsets = [0, 96], sizes = [8, 32], strides = [1, 1]} : vector<8x128xf32> to vector<8x32xf32>
    %395 = math.tanh %394 : vector<8x32xf32>
    %396 = arith.mulf %392, %374 : vector<8x32xf32>
    %397 = arith.mulf %391, %395 : vector<8x32xf32>
    %398 = arith.addf %396, %397 : vector<8x32xf32>
    %399 = math.tanh %398 : vector<8x32xf32>
    %400 = arith.mulf %393, %399 : vector<8x32xf32>
    %401 = arith.index_cast %380 : i32 to index
    %c0_111 = arith.constant 0 : index
    %402 = vector.load %arg15[%401, %c0_111] : memref<64x32xf32, #tpu.memory_space<vmem>>, vector<8x32xf32>
    tpu.vector_store %arg15[%401, %c0_111], %400 {strides = array<i32>} : memref<64x32xf32, #tpu.memory_space<vmem>>, vector<8x32xf32>,
    %c8_i32_112 = arith.constant 8 : i32
    %c0_113 = arith.constant 0 : index
    %c0_114 = arith.constant 0 : index
    %403 = vector.load %arg15[%c0_113, %c0_114] : memref<64x32xf32, #tpu.memory_space<vmem>>, vector<64x32xf32>
    %c0_115 = arith.constant 0 : index
    %c0_116 = arith.constant 0 : index
    %404 = vector.load %arg8[%c0_115, %c0_116] : memref<32x128xf32, #tpu.memory_space<vmem>>, vector<32x128xf32>
    %cst_117 = arith.constant dense<0.000000e+00> : vector<64x128xf32>
    %405 = tpu.matmul %403, %404, %cst_117 {dimension_numbers = #tpu.dot_dimension_numbers<[1], [0], [0], [1], [0, 0, 1, 1], [], []>} : vector<64x32xf32>, vector<32x128xf32>, vector<64x128xf32> -> vector<64x128xf32>
    %c0_118 = arith.constant 0 : index
    %c0_119 = arith.constant 0 : index
    %406 = vector.load %arg10[%c0_118, %c0_119] : memref<1x128xf32, #tpu.memory_space<vmem>>, vector<1x128xf32>
    %407 = vector.broadcast %406 : vector<1x128xf32> to vector<64x128xf32>
    %408 = arith.addf %405, %407 : vector<64x128xf32>
    %c0_120 = arith.constant 0 : index
    %c0_121 = arith.constant 0 : index
    %409 = vector.load %arg14[%c0_120, %c0_121] : memref<64x128xf32, #tpu.memory_space<vmem>>, vector<64x128xf32>
    tpu.vector_store %arg14[%c0_120, %c0_121], %408 {strides = array<i32>} : memref<64x128xf32, #tpu.memory_space<vmem>>, vector<64x128xf32>,
    %c0_122 = arith.constant 0 : index
    %c0_123 = arith.constant 0 : index
    %410 = vector.load %arg9[%c0_122, %c0_123] : memref<32x128xf32, #tpu.memory_space<vmem>>, vector<32x128xf32>
    %cst_124 = arith.constant 0.000000e+00 : f32
    %411 = vector.broadcast %cst_124 : f32 to vector<8x32xf32>
    %c0_i32_125 = arith.constant 0 : i32
    %c8_i32_126 = arith.constant 8 : i32
    %412 = arith.muli %c0_i32_125, %c8_i32_126 : i32
    %413 = tpu.assume_multiple %412, 8 : i32
    %414 = arith.index_cast %413 : i32 to index
    %c0_127 = arith.constant 0 : index
    %415 = vector.load %arg14[%414, %c0_127] : memref<64x128xf32, #tpu.memory_space<vmem>>, vector<8x128xf32>
    %cst_128 = arith.constant dense<0.000000e+00> : vector<8x128xf32>
    %416 = tpu.matmul %411, %410, %cst_128 {dimension_numbers = #tpu.dot_dimension_numbers<[1], [0], [0], [1], [0, 0, 1, 1], [], []>} : vector<8x32xf32>, vector<32x128xf32>, vector<8x128xf32> -> vector<8x128xf32>
    %417 = arith.addf %415, %416 : vector<8x128xf32>
    %418 = vector.extract_strided_slice %417 {offsets = [0, 0], sizes = [8, 96], strides = [1, 1]} : vector<8x128xf32> to vector<8x96xf32>
    %419 = arith.negf %418 : vector<8x96xf32>
    %420 = math.exp %419 : vector<8x96xf32>
    %cst_129 = arith.constant 1.000000e+00 : f32
    %421 = vector.broadcast %cst_129 : f32 to vector<8x96xf32>
    %422 = arith.addf %421, %420 : vector<8x96xf32>
    %423 = arith.divf %421, %422 : vector<8x96xf32>
    %424 = vector.extract_strided_slice %423 {offsets = [0, 0], sizes = [8, 32], strides = [1, 1]} : vector<8x96xf32> to vector<8x32xf32>
    %425 = vector.extract_strided_slice %423 {offsets = [0, 32], sizes = [8, 32], strides = [1, 1]} : vector<8x96xf32> to vector<8x32xf32>
    %426 = vector.extract_strided_slice %423 {offsets = [0, 64], sizes = [8, 32], strides = [1, 1]} : vector<8x96xf32> to vector<8x32xf32>
    %427 = vector.extract_strided_slice %417 {offsets = [0, 96], sizes = [8, 32], strides = [1, 1]} : vector<8x128xf32> to vector<8x32xf32>
    %428 = math.tanh %427 : vector<8x32xf32>
    %429 = arith.mulf %425, %411 : vector<8x32xf32>
    %430 = arith.mulf %424, %428 : vector<8x32xf32>
    %431 = arith.addf %429, %430 : vector<8x32xf32>
    %432 = math.tanh %431 : vector<8x32xf32>
    %433 = arith.mulf %426, %432 : vector<8x32xf32>
    %434 = vector.broadcast %c0_i32_125 : i32 to vector<8x1xi32>
    %435 = arith.cmpi sgt, %0, %434 : vector<8x1xi32>
    %cst_130 = arith.constant 0.000000e+00 : f32
    %436 = vector.shape_cast %435 : vector<8x1xi1> to vector<8x1xi1>
    %437 = vector.broadcast %436 : vector<8x1xi1> to vector<8x32xi1>
    %438 = vector.broadcast %cst_130 : f32 to vector<8x32xf32>
    %439 = arith.select %437, %433, %438 : vector<8x32xi1>, vector<8x32xf32>
    %440 = arith.index_cast %413 : i32 to index
    %c0_131 = arith.constant 0 : index
    %441 = vector.load %arg15[%440, %c0_131] : memref<64x32xf32, #tpu.memory_space<vmem>>, vector<8x32xf32>
    tpu.vector_store %arg15[%440, %c0_131], %439 {strides = array<i32>} : memref<64x32xf32, #tpu.memory_space<vmem>>, vector<8x32xf32>,
    %c1_i32_132 = arith.constant 1 : i32
    %c8_i32_133 = arith.constant 8 : i32
    %442 = arith.muli %c1_i32_132, %c8_i32_133 : i32
    %443 = tpu.assume_multiple %442, 8 : i32
    %444 = arith.index_cast %443 : i32 to index
    %c0_134 = arith.constant 0 : index
    %445 = vector.load %arg14[%444, %c0_134] : memref<64x128xf32, #tpu.memory_space<vmem>>, vector<8x128xf32>
    %cst_135 = arith.constant dense<0.000000e+00> : vector<8x128xf32>
    %446 = tpu.matmul %433, %410, %cst_135 {dimension_numbers = #tpu.dot_dimension_numbers<[1], [0], [0], [1], [0, 0, 1, 1], [], []>} : vector<8x32xf32>, vector<32x128xf32>, vector<8x128xf32> -> vector<8x128xf32>
    %447 = arith.addf %445, %446 : vector<8x128xf32>
    %448 = vector.extract_strided_slice %447 {offsets = [0, 0], sizes = [8, 96], strides = [1, 1]} : vector<8x128xf32> to vector<8x96xf32>
    %449 = arith.negf %448 : vector<8x96xf32>
    %450 = math.exp %449 : vector<8x96xf32>
    %cst_136 = arith.constant 1.000000e+00 : f32
    %451 = vector.broadcast %cst_136 : f32 to vector<8x96xf32>
    %452 = arith.addf %451, %450 : vector<8x96xf32>
    %453 = arith.divf %451, %452 : vector<8x96xf32>
    %454 = vector.extract_strided_slice %453 {offsets = [0, 0], sizes = [8, 32], strides = [1, 1]} : vector<8x96xf32> to vector<8x32xf32>
    %455 = vector.extract_strided_slice %453 {offsets = [0, 32], sizes = [8, 32], strides = [1, 1]} : vector<8x96xf32> to vector<8x32xf32>
    %456 = vector.extract_strided_slice %453 {offsets = [0, 64], sizes = [8, 32], strides = [1, 1]} : vector<8x96xf32> to vector<8x32xf32>
    %457 = vector.extract_strided_slice %447 {offsets = [0, 96], sizes = [8, 32], strides = [1, 1]} : vector<8x128xf32> to vector<8x32xf32>
    %458 = math.tanh %457 : vector<8x32xf32>
    %459 = arith.mulf %455, %431 : vector<8x32xf32>
    %460 = arith.mulf %454, %458 : vector<8x32xf32>
    %461 = arith.addf %459, %460 : vector<8x32xf32>
    %462 = math.tanh %461 : vector<8x32xf32>
    %463 = arith.mulf %456, %462 : vector<8x32xf32>
    %464 = vector.broadcast %c1_i32_132 : i32 to vector<8x1xi32>
    %465 = arith.cmpi sgt, %0, %464 : vector<8x1xi32>
    %cst_137 = arith.constant 0.000000e+00 : f32
    %466 = vector.shape_cast %465 : vector<8x1xi1> to vector<8x1xi1>
    %467 = vector.broadcast %466 : vector<8x1xi1> to vector<8x32xi1>
    %468 = vector.broadcast %cst_137 : f32 to vector<8x32xf32>
    %469 = arith.select %467, %463, %468 : vector<8x32xi1>, vector<8x32xf32>
    %470 = arith.index_cast %443 : i32 to index
    %c0_138 = arith.constant 0 : index
    %471 = vector.load %arg15[%470, %c0_138] : memref<64x32xf32, #tpu.memory_space<vmem>>, vector<8x32xf32>
    tpu.vector_store %arg15[%470, %c0_138], %469 {strides = array<i32>} : memref<64x32xf32, #tpu.memory_space<vmem>>, vector<8x32xf32>,
    %c2_i32_139 = arith.constant 2 : i32
    %c8_i32_140 = arith.constant 8 : i32
    %472 = arith.muli %c2_i32_139, %c8_i32_140 : i32
    %473 = tpu.assume_multiple %472, 8 : i32
    %474 = arith.index_cast %473 : i32 to index
    %c0_141 = arith.constant 0 : index
    %475 = vector.load %arg14[%474, %c0_141] : memref<64x128xf32, #tpu.memory_space<vmem>>, vector<8x128xf32>
    %cst_142 = arith.constant dense<0.000000e+00> : vector<8x128xf32>
    %476 = tpu.matmul %463, %410, %cst_142 {dimension_numbers = #tpu.dot_dimension_numbers<[1], [0], [0], [1], [0, 0, 1, 1], [], []>} : vector<8x32xf32>, vector<32x128xf32>, vector<8x128xf32> -> vector<8x128xf32>
    %477 = arith.addf %475, %476 : vector<8x128xf32>
    %478 = vector.extract_strided_slice %477 {offsets = [0, 0], sizes = [8, 96], strides = [1, 1]} : vector<8x128xf32> to vector<8x96xf32>
    %479 = arith.negf %478 : vector<8x96xf32>
    %480 = math.exp %479 : vector<8x96xf32>
    %cst_143 = arith.constant 1.000000e+00 : f32
    %481 = vector.broadcast %cst_143 : f32 to vector<8x96xf32>
    %482 = arith.addf %481, %480 : vector<8x96xf32>
    %483 = arith.divf %481, %482 : vector<8x96xf32>
    %484 = vector.extract_strided_slice %483 {offsets = [0, 0], sizes = [8, 32], strides = [1, 1]} : vector<8x96xf32> to vector<8x32xf32>
    %485 = vector.extract_strided_slice %483 {offsets = [0, 32], sizes = [8, 32], strides = [1, 1]} : vector<8x96xf32> to vector<8x32xf32>
    %486 = vector.extract_strided_slice %483 {offsets = [0, 64], sizes = [8, 32], strides = [1, 1]} : vector<8x96xf32> to vector<8x32xf32>
    %487 = vector.extract_strided_slice %477 {offsets = [0, 96], sizes = [8, 32], strides = [1, 1]} : vector<8x128xf32> to vector<8x32xf32>
    %488 = math.tanh %487 : vector<8x32xf32>
    %489 = arith.mulf %485, %461 : vector<8x32xf32>
    %490 = arith.mulf %484, %488 : vector<8x32xf32>
    %491 = arith.addf %489, %490 : vector<8x32xf32>
    %492 = math.tanh %491 : vector<8x32xf32>
    %493 = arith.mulf %486, %492 : vector<8x32xf32>
    %494 = vector.broadcast %c2_i32_139 : i32 to vector<8x1xi32>
    %495 = arith.cmpi sgt, %0, %494 : vector<8x1xi32>
    %cst_144 = arith.constant 0.000000e+00 : f32
    %496 = vector.shape_cast %495 : vector<8x1xi1> to vector<8x1xi1>
    %497 = vector.broadcast %496 : vector<8x1xi1> to vector<8x32xi1>
    %498 = vector.broadcast %cst_144 : f32 to vector<8x32xf32>
    %499 = arith.select %497, %493, %498 : vector<8x32xi1>, vector<8x32xf32>
    %500 = arith.index_cast %473 : i32 to index
    %c0_145 = arith.constant 0 : index
    %501 = vector.load %arg15[%500, %c0_145] : memref<64x32xf32, #tpu.memory_space<vmem>>, vector<8x32xf32>
    tpu.vector_store %arg15[%500, %c0_145], %499 {strides = array<i32>} : memref<64x32xf32, #tpu.memory_space<vmem>>, vector<8x32xf32>,
    %c3_i32_146 = arith.constant 3 : i32
    %c8_i32_147 = arith.constant 8 : i32
    %502 = arith.muli %c3_i32_146, %c8_i32_147 : i32
    %503 = tpu.assume_multiple %502, 8 : i32
    %504 = arith.index_cast %503 : i32 to index
    %c0_148 = arith.constant 0 : index
    %505 = vector.load %arg14[%504, %c0_148] : memref<64x128xf32, #tpu.memory_space<vmem>>, vector<8x128xf32>
    %cst_149 = arith.constant dense<0.000000e+00> : vector<8x128xf32>
    %506 = tpu.matmul %493, %410, %cst_149 {dimension_numbers = #tpu.dot_dimension_numbers<[1], [0], [0], [1], [0, 0, 1, 1], [], []>} : vector<8x32xf32>, vector<32x128xf32>, vector<8x128xf32> -> vector<8x128xf32>
    %507 = arith.addf %505, %506 : vector<8x128xf32>
    %508 = vector.extract_strided_slice %507 {offsets = [0, 0], sizes = [8, 96], strides = [1, 1]} : vector<8x128xf32> to vector<8x96xf32>
    %509 = arith.negf %508 : vector<8x96xf32>
    %510 = math.exp %509 : vector<8x96xf32>
    %cst_150 = arith.constant 1.000000e+00 : f32
    %511 = vector.broadcast %cst_150 : f32 to vector<8x96xf32>
    %512 = arith.addf %511, %510 : vector<8x96xf32>
    %513 = arith.divf %511, %512 : vector<8x96xf32>
    %514 = vector.extract_strided_slice %513 {offsets = [0, 0], sizes = [8, 32], strides = [1, 1]} : vector<8x96xf32> to vector<8x32xf32>
    %515 = vector.extract_strided_slice %513 {offsets = [0, 32], sizes = [8, 32], strides = [1, 1]} : vector<8x96xf32> to vector<8x32xf32>
    %516 = vector.extract_strided_slice %513 {offsets = [0, 64], sizes = [8, 32], strides = [1, 1]} : vector<8x96xf32> to vector<8x32xf32>
    %517 = vector.extract_strided_slice %507 {offsets = [0, 96], sizes = [8, 32], strides = [1, 1]} : vector<8x128xf32> to vector<8x32xf32>
    %518 = math.tanh %517 : vector<8x32xf32>
    %519 = arith.mulf %515, %491 : vector<8x32xf32>
    %520 = arith.mulf %514, %518 : vector<8x32xf32>
    %521 = arith.addf %519, %520 : vector<8x32xf32>
    %522 = math.tanh %521 : vector<8x32xf32>
    %523 = arith.mulf %516, %522 : vector<8x32xf32>
    %524 = vector.broadcast %c3_i32_146 : i32 to vector<8x1xi32>
    %525 = arith.cmpi sgt, %0, %524 : vector<8x1xi32>
    %cst_151 = arith.constant 0.000000e+00 : f32
    %526 = vector.shape_cast %525 : vector<8x1xi1> to vector<8x1xi1>
    %527 = vector.broadcast %526 : vector<8x1xi1> to vector<8x32xi1>
    %528 = vector.broadcast %cst_151 : f32 to vector<8x32xf32>
    %529 = arith.select %527, %523, %528 : vector<8x32xi1>, vector<8x32xf32>
    %530 = arith.index_cast %503 : i32 to index
    %c0_152 = arith.constant 0 : index
    %531 = vector.load %arg15[%530, %c0_152] : memref<64x32xf32, #tpu.memory_space<vmem>>, vector<8x32xf32>
    tpu.vector_store %arg15[%530, %c0_152], %529 {strides = array<i32>} : memref<64x32xf32, #tpu.memory_space<vmem>>, vector<8x32xf32>,
    %c4_i32_153 = arith.constant 4 : i32
    %c8_i32_154 = arith.constant 8 : i32
    %532 = arith.muli %c4_i32_153, %c8_i32_154 : i32
    %533 = tpu.assume_multiple %532, 8 : i32
    %534 = arith.index_cast %533 : i32 to index
    %c0_155 = arith.constant 0 : index
    %535 = vector.load %arg14[%534, %c0_155] : memref<64x128xf32, #tpu.memory_space<vmem>>, vector<8x128xf32>
    %cst_156 = arith.constant dense<0.000000e+00> : vector<8x128xf32>
    %536 = tpu.matmul %523, %410, %cst_156 {dimension_numbers = #tpu.dot_dimension_numbers<[1], [0], [0], [1], [0, 0, 1, 1], [], []>} : vector<8x32xf32>, vector<32x128xf32>, vector<8x128xf32> -> vector<8x128xf32>
    %537 = arith.addf %535, %536 : vector<8x128xf32>
    %538 = vector.extract_strided_slice %537 {offsets = [0, 0], sizes = [8, 96], strides = [1, 1]} : vector<8x128xf32> to vector<8x96xf32>
    %539 = arith.negf %538 : vector<8x96xf32>
    %540 = math.exp %539 : vector<8x96xf32>
    %cst_157 = arith.constant 1.000000e+00 : f32
    %541 = vector.broadcast %cst_157 : f32 to vector<8x96xf32>
    %542 = arith.addf %541, %540 : vector<8x96xf32>
    %543 = arith.divf %541, %542 : vector<8x96xf32>
    %544 = vector.extract_strided_slice %543 {offsets = [0, 0], sizes = [8, 32], strides = [1, 1]} : vector<8x96xf32> to vector<8x32xf32>
    %545 = vector.extract_strided_slice %543 {offsets = [0, 32], sizes = [8, 32], strides = [1, 1]} : vector<8x96xf32> to vector<8x32xf32>
    %546 = vector.extract_strided_slice %543 {offsets = [0, 64], sizes = [8, 32], strides = [1, 1]} : vector<8x96xf32> to vector<8x32xf32>
    %547 = vector.extract_strided_slice %537 {offsets = [0, 96], sizes = [8, 32], strides = [1, 1]} : vector<8x128xf32> to vector<8x32xf32>
    %548 = math.tanh %547 : vector<8x32xf32>
    %549 = arith.mulf %545, %521 : vector<8x32xf32>
    %550 = arith.mulf %544, %548 : vector<8x32xf32>
    %551 = arith.addf %549, %550 : vector<8x32xf32>
    %552 = math.tanh %551 : vector<8x32xf32>
    %553 = arith.mulf %546, %552 : vector<8x32xf32>
    %554 = vector.broadcast %c4_i32_153 : i32 to vector<8x1xi32>
    %555 = arith.cmpi sgt, %0, %554 : vector<8x1xi32>
    %cst_158 = arith.constant 0.000000e+00 : f32
    %556 = vector.shape_cast %555 : vector<8x1xi1> to vector<8x1xi1>
    %557 = vector.broadcast %556 : vector<8x1xi1> to vector<8x32xi1>
    %558 = vector.broadcast %cst_158 : f32 to vector<8x32xf32>
    %559 = arith.select %557, %553, %558 : vector<8x32xi1>, vector<8x32xf32>
    %560 = arith.index_cast %533 : i32 to index
    %c0_159 = arith.constant 0 : index
    %561 = vector.load %arg15[%560, %c0_159] : memref<64x32xf32, #tpu.memory_space<vmem>>, vector<8x32xf32>
    tpu.vector_store %arg15[%560, %c0_159], %559 {strides = array<i32>} : memref<64x32xf32, #tpu.memory_space<vmem>>, vector<8x32xf32>,
    %c5_i32_160 = arith.constant 5 : i32
    %c8_i32_161 = arith.constant 8 : i32
    %562 = arith.muli %c5_i32_160, %c8_i32_161 : i32
    %563 = tpu.assume_multiple %562, 8 : i32
    %564 = arith.index_cast %563 : i32 to index
    %c0_162 = arith.constant 0 : index
    %565 = vector.load %arg14[%564, %c0_162] : memref<64x128xf32, #tpu.memory_space<vmem>>, vector<8x128xf32>
    %cst_163 = arith.constant dense<0.000000e+00> : vector<8x128xf32>
    %566 = tpu.matmul %553, %410, %cst_163 {dimension_numbers = #tpu.dot_dimension_numbers<[1], [0], [0], [1], [0, 0, 1, 1], [], []>} : vector<8x32xf32>, vector<32x128xf32>, vector<8x128xf32> -> vector<8x128xf32>
    %567 = arith.addf %565, %566 : vector<8x128xf32>
    %568 = vector.extract_strided_slice %567 {offsets = [0, 0], sizes = [8, 96], strides = [1, 1]} : vector<8x128xf32> to vector<8x96xf32>
    %569 = arith.negf %568 : vector<8x96xf32>
    %570 = math.exp %569 : vector<8x96xf32>
    %cst_164 = arith.constant 1.000000e+00 : f32
    %571 = vector.broadcast %cst_164 : f32 to vector<8x96xf32>
    %572 = arith.addf %571, %570 : vector<8x96xf32>
    %573 = arith.divf %571, %572 : vector<8x96xf32>
    %574 = vector.extract_strided_slice %573 {offsets = [0, 0], sizes = [8, 32], strides = [1, 1]} : vector<8x96xf32> to vector<8x32xf32>
    %575 = vector.extract_strided_slice %573 {offsets = [0, 32], sizes = [8, 32], strides = [1, 1]} : vector<8x96xf32> to vector<8x32xf32>
    %576 = vector.extract_strided_slice %573 {offsets = [0, 64], sizes = [8, 32], strides = [1, 1]} : vector<8x96xf32> to vector<8x32xf32>
    %577 = vector.extract_strided_slice %567 {offsets = [0, 96], sizes = [8, 32], strides = [1, 1]} : vector<8x128xf32> to vector<8x32xf32>
    %578 = math.tanh %577 : vector<8x32xf32>
    %579 = arith.mulf %575, %551 : vector<8x32xf32>
    %580 = arith.mulf %574, %578 : vector<8x32xf32>
    %581 = arith.addf %579, %580 : vector<8x32xf32>
    %582 = math.tanh %581 : vector<8x32xf32>
    %583 = arith.mulf %576, %582 : vector<8x32xf32>
    %584 = vector.broadcast %c5_i32_160 : i32 to vector<8x1xi32>
    %585 = arith.cmpi sgt, %0, %584 : vector<8x1xi32>
    %cst_165 = arith.constant 0.000000e+00 : f32
    %586 = vector.shape_cast %585 : vector<8x1xi1> to vector<8x1xi1>
    %587 = vector.broadcast %586 : vector<8x1xi1> to vector<8x32xi1>
    %588 = vector.broadcast %cst_165 : f32 to vector<8x32xf32>
    %589 = arith.select %587, %583, %588 : vector<8x32xi1>, vector<8x32xf32>
    %590 = arith.index_cast %563 : i32 to index
    %c0_166 = arith.constant 0 : index
    %591 = vector.load %arg15[%590, %c0_166] : memref<64x32xf32, #tpu.memory_space<vmem>>, vector<8x32xf32>
    tpu.vector_store %arg15[%590, %c0_166], %589 {strides = array<i32>} : memref<64x32xf32, #tpu.memory_space<vmem>>, vector<8x32xf32>,
    %c6_i32_167 = arith.constant 6 : i32
    %c8_i32_168 = arith.constant 8 : i32
    %592 = arith.muli %c6_i32_167, %c8_i32_168 : i32
    %593 = tpu.assume_multiple %592, 8 : i32
    %594 = arith.index_cast %593 : i32 to index
    %c0_169 = arith.constant 0 : index
    %595 = vector.load %arg14[%594, %c0_169] : memref<64x128xf32, #tpu.memory_space<vmem>>, vector<8x128xf32>
    %cst_170 = arith.constant dense<0.000000e+00> : vector<8x128xf32>
    %596 = tpu.matmul %583, %410, %cst_170 {dimension_numbers = #tpu.dot_dimension_numbers<[1], [0], [0], [1], [0, 0, 1, 1], [], []>} : vector<8x32xf32>, vector<32x128xf32>, vector<8x128xf32> -> vector<8x128xf32>
    %597 = arith.addf %595, %596 : vector<8x128xf32>
    %598 = vector.extract_strided_slice %597 {offsets = [0, 0], sizes = [8, 96], strides = [1, 1]} : vector<8x128xf32> to vector<8x96xf32>
    %599 = arith.negf %598 : vector<8x96xf32>
    %600 = math.exp %599 : vector<8x96xf32>
    %cst_171 = arith.constant 1.000000e+00 : f32
    %601 = vector.broadcast %cst_171 : f32 to vector<8x96xf32>
    %602 = arith.addf %601, %600 : vector<8x96xf32>
    %603 = arith.divf %601, %602 : vector<8x96xf32>
    %604 = vector.extract_strided_slice %603 {offsets = [0, 0], sizes = [8, 32], strides = [1, 1]} : vector<8x96xf32> to vector<8x32xf32>
    %605 = vector.extract_strided_slice %603 {offsets = [0, 32], sizes = [8, 32], strides = [1, 1]} : vector<8x96xf32> to vector<8x32xf32>
    %606 = vector.extract_strided_slice %603 {offsets = [0, 64], sizes = [8, 32], strides = [1, 1]} : vector<8x96xf32> to vector<8x32xf32>
    %607 = vector.extract_strided_slice %597 {offsets = [0, 96], sizes = [8, 32], strides = [1, 1]} : vector<8x128xf32> to vector<8x32xf32>
    %608 = math.tanh %607 : vector<8x32xf32>
    %609 = arith.mulf %605, %581 : vector<8x32xf32>
    %610 = arith.mulf %604, %608 : vector<8x32xf32>
    %611 = arith.addf %609, %610 : vector<8x32xf32>
    %612 = math.tanh %611 : vector<8x32xf32>
    %613 = arith.mulf %606, %612 : vector<8x32xf32>
    %614 = vector.broadcast %c6_i32_167 : i32 to vector<8x1xi32>
    %615 = arith.cmpi sgt, %0, %614 : vector<8x1xi32>
    %cst_172 = arith.constant 0.000000e+00 : f32
    %616 = vector.shape_cast %615 : vector<8x1xi1> to vector<8x1xi1>
    %617 = vector.broadcast %616 : vector<8x1xi1> to vector<8x32xi1>
    %618 = vector.broadcast %cst_172 : f32 to vector<8x32xf32>
    %619 = arith.select %617, %613, %618 : vector<8x32xi1>, vector<8x32xf32>
    %620 = arith.index_cast %593 : i32 to index
    %c0_173 = arith.constant 0 : index
    %621 = vector.load %arg15[%620, %c0_173] : memref<64x32xf32, #tpu.memory_space<vmem>>, vector<8x32xf32>
    tpu.vector_store %arg15[%620, %c0_173], %619 {strides = array<i32>} : memref<64x32xf32, #tpu.memory_space<vmem>>, vector<8x32xf32>,
    %c7_i32_174 = arith.constant 7 : i32
    %c8_i32_175 = arith.constant 8 : i32
    %622 = arith.muli %c7_i32_174, %c8_i32_175 : i32
    %623 = tpu.assume_multiple %622, 8 : i32
    %624 = arith.index_cast %623 : i32 to index
    %c0_176 = arith.constant 0 : index
    %625 = vector.load %arg14[%624, %c0_176] : memref<64x128xf32, #tpu.memory_space<vmem>>, vector<8x128xf32>
    %cst_177 = arith.constant dense<0.000000e+00> : vector<8x128xf32>
    %626 = tpu.matmul %613, %410, %cst_177 {dimension_numbers = #tpu.dot_dimension_numbers<[1], [0], [0], [1], [0, 0, 1, 1], [], []>} : vector<8x32xf32>, vector<32x128xf32>, vector<8x128xf32> -> vector<8x128xf32>
    %627 = arith.addf %625, %626 : vector<8x128xf32>
    %628 = vector.extract_strided_slice %627 {offsets = [0, 0], sizes = [8, 96], strides = [1, 1]} : vector<8x128xf32> to vector<8x96xf32>
    %629 = arith.negf %628 : vector<8x96xf32>
    %630 = math.exp %629 : vector<8x96xf32>
    %cst_178 = arith.constant 1.000000e+00 : f32
    %631 = vector.broadcast %cst_178 : f32 to vector<8x96xf32>
    %632 = arith.addf %631, %630 : vector<8x96xf32>
    %633 = arith.divf %631, %632 : vector<8x96xf32>
    %634 = vector.extract_strided_slice %633 {offsets = [0, 0], sizes = [8, 32], strides = [1, 1]} : vector<8x96xf32> to vector<8x32xf32>
    %635 = vector.extract_strided_slice %633 {offsets = [0, 32], sizes = [8, 32], strides = [1, 1]} : vector<8x96xf32> to vector<8x32xf32>
    %636 = vector.extract_strided_slice %633 {offsets = [0, 64], sizes = [8, 32], strides = [1, 1]} : vector<8x96xf32> to vector<8x32xf32>
    %637 = vector.extract_strided_slice %627 {offsets = [0, 96], sizes = [8, 32], strides = [1, 1]} : vector<8x128xf32> to vector<8x32xf32>
    %638 = math.tanh %637 : vector<8x32xf32>
    %639 = arith.mulf %635, %611 : vector<8x32xf32>
    %640 = arith.mulf %634, %638 : vector<8x32xf32>
    %641 = arith.addf %639, %640 : vector<8x32xf32>
    %642 = math.tanh %641 : vector<8x32xf32>
    %643 = arith.mulf %636, %642 : vector<8x32xf32>
    %644 = vector.broadcast %c7_i32_174 : i32 to vector<8x1xi32>
    %645 = arith.cmpi sgt, %0, %644 : vector<8x1xi32>
    %cst_179 = arith.constant 0.000000e+00 : f32
    %646 = vector.shape_cast %645 : vector<8x1xi1> to vector<8x1xi1>
    %647 = vector.broadcast %646 : vector<8x1xi1> to vector<8x32xi1>
    %648 = vector.broadcast %cst_179 : f32 to vector<8x32xf32>
    %649 = arith.select %647, %643, %648 : vector<8x32xi1>, vector<8x32xf32>
    %650 = arith.index_cast %623 : i32 to index
    %c0_180 = arith.constant 0 : index
    %651 = vector.load %arg15[%650, %c0_180] : memref<64x32xf32, #tpu.memory_space<vmem>>, vector<8x32xf32>
    tpu.vector_store %arg15[%650, %c0_180], %649 {strides = array<i32>} : memref<64x32xf32, #tpu.memory_space<vmem>>, vector<8x32xf32>,
    %c8_i32_181 = arith.constant 8 : i32
    %c0_182 = arith.constant 0 : index
    %c0_183 = arith.constant 0 : index
    %652 = vector.load %arg15[%c0_182, %c0_183] : memref<64x32xf32, #tpu.memory_space<vmem>>, vector<64x32xf32>
    %c0_184 = arith.constant 0 : index
    %c0_185 = arith.constant 0 : index
    %653 = vector.load %arg11[%c0_184, %c0_185] : memref<32x128xf32, #tpu.memory_space<vmem>>, vector<32x128xf32>
    %cst_186 = arith.constant dense<0.000000e+00> : vector<64x128xf32>
    %654 = tpu.matmul %652, %653, %cst_186 {dimension_numbers = #tpu.dot_dimension_numbers<[1], [0], [0], [1], [0, 0, 1, 1], [], []>} : vector<64x32xf32>, vector<32x128xf32>, vector<64x128xf32> -> vector<64x128xf32>
    %c0_187 = arith.constant 0 : index
    %c0_188 = arith.constant 0 : index
    %655 = vector.load %arg12[%c0_187, %c0_188] : memref<1x128xf32, #tpu.memory_space<vmem>>, vector<1x128xf32>
    %656 = vector.broadcast %655 : vector<1x128xf32> to vector<64x128xf32>
    %657 = arith.addf %654, %656 : vector<64x128xf32>
    %c0_189 = arith.constant 0 : index
    %c0_190 = arith.constant 0 : index
    %658 = vector.load %arg13[%c0_189, %c0_190] : memref<64x128xf32, #tpu.memory_space<vmem>>, vector<64x128xf32>
    tpu.vector_store %arg13[%c0_189, %c0_190], %657 {strides = array<i32>} : memref<64x128xf32, #tpu.memory_space<vmem>>, vector<64x128xf32>,
    return
  }
}

</mosaic_0001>

<llo_original>
// kernel: wsj_forward.1
$region0: #{wsj_forward.1}
  #allocation0 [shape = 'u32[]', space=smem, size = 0x4, offset = 0x4, fixed_abs, tag = 'smem constant byte address 0x4 - core index']
  #allocation1 [shape = 'u32[144,128]{1,0:T(1,128)}', space=vmem, size = 0x12000, scoped, tag = 'internal scratch']
  #allocation2 [shape = 'f32[64,128]{1,0:T(8,128)}', space=vmem, size = 0x8000, scoped, tag = 'scratch operand']
  #allocation3 [shape = 'f32[64,32]{1,0:T(8,128)}', space=vmem, size = 0x8000, scoped, tag = 'scratch operand']
  %s0 = inlined_call_operand.vmem [shape: f32[64,40], index: 0, kind: input, shape index: {}]
  %s1 = inlined_call_operand.vmem [shape: s32[8,1], index: 1, kind: input, shape index: {}]
  %s2 = inlined_call_operand.vmem [shape: f32[40,128], index: 2, kind: input, shape index: {}]
  %s3 = inlined_call_operand.vmem [shape: f32[32,128], index: 3, kind: input, shape index: {}]
  %s4 = inlined_call_operand.vmem [shape: f32[1,128], index: 4, kind: input, shape index: {}]
  %s5 = inlined_call_operand.vmem [shape: f32[32,128], index: 5, kind: input, shape index: {}]
  %s6 = inlined_call_operand.hbm [shape: f32[32,128], index: 6, kind: input, shape index: {}]
  %s7 = inlined_call_operand.vmem [shape: f32[1,128], index: 7, kind: input, shape index: {}]
  %s8 = inlined_call_operand.hbm [shape: f32[32,128], index: 8, kind: input, shape index: {}]
  %s9 = inlined_call_operand.hbm [shape: f32[32,128], index: 9, kind: input, shape index: {}]
  %s10 = inlined_call_operand.vmem [shape: f32[1,128], index: 10, kind: input, shape index: {}]
  %s11 = inlined_call_operand.hbm [shape: f32[32,128], index: 11, kind: input, shape index: {}]
  %s12 = inlined_call_operand.hbm [shape: f32[1,128], index: 12, kind: input, shape index: {}]
  %s13 = inlined_call_operand.vmem [shape: f32[64,128], index: 13, kind: output, shape index: {}]
  %s14 = sld [smem:[#allocation0]]
  $region82: #{wsj_forward.1} parent=0
    _
  %s16 = ssub.s32 1, %s14
  %s17 = scalar_select 0, %s16, %s14
  $region1: #{wsj_forward.1} parent=0
    #allocation4 [shape = 'u8[16384]{0}', space=vmem, size = 0x4000, scoped, tag = 'input window, operand 6, single buffered']
    #allocation5 [shape = 's32[1]{0}', space=sflag, size = 0x4, scoped, tag = 'scoped memory for wsj_forward.1']
    #allocation6 [shape = 'u8[16384]{0}', space=vmem, size = 0x4000, scoped, tag = 'input window, operand 8, single buffered']
    #allocation7 [shape = 's32[1]{0}', space=sflag, size = 0x4, scoped, tag = 'scoped memory for wsj_forward.1']
    #allocation8 [shape = 'u8[16384]{0}', space=vmem, size = 0x4000, scoped, tag = 'input window, operand 9, single buffered']
    #allocation9 [shape = 'u8[16384]{0}', space=vmem, size = 0x4000, scoped, tag = 'input window, operand 11, single buffered']
    #allocation10 [shape = 's32[1]{0}', space=sflag, size = 0x4, scoped, tag = 'scoped memory for wsj_forward.1']
    #allocation11 [shape = 'u8[512]{0}', space=vmem, size = 0x400, scoped, tag = 'input window, operand 12, single buffered']
    %18 = vsyncpa [#allocation5], 0
    %19 = vsyncpa [#allocation7], 0
    %20 = vsyncpa [#allocation10], 0
    // Predicated region
    $region2: #{wsj_forward.1} parent=1 // pred_check
      _
    $region3: #{wsj_forward.1} parent=1 // pred_check_branch
      %22 = sbr.rel (0) target = $region5
    $region4: #{wsj_forward.1} parent=1 // pred_region
      _
    $region5: #{wsj_forward.1} parent=1 // pred_fallthru
      _
    // Predicated region
    $region6: #{wsj_forward.1} parent=1 // pred_check
      _
    $region7: #{wsj_forward.1} parent=1 // pred_check_branch
      %24 = sbr.rel (0) target = $region9
    $region8: #{wsj_forward.1} parent=1 // pred_region
      _
    $region9: #{wsj_forward.1} parent=1 // pred_fallthru
      _
    // Predicated region
    $region10: #{wsj_forward.1} parent=1 // pred_check
      _
    $region11: #{wsj_forward.1} parent=1 // pred_check_branch
      %26 = sbr.rel (0) target = $region13
    $region12: #{wsj_forward.1} parent=1 // pred_region
      _
    $region13: #{wsj_forward.1} parent=1 // pred_fallthru
      _
    // Predicated region
    $region14: #{wsj_forward.1} parent=1 // pred_check
      _
    $region15: #{wsj_forward.1} parent=1 // pred_check_branch
      %28 = sbr.rel (0) target = $region17
    $region16: #{wsj_forward.1} parent=1 // pred_region
      _
    $region17: #{wsj_forward.1} parent=1 // pred_fallthru
      _
    // Predicated region
    $region18: #{wsj_forward.1} parent=1 // pred_check
      _
    $region19: #{wsj_forward.1} parent=1 // pred_check_branch
      %30 = sbr.rel (0) target = $region21
    $region20: #{wsj_forward.1} parent=1 // pred_region
      _
    $region21: #{wsj_forward.1} parent=1 // pred_fallthru
      _
    // Predicated region
    $region22: #{wsj_forward.1} parent=1 // pred_check
      _
    $region23: #{wsj_forward.1} parent=1 // pred_check_branch
      %32 = sbr.rel (0) target = $region25
    $region24: #{wsj_forward.1} parent=1 // pred_region
      _
    $region25: #{wsj_forward.1} parent=1 // pred_fallthru
      _
    // Predicated region
    $region26: #{wsj_forward.1} parent=1 // pred_check
      _
    $region27: #{wsj_forward.1} parent=1 // pred_check_branch
      %34 = sbr.rel (0) target = $region29
    $region28: #{wsj_forward.1} parent=1 // pred_region
      %s36 = ssub.s32 512, 512
      %37 = vsyncadd [#allocation5], %s36
      %s38 = sshll.u32 [#allocation4], 4
      %s39 = int_to_ptr.vmem [resolvable:$true] %s38
      %44 = dma.hbm_to_vmem [thread:$0]  %s6, 512, %s39, [#allocation5], 128, 128, 8
    $region29: #{wsj_forward.1} parent=1 // pred_fallthru
      _
    // Predicated region
    $region30: #{wsj_forward.1} parent=1 // pred_check
      _
    $region31: #{wsj_forward.1} parent=1 // pred_check_branch
      %46 = sbr.rel (0) target = $region33
    $region32: #{wsj_forward.1} parent=1 // pred_region
      _
    $region33: #{wsj_forward.1} parent=1 // pred_fallthru
      _
    // Predicated region
    $region34: #{wsj_forward.1} parent=1 // pred_check
      _
    $region35: #{wsj_forward.1} parent=1 // pred_check_branch
      %48 = sbr.rel (0) target = $region37
    $region36: #{wsj_forward.1} parent=1 // pred_region
      %s50 = ssub.s32 512, 512
      %51 = vsyncadd [#allocation7], %s50
      %s52 = sshll.u32 [#allocation6], 4
      %s53 = int_to_ptr.vmem [resolvable:$true] %s52
      %58 = dma.hbm_to_vmem [thread:$0]  %s8, 512, %s53, [#allocation7], 128, 128, 8
    $region37: #{wsj_forward.1} parent=1 // pred_fallthru
      _
    // Predicated region
    $region38: #{wsj_forward.1} parent=1 // pred_check
      _
    $region39: #{wsj_forward.1} parent=1 // pred_check_branch
      %60 = sbr.rel (0) target = $region41
    $region40: #{wsj_forward.1} parent=1 // pred_region
      %s62 = ssub.s32 512, 512
      %63 = vsyncadd [#allocation7], %s62
      %s64 = sshll.u32 [#allocation8], 4
      %s65 = int_to_ptr.vmem [resolvable:$true] %s64
      %70 = dma.hbm_to_vmem [thread:$0]  %s9, 512, %s65, [#allocation7], 128, 128, 8
    $region41: #{wsj_forward.1} parent=1 // pred_fallthru
      _
    // Predicated region
    $region42: #{wsj_forward.1} parent=1 // pred_check
      _
    $region43: #{wsj_forward.1} parent=1 // pred_check_branch
      %72 = sbr.rel (0) target = $region45
    $region44: #{wsj_forward.1} parent=1 // pred_region
      _
    $region45: #{wsj_forward.1} parent=1 // pred_fallthru
      _
    // Predicated region
    $region46: #{wsj_forward.1} parent=1 // pred_check
      _
    $region47: #{wsj_forward.1} parent=1 // pred_check_branch
      %74 = sbr.rel (0) target = $region49
    $region48: #{wsj_forward.1} parent=1 // pred_region
      %s76 = ssub.s32 512, 512
      %77 = vsyncadd [#allocation10], %s76
      %s78 = sshll.u32 [#allocation9], 4
      %s79 = int_to_ptr.vmem [resolvable:$true] %s78
      %84 = dma.hbm_to_vmem [thread:$0]  %s11, 512, %s79, [#allocation10], 128, 128, 8
    $region49: #{wsj_forward.1} parent=1 // pred_fallthru
      _
    // Predicated region
    $region50: #{wsj_forward.1} parent=1 // pred_check
      _
    $region51: #{wsj_forward.1} parent=1 // pred_check_branch
      %86 = sbr.rel (0) target = $region53
    $region52: #{wsj_forward.1} parent=1 // pred_region
      %s88 = ssub.s32 16, 16
      %89 = vsyncadd [#allocation10], %s88
      %s91 = sshll.u32 [#allocation11], 4
      %s92 = int_to_ptr.vmem [resolvable:$true] %s91
      %94 = dma.hbm_to_vmem [thread:$0]  %s12, 16, %s92, [#allocation10]
    $region53: #{wsj_forward.1} parent=1 // pred_fallthru
      _
    // Predicated region
    $region54: #{wsj_forward.1} parent=1 // pred_check
      _
    $region55: #{wsj_forward.1} parent=1 // pred_check_branch
      %96 = sbr.rel (0) target = $region57
    $region56: #{wsj_forward.1} parent=1 // pred_region
      %97 = dma.done [#allocation5], 512
    $region57: #{wsj_forward.1} parent=1 // pred_fallthru
      _
    // Predicated region
    $region58: #{wsj_forward.1} parent=1 // pred_check
      _
    $region59: #{wsj_forward.1} parent=1 // pred_check_branch
      %99 = sbr.rel (0) target = $region61
    $region60: #{wsj_forward.1} parent=1 // pred_region
      %100 = dma.done [#allocation7], 512
    $region61: #{wsj_forward.1} parent=1 // pred_fallthru
      _
    // Predicated region
    $region62: #{wsj_forward.1} parent=1 // pred_check
      _
    $region63: #{wsj_forward.1} parent=1 // pred_check_branch
      %102 = sbr.rel (0) target = $region65
    $region64: #{wsj_forward.1} parent=1 // pred_region
      %103 = dma.done [#allocation7], 512
    $region65: #{wsj_forward.1} parent=1 // pred_fallthru
      _
    // Predicated region
    $region66: #{wsj_forward.1} parent=1 // pred_check
      _
    $region67: #{wsj_forward.1} parent=1 // pred_check_branch
      %105 = sbr.rel (0) target = $region69
    $region68: #{wsj_forward.1} parent=1 // pred_region
      %106 = dma.done [#allocation10], 512
    $region69: #{wsj_forward.1} parent=1 // pred_fallthru
      _
    // Predicated region
    $region70: #{wsj_forward.1} parent=1 // pred_check
      _
    $region71: #{wsj_forward.1} parent=1 // pred_check_branch
      %108 = sbr.rel (0) target = $region73
    $region72: #{wsj_forward.1} parent=1 // pred_region
      %109 = dma.done [#allocation10], 16
    $region73: #{wsj_forward.1} parent=1 // pred_fallthru
      _
    %v110 = vld [vmem:[%s1] sm:$0xff]
    %v111 = vld [vmem:[%s0] sm:$0xff]
    %v112 = vld [vmem:[%s0 + $0x8] sm:$0xff]
    %v113 = vld [vmem:[%s0 + $0x10] sm:$0xff]
    %v114 = vld [vmem:[%s0 + $0x18] sm:$0xff]
    %v115 = vld [vmem:[%s0 + $0x20] sm:$0xff]
    %v116 = vld [vmem:[%s0 + $0x28] sm:$0xff]
    %v117 = vld [vmem:[%s0 + $0x30] sm:$0xff]
    %v118 = vld [vmem:[%s0 + $0x38] sm:$0xff]
    %v119 = vld [vmem:[%s2] sm:$0xff]
    %v120 = vld [vmem:[%s2 + $0x8] sm:$0xff]
    %v121 = vld [vmem:[%s2 + $0x10] sm:$0xff]
    %v122 = vld [vmem:[%s2 + $0x18] sm:$0xff]
    %v123 = vld [vmem:[%s2 + $0x20] sm:$0xff]
    %v124 = vld [vmem:[%s4] sm:$0x1]
    %v126 = vlaneseq
    %v127 = vshrl.u32 %v126, 7
    %v128 = vsub.s32 0, %v127
    %v129 = vrot.slane %v124, %v128
    %vm131 = vcmask 326656
    %v133 = vsel %vm131, %v111, 0
    %v136 = vsel %vm131, %v112, 0
    %v139 = vsel %vm131, %v113, 0
    %v142 = vsel %vm131, %v114, 0
    %v145 = vsel %vm131, %v115, 0
    %v148 = vsel %vm131, %v116, 0
    %v151 = vsel %vm131, %v117, 0
    %v154 = vsel %vm131, %v118, 0
    %156 = vmatprep.subr.mxu0 0.0
    %157 = vmatpush1.msra.mxu0 %v119
    %158 = vmatprep.subr.mxu0 0.0
    %159 = vmatpush1.msra.mxu0 %v120
    %160 = vmatprep.subr.mxu0 0.0
    %161 = vmatpush1.msra.mxu0 %v121
    %162 = vmatprep.subr.mxu0 0.0
    %163 = vmatpush1.msra.mxu0 %v122
    %164 = vmatprep.subr.mxu0 0.0
    %165 = vmatpush1.msra.mxu0 %v123
    %166 = vmatprep.subr.mxu0 0.0
    %167 = vmatpush1.msra.mxu0 0.0
    %168 = vmatprep.subr.mxu0 0.0
    %169 = vmatpush1.msra.mxu0 0.0
    %170 = vmatprep.subr.mxu0 0.0
    %171 = vmatpush1.msra.mxu0 0.0
    %172 = vmatprep.subr.mxu0 0.0
    %173 = vmatpush1.msra.mxu0 0.0
    %174 = vmatprep.subr.mxu0 0.0
    %175 = vmatpush1.msra.mxu0 0.0
    %176 = vmatprep.subr.mxu0 0.0
    %177 = vmatpush1.msra.mxu0 0.0
    %178 = vmatprep.subr.mxu0 0.0
    %179 = vmatpush1.msra.mxu0 0.0
    %180 = vmatprep.subr.mxu0 0.0
    %181 = vmatpush1.msra.mxu0 0.0
    %182 = vmatprep.subr.mxu0 0.0
    %183 = vmatpush1.msra.mxu0 0.0
    %184 = vmatprep.subr.mxu0 0.0
    %185 = vmatpush1.msra.mxu0 0.0
    %186 = vmatprep.subr.mxu0 0.0
    %187 = vmatpush1.msra.mxu0 0.0
    %188 = vmatprep.subr.mxu0 0.0
    %189 = vmatpush1.msra.mxu0 0.0
    %190 = vmatprep.subr.mxu0 0.0
    %191 = vmatpush1.msra.mxu0 0.0
    %192 = vmatprep.subr.mxu0 0.0
    %193 = vmatpush1.msra.mxu0 0.0
    %194 = vmatprep.subr.mxu0 0.0
    %195 = vmatpush1.msra.mxu0 0.0
    %196 = vmatprep.subr.mxu0 0.0
    %197 = vmatpush1.msra.mxu0 0.0
    %198 = vmatprep.subr.mxu0 0.0
    %199 = vmatpush1.msra.mxu0 0.0
    %200 = vmatprep.subr.mxu0 0.0
    %201 = vmatpush1.msra.mxu0 0.0
    %202 = vmatprep.subr.mxu0 0.0
    %203 = vmatpush1.msra.mxu0 0.0
    %204 = vmatprep.subr.mxu0 0.0
    %205 = vmatpush1.msra.mxu0 0.0
    %206 = vmatprep.subr.mxu0 0.0
    %207 = vmatpush1.msra.mxu0 0.0
    %208 = vmatprep.subr.mxu0 0.0
    %209 = vmatpush1.msra.mxu0 0.0
    %210 = vmatprep.subr.mxu0 0.0
    %211 = vmatpush1.msra.mxu0 0.0
    %212 = vmatprep.subr.mxu0 0.0
    %213 = vmatpush1.msra.mxu0 0.0
    %214 = vmatprep.subr.mxu0 0.0
    %215 = vmatpush1.msra.mxu0 0.0
    %216 = vmatprep.subr.mxu0 0.0
    %217 = vmatpush1.msra.mxu0 0.0
    %218 = vmatprep.subr.mxu0 0.0
    %219 = vmatpush1.msra.mxu0 0.0
    %220 = vmatprep.mubr.f32.mxu0 0.0
    %221 = vmatmul.mubr.f32.gmra.mrb[0].mxu0 %v133
    %v222 = vpop.f32.mrb[0].mxu0
    %v223 = vadd.f32 %v129, %v222
    %v224 = vpop.f32.mrb[0].mxu0
    %225 = vmatprep.mubr.f32.mxu0 0.0
    %226 = vmatmul.mubr.f32.gmra.mrb[0].mxu0 %v136
    %v227 = vpop.f32.mrb[0].mxu0
    %v228 = vadd.f32 %v129, %v227
    %v229 = vpop.f32.mrb[0].mxu0
    %230 = vmatprep.mubr.f32.mxu0 0.0
    %231 = vmatmul.mubr.f32.gmra.mrb[0].mxu0 %v139
    %v232 = vpop.f32.mrb[0].mxu0
    %v233 = vadd.f32 %v129, %v232
    %v234 = vpop.f32.mrb[0].mxu0
    %235 = vmatprep.mubr.f32.mxu0 0.0
    %236 = vmatmul.mubr.f32.gmra.mrb[0].mxu0 %v142
    %v237 = vpop.f32.mrb[0].mxu0
    %v238 = vadd.f32 %v129, %v237
    %v239 = vpop.f32.mrb[0].mxu0
    %240 = vmatprep.mubr.f32.mxu0 0.0
    %241 = vmatmul.mubr.f32.gmra.mrb[0].mxu0 %v145
    %v242 = vpop.f32.mrb[0].mxu0
    %v243 = vadd.f32 %v129, %v242
    %v244 = vpop.f32.mrb[0].mxu0
    %245 = vmatprep.mubr.f32.mxu0 0.0
    %246 = vmatmul.mubr.f32.gmra.mrb[0].mxu0 %v148
    %v247 = vpop.f32.mrb[0].mxu0
    %v248 = vadd.f32 %v129, %v247
    %v249 = vpop.f32.mrb[0].mxu0
    %250 = vmatprep.mubr.f32.mxu0 0.0
    %251 = vmatmul.mubr.f32.gmra.mrb[0].mxu0 %v151
    %v252 = vpop.f32.mrb[0].mxu0
    %v253 = vadd.f32 %v129, %v252
    %v254 = vpop.f32.mrb[0].mxu0
    %255 = vmatprep.mubr.f32.mxu0 0.0
    %256 = vmatmul.mubr.f32.gmra.mrb[0].mxu0 %v154
    %v257 = vpop.f32.mrb[0].mxu0
    %v258 = vadd.f32 %v129, %v257
    %v259 = vpop.f32.mrb[0].mxu0
    %260 = vdwg.mxu0
    %261 = vst [vmem:[#allocation2] sm:$0xff] %v223
    %262 = vst [vmem:[#allocation2 + $0x8] sm:$0xff] %v228
    %263 = vst [vmem:[#allocation2 + $0x10] sm:$0xff] %v233
    %264 = vst [vmem:[#allocation2 + $0x18] sm:$0xff] %v238
    %265 = vst [vmem:[#allocation2 + $0x20] sm:$0xff] %v243
    %266 = vst [vmem:[#allocation2 + $0x28] sm:$0xff] %v248
    %267 = vst [vmem:[#allocation2 + $0x30] sm:$0xff] %v253
    %268 = vst [vmem:[#allocation2 + $0x38] sm:$0xff] %v258
    %v269 = vld [vmem:[%s3] sm:$0xff]
    %v270 = vld [vmem:[%s3 + $0x8] sm:$0xff]
    %v271 = vld [vmem:[%s3 + $0x10] sm:$0xff]
    %v272 = vld [vmem:[%s3 + $0x18] sm:$0xff]
    %v273 = vld [vmem:[#allocation2] sm:$0xff]
    %vm274 = vcmask 261120
    %v276 = vsel %vm274, 0.0, 0
    %278 = vmatprep.subr.mxu0 0.0
    %279 = vmatpush1.msra.mxu0 %v269
    %280 = vmatprep.subr.mxu0 0.0
    %281 = vmatpush1.msra.mxu0 %v270
    %282 = vmatprep.subr.mxu0 0.0
    %283 = vmatpush1.msra.mxu0 %v271
    %284 = vmatprep.subr.mxu0 0.0
    %285 = vmatpush1.msra.mxu0 %v272
    %286 = vmatprep.subr.mxu0 0.0
    %287 = vmatpush1.msra.mxu0 0.0
    %288 = vmatprep.subr.mxu0 0.0
    %289 = vmatpush1.msra.mxu0 0.0
    %290 = vmatprep.subr.mxu0 0.0
    %291 = vmatpush1.msra.mxu0 0.0
    %292 = vmatprep.subr.mxu0 0.0
    %293 = vmatpush1.msra.mxu0 0.0
    %294 = vmatprep.subr.mxu0 0.0
    %295 = vmatpush1.msra.mxu0 0.0
    %296 = vmatprep.subr.mxu0 0.0
    %297 = vmatpush1.msra.mxu0 0.0
    %298 = vmatprep.subr.mxu0 0.0
    %299 = vmatpush1.msra.mxu0 0.0
    %300 = vmatprep.subr.mxu0 0.0
    %301 = vmatpush1.msra.mxu0 0.0
    %302 = vmatprep.subr.mxu0 0.0
    %303 = vmatpush1.msra.mxu0 0.0
    %304 = vmatprep.subr.mxu0 0.0
    %305 = vmatpush1.msra.mxu0 0.0
    %306 = vmatprep.subr.mxu0 0.0
    %307 = vmatpush1.msra.mxu0 0.0
    %308 = vmatprep.subr.mxu0 0.0
    %309 = vmatpush1.msra.mxu0 0.0
    %310 = vmatprep.subr.mxu0 0.0
    %311 = vmatpush1.msra.mxu0 0.0
    %312 = vmatprep.subr.mxu0 0.0
    %313 = vmatpush1.msra.mxu0 0.0
    %314 = vmatprep.subr.mxu0 0.0
    %315 = vmatpush1.msra.mxu0 0.0
    %316 = vmatprep.subr.mxu0 0.0
    %317 = vmatpush1.msra.mxu0 0.0
    %318 = vmatprep.subr.mxu0 0.0
    %319 = vmatpush1.msra.mxu0 0.0
    %320 = vmatprep.subr.mxu0 0.0
    %321 = vmatpush1.msra.mxu0 0.0
    %322 = vmatprep.subr.mxu0 0.0
    %323 = vmatpush1.msra.mxu0 0.0
    %324 = vmatprep.subr.mxu0 0.0
    %325 = vmatpush1.msra.mxu0 0.0
    %326 = vmatprep.subr.mxu0 0.0
    %327 = vmatpush1.msra.mxu0 0.0
    %328 = vmatprep.subr.mxu0 0.0
    %329 = vmatpush1.msra.mxu0 0.0
    %330 = vmatprep.subr.mxu0 0.0
    %331 = vmatpush1.msra.mxu0 0.0
    %332 = vmatprep.subr.mxu0 0.0
    %333 = vmatpush1.msra.mxu0 0.0
    %334 = vmatprep.subr.mxu0 0.0
    %335 = vmatpush1.msra.mxu0 0.0
    %336 = vmatprep.subr.mxu0 0.0
    %337 = vmatpush1.msra.mxu0 0.0
    %338 = vmatprep.subr.mxu0 0.0
    %339 = vmatpush1.msra.mxu0 0.0
    %340 = vmatprep.subr.mxu0 0.0
    %341 = vmatpush1.msra.mxu0 0.0
    %342 = vmatprep.mubr.f32.mxu0 0.0
    %343 = vmatmul.mubr.f32.gmra.mrb[0].mxu0 %v276
    %v344 = vpop.f32.mrb[0].mxu0
    %v345 = vadd.f32 0.0, %v344
    %v346 = vpop.f32.mrb[0].mxu0
    %347 = vdwg.mxu0
    %v348 = vadd.f32 %v273, %v345
    %v349 = vxor.u32 %v348, 2147483648
    %v350 = vmul.f32 %v349, 1.442695
    %v351 = vpow.pop %v350
    %v352 = vadd.f32 %v351, 1.0
    %v353 = vrcp.pop %v352
    %v354 = vmul.f32 1.0, %v353
    %v355 = vtanh.pop %v348
    %v356 = vmul.f32 %v354, 0.0
    %358 = vrot.lane.b32.xlu0 %v355, 32
    %v359 = vpop.permute.xlu0 %358
    %v361 = vmul.f32 %v354, %v359
    %363 = vrot.lane.b32.xlu0 %v361, 32
    %v364 = vpop.permute.xlu0 %363
    %v366 = vadd.f32 %v356, %v364
    %v367 = vtanh.pop %v366
    %369 = vrot.lane.b32.xlu0 %v367, 32
    %v370 = vpop.permute.xlu0 %369
    %v372 = vmul.f32 %v354, %v370
    %374 = vrot.lane.b32.xlu0 %v372, 64
    %v375 = vpop.permute.xlu0 %374
    %377 = vst.msk [vmem:[#allocation3] sm:$0xff] %vm274, %v375
    %s378 = scalar_lea.vmem [#allocation2], 8
    %v379 = vld [vmem:[%s378] sm:$0xff]
    %v380 = vsel %vm274, %v375, 0
    %382 = vmatprep.subr.mxu0 0.0
    %383 = vmatpush1.msra.mxu0 %v269
    %384 = vmatprep.subr.mxu0 0.0
    %385 = vmatpush1.msra.mxu0 %v270
    %386 = vmatprep.subr.mxu0 0.0
    %387 = vmatpush1.msra.mxu0 %v271
    %388 = vmatprep.subr.mxu0 0.0
    %389 = vmatpush1.msra.mxu0 %v272
    %390 = vmatprep.subr.mxu0 0.0
    %391 = vmatpush1.msra.mxu0 0.0
    %392 = vmatprep.subr.mxu0 0.0
    %393 = vmatpush1.msra.mxu0 0.0
    %394 = vmatprep.subr.mxu0 0.0
    %395 = vmatpush1.msra.mxu0 0.0
    %396 = vmatprep.subr.mxu0 0.0
    %397 = vmatpush1.msra.mxu0 0.0
    %398 = vmatprep.subr.mxu0 0.0
    %399 = vmatpush1.msra.mxu0 0.0
    %400 = vmatprep.subr.mxu0 0.0
    %401 = vmatpush1.msra.mxu0 0.0
    %402 = vmatprep.subr.mxu0 0.0
    %403 = vmatpush1.msra.mxu0 0.0
    %404 = vmatprep.subr.mxu0 0.0
    %405 = vmatpush1.msra.mxu0 0.0
    %406 = vmatprep.subr.mxu0 0.0
    %407 = vmatpush1.msra.mxu0 0.0
    %408 = vmatprep.subr.mxu0 0.0
    %409 = vmatpush1.msra.mxu0 0.0
    %410 = vmatprep.subr.mxu0 0.0
    %411 = vmatpush1.msra.mxu0 0.0
    %412 = vmatprep.subr.mxu0 0.0
    %413 = vmatpush1.msra.mxu0 0.0
    %414 = vmatprep.subr.mxu0 0.0
    %415 = vmatpush1.msra.mxu0 0.0
    %416 = vmatprep.subr.mxu0 0.0
    %417 = vmatpush1.msra.mxu0 0.0
    %418 = vmatprep.subr.mxu0 0.0
    %419 = vmatpush1.msra.mxu0 0.0
    %420 = vmatprep.subr.mxu0 0.0
    %421 = vmatpush1.msra.mxu0 0.0
    %422 = vmatprep.subr.mxu0 0.0
    %423 = vmatpush1.msra.mxu0 0.0
    %424 = vmatprep.subr.mxu0 0.0
    %425 = vmatpush1.msra.mxu0 0.0
    %426 = vmatprep.subr.mxu0 0.0
    %427 = vmatpush1.msra.mxu0 0.0
    %428 = vmatprep.subr.mxu0 0.0
    %429 = vmatpush1.msra.mxu0 0.0
    %430 = vmatprep.subr.mxu0 0.0
    %431 = vmatpush1.msra.mxu0 0.0
    %432 = vmatprep.subr.mxu0 0.0
    %433 = vmatpush1.msra.mxu0 0.0
    %434 = vmatprep.subr.mxu0 0.0
    %435 = vmatpush1.msra.mxu0 0.0
    %436 = vmatprep.subr.mxu0 0.0
    %437 = vmatpush1.msra.mxu0 0.0
    %438 = vmatprep.subr.mxu0 0.0
    %439 = vmatpush1.msra.mxu0 0.0
    %440 = vmatprep.subr.mxu0 0.0
    %441 = vmatpush1.msra.mxu0 0.0
    %442 = vmatprep.subr.mxu0 0.0
    %443 = vmatpush1.msra.mxu0 0.0
    %444 = vmatprep.subr.mxu0 0.0
    %445 = vmatpush1.msra.mxu0 0.0
    %446 = vmatprep.mubr.f32.mxu0 0.0
    %447 = vmatmul.mubr.f32.gmra.mrb[0].mxu0 %v380
    %v448 = vpop.f32.mrb[0].mxu0
    %v449 = vadd.f32 0.0, %v448
    %v450 = vpop.f32.mrb[0].mxu0
    %451 = vdwg.mxu0
    %v452 = vadd.f32 %v379, %v449
    %v453 = vxor.u32 %v452, 2147483648
    %v454 = vmul.f32 %v453, 1.442695
    %v455 = vpow.pop %v454
    %v456 = vadd.f32 %v455, 1.0
    %v457 = vrcp.pop %v456
    %v458 = vmul.f32 1.0, %v457
    %v459 = vtanh.pop %v452
    %v460 = vmul.f32 %v458, %v366
    %462 = vrot.lane.b32.xlu0 %v459, 32
    %v463 = vpop.permute.xlu0 %462
    %v465 = vmul.f32 %v458, %v463
    %467 = vrot.lane.b32.xlu0 %v465, 32
    %v468 = vpop.permute.xlu0 %467
    %v470 = vadd.f32 %v460, %v468
    %v471 = vtanh.pop %v470
    %473 = vrot.lane.b32.xlu0 %v471, 32
    %v474 = vpop.permute.xlu0 %473
    %v476 = vmul.f32 %v458, %v474
    %478 = vrot.lane.b32.xlu0 %v476, 64
    %v479 = vpop.permute.xlu0 %478
    %s481 = scalar_lea.vmem [#allocation3], 8
    %482 = vst.msk [vmem:[%s481] sm:$0xff] %vm274, %v479
    %s483 = scalar_lea.vmem [#allocation2], 16
    %v484 = vld [vmem:[%s483] sm:$0xff]
    %v485 = vsel %vm274, %v479, 0
    %487 = vmatprep.subr.mxu0 0.0
    %488 = vmatpush1.msra.mxu0 %v269
    %489 = vmatprep.subr.mxu0 0.0
    %490 = vmatpush1.msra.mxu0 %v270
    %491 = vmatprep.subr.mxu0 0.0
    %492 = vmatpush1.msra.mxu0 %v271
    %493 = vmatprep.subr.mxu0 0.0
    %494 = vmatpush1.msra.mxu0 %v272
    %495 = vmatprep.subr.mxu0 0.0
    %496 = vmatpush1.msra.mxu0 0.0
    %497 = vmatprep.subr.mxu0 0.0
    %498 = vmatpush1.msra.mxu0 0.0
    %499 = vmatprep.subr.mxu0 0.0
    %500 = vmatpush1.msra.mxu0 0.0
    %501 = vmatprep.subr.mxu0 0.0
    %502 = vmatpush1.msra.mxu0 0.0
    %503 = vmatprep.subr.mxu0 0.0
    %504 = vmatpush1.msra.mxu0 0.0
    %505 = vmatprep.subr.mxu0 0.0
    %506 = vmatpush1.msra.mxu0 0.0
    %507 = vmatprep.subr.mxu0 0.0
    %508 = vmatpush1.msra.mxu0 0.0
    %509 = vmatprep.subr.mxu0 0.0
    %510 = vmatpush1.msra.mxu0 0.0
    %511 = vmatprep.subr.mxu0 0.0
    %512 = vmatpush1.msra.mxu0 0.0
    %513 = vmatprep.subr.mxu0 0.0
    %514 = vmatpush1.msra.mxu0 0.0
    %515 = vmatprep.subr.mxu0 0.0
    %516 = vmatpush1.msra.mxu0 0.0
    %517 = vmatprep.subr.mxu0 0.0
    %518 = vmatpush1.msra.mxu0 0.0
    %519 = vmatprep.subr.mxu0 0.0
    %520 = vmatpush1.msra.mxu0 0.0
    %521 = vmatprep.subr.mxu0 0.0
    %522 = vmatpush1.msra.mxu0 0.0
    %523 = vmatprep.subr.mxu0 0.0
    %524 = vmatpush1.msra.mxu0 0.0
    %525 = vmatprep.subr.mxu0 0.0
    %526 = vmatpush1.msra.mxu0 0.0
    %527 = vmatprep.subr.mxu0 0.0
    %528 = vmatpush1.msra.mxu0 0.0
    %529 = vmatprep.subr.mxu0 0.0
    %530 = vmatpush1.msra.mxu0 0.0
    %531 = vmatprep.subr.mxu0 0.0
    %532 = vmatpush1.msra.mxu0 0.0
    %533 = vmatprep.subr.mxu0 0.0
    %534 = vmatpush1.msra.mxu0 0.0
    %535 = vmatprep.subr.mxu0 0.0
    %536 = vmatpush1.msra.mxu0 0.0
    %537 = vmatprep.subr.mxu0 0.0
    %538 = vmatpush1.msra.mxu0 0.0
    %539 = vmatprep.subr.mxu0 0.0
    %540 = vmatpush1.msra.mxu0 0.0
    %541 = vmatprep.subr.mxu0 0.0
    %542 = vmatpush1.msra.mxu0 0.0
    %543 = vmatprep.subr.mxu0 0.0
    %544 = vmatpush1.msra.mxu0 0.0
    %545 = vmatprep.subr.mxu0 0.0
    %546 = vmatpush1.msra.mxu0 0.0
    %547 = vmatprep.subr.mxu0 0.0
    %548 = vmatpush1.msra.mxu0 0.0
    %549 = vmatprep.subr.mxu0 0.0
    %550 = vmatpush1.msra.mxu0 0.0
    %551 = vmatprep.mubr.f32.mxu0 0.0
    %552 = vmatmul.mubr.f32.gmra.mrb[0].mxu0 %v485
    %v553 = vpop.f32.mrb[0].mxu0
    %v554 = vadd.f32 0.0, %v553
    %v555 = vpop.f32.mrb[0].mxu0
    %556 = vdwg.mxu0
    %v557 = vadd.f32 %v484, %v554
    %v558 = vxor.u32 %v557, 2147483648
    %v559 = vmul.f32 %v558, 1.442695
    %v560 = vpow.pop %v559
    %v561 = vadd.f32 %v560, 1.0
    %v562 = vrcp.pop %v561
    %v563 = vmul.f32 1.0, %v562
    %v564 = vtanh.pop %v557
    %v565 = vmul.f32 %v563, %v470
    %567 = vrot.lane.b32.xlu0 %v564, 32
    %v568 = vpop.permute.xlu0 %567
    %v570 = vmul.f32 %v563, %v568
    %572 = vrot.lane.b32.xlu0 %v570, 32
    %v573 = vpop.permute.xlu0 %572
    %v575 = vadd.f32 %v565, %v573
    %v576 = vtanh.pop %v575
    %578 = vrot.lane.b32.xlu0 %v576, 32
    %v579 = vpop.permute.xlu0 %578
    %v581 = vmul.f32 %v563, %v579
    %583 = vrot.lane.b32.xlu0 %v581, 64
    %v584 = vpop.permute.xlu0 %583
    %s586 = scalar_lea.vmem [#allocation3], 16
    %587 = vst.msk [vmem:[%s586] sm:$0xff] %vm274, %v584
    %s588 = scalar_lea.vmem [#allocation2], 24
    %v589 = vld [vmem:[%s588] sm:$0xff]
    %v590 = vsel %vm274, %v584, 0
    %592 = vmatprep.subr.mxu0 0.0
    %593 = vmatpush1.msra.mxu0 %v269
    %594 = vmatprep.subr.mxu0 0.0
    %595 = vmatpush1.msra.mxu0 %v270
    %596 = vmatprep.subr.mxu0 0.0
    %597 = vmatpush1.msra.mxu0 %v271
    %598 = vmatprep.subr.mxu0 0.0
    %599 = vmatpush1.msra.mxu0 %v272
    %600 = vmatprep.subr.mxu0 0.0
    %601 = vmatpush1.msra.mxu0 0.0
    %602 = vmatprep.subr.mxu0 0.0
    %603 = vmatpush1.msra.mxu0 0.0
    %604 = vmatprep.subr.mxu0 0.0
    %605 = vmatpush1.msra.mxu0 0.0
    %606 = vmatprep.subr.mxu0 0.0
    %607 = vmatpush1.msra.mxu0 0.0
    %608 = vmatprep.subr.mxu0 0.0
    %609 = vmatpush1.msra.mxu0 0.0
    %610 = vmatprep.subr.mxu0 0.0
    %611 = vmatpush1.msra.mxu0 0.0
    %612 = vmatprep.subr.mxu0 0.0
    %613 = vmatpush1.msra.mxu0 0.0
    %614 = vmatprep.subr.mxu0 0.0
    %615 = vmatpush1.msra.mxu0 0.0
    %616 = vmatprep.subr.mxu0 0.0
    %617 = vmatpush1.msra.mxu0 0.0
    %618 = vmatprep.subr.mxu0 0.0
    %619 = vmatpush1.msra.mxu0 0.0
    %620 = vmatprep.subr.mxu0 0.0
    %621 = vmatpush1.msra.mxu0 0.0
    %622 = vmatprep.subr.mxu0 0.0
    %623 = vmatpush1.msra.mxu0 0.0
    %624 = vmatprep.subr.mxu0 0.0
    %625 = vmatpush1.msra.mxu0 0.0
    %626 = vmatprep.subr.mxu0 0.0
    %627 = vmatpush1.msra.mxu0 0.0
    %628 = vmatprep.subr.mxu0 0.0
    %629 = vmatpush1.msra.mxu0 0.0
    %630 = vmatprep.subr.mxu0 0.0
    %631 = vmatpush1.msra.mxu0 0.0
    %632 = vmatprep.subr.mxu0 0.0
    %633 = vmatpush1.msra.mxu0 0.0
    %634 = vmatprep.subr.mxu0 0.0
    %635 = vmatpush1.msra.mxu0 0.0
    %636 = vmatprep.subr.mxu0 0.0
    %637 = vmatpush1.msra.mxu0 0.0
    %638 = vmatprep.subr.mxu0 0.0
    %639 = vmatpush1.msra.mxu0 0.0
    %640 = vmatprep.subr.mxu0 0.0
    %641 = vmatpush1.msra.mxu0 0.0
    %642 = vmatprep.subr.mxu0 0.0
    %643 = vmatpush1.msra.mxu0 0.0
    %644 = vmatprep.subr.mxu0 0.0
    %645 = vmatpush1.msra.mxu0 0.0
    %646 = vmatprep.subr.mxu0 0.0
    %647 = vmatpush1.msra.mxu0 0.0
    %648 = vmatprep.subr.mxu0 0.0
    %649 = vmatpush1.msra.mxu0 0.0
    %650 = vmatprep.subr.mxu0 0.0
    %651 = vmatpush1.msra.mxu0 0.0
    %652 = vmatprep.subr.mxu0 0.0
    %653 = vmatpush1.msra.mxu0 0.0
    %654 = vmatprep.subr.mxu0 0.0
    %655 = vmatpush1.msra.mxu0 0.0
    %656 = vmatprep.mubr.f32.mxu0 0.0
    %657 = vmatmul.mubr.f32.gmra.mrb[0].mxu0 %v590
    %v658 = vpop.f32.mrb[0].mxu0
    %v659 = vadd.f32 0.0, %v658
    %v660 = vpop.f32.mrb[0].mxu0
    %661 = vdwg.mxu0
    %v662 = vadd.f32 %v589, %v659
    %v663 = vxor.u32 %v662, 2147483648
    %v664 = vmul.f32 %v663, 1.442695
    %v665 = vpow.pop %v664
    %v666 = vadd.f32 %v665, 1.0
    %v667 = vrcp.pop %v666
    %v668 = vmul.f32 1.0, %v667
    %v669 = vtanh.pop %v662
    %v670 = vmul.f32 %v668, %v575
    %672 = vrot.lane.b32.xlu0 %v669, 32
    %v673 = vpop.permute.xlu0 %672
    %v675 = vmul.f32 %v668, %v673
    %677 = vrot.lane.b32.xlu0 %v675, 32
    %v678 = vpop.permute.xlu0 %677
    %v680 = vadd.f32 %v670, %v678
    %v681 = vtanh.pop %v680
    %683 = vrot.lane.b32.xlu0 %v681, 32
    %v684 = vpop.permute.xlu0 %683
    %v686 = vmul.f32 %v668, %v684
    %688 = vrot.lane.b32.xlu0 %v686, 64
    %v689 = vpop.permute.xlu0 %688
    %s691 = scalar_lea.vmem [#allocation3], 24
    %692 = vst.msk [vmem:[%s691] sm:$0xff] %vm274, %v689
    %s693 = scalar_lea.vmem [#allocation2], 32
    %v694 = vld [vmem:[%s693] sm:$0xff]
    %v695 = vsel %vm274, %v689, 0
    %697 = vmatprep.subr.mxu0 0.0
    %698 = vmatpush1.msra.mxu0 %v269
    %699 = vmatprep.subr.mxu0 0.0
    %700 = vmatpush1.msra.mxu0 %v270
    %701 = vmatprep.subr.mxu0 0.0
    %702 = vmatpush1.msra.mxu0 %v271
    %703 = vmatprep.subr.mxu0 0.0
    %704 = vmatpush1.msra.mxu0 %v272
    %705 = vmatprep.subr.mxu0 0.0
    %706 = vmatpush1.msra.mxu0 0.0
    %707 = vmatprep.subr.mxu0 0.0
    %708 = vmatpush1.msra.mxu0 0.0
    %709 = vmatprep.subr.mxu0 0.0
    %710 = vmatpush1.msra.mxu0 0.0
    %711 = vmatprep.subr.mxu0 0.0
    %712 = vmatpush1.msra.mxu0 0.0
    %713 = vmatprep.subr.mxu0 0.0
    %714 = vmatpush1.msra.mxu0 0.0
    %715 = vmatprep.subr.mxu0 0.0
    %716 = vmatpush1.msra.mxu0 0.0
    %717 = vmatprep.subr.mxu0 0.0
    %718 = vmatpush1.msra.mxu0 0.0
    %719 = vmatprep.subr.mxu0 0.0
    %720 = vmatpush1.msra.mxu0 0.0
    %721 = vmatprep.subr.mxu0 0.0
    %722 = vmatpush1.msra.mxu0 0.0
    %723 = vmatprep.subr.mxu0 0.0
    %724 = vmatpush1.msra.mxu0 0.0
    %725 = vmatprep.subr.mxu0 0.0
    %726 = vmatpush1.msra.mxu0 0.0
    %727 = vmatprep.subr.mxu0 0.0
    %728 = vmatpush1.msra.mxu0 0.0
    %729 = vmatprep.subr.mxu0 0.0
    %730 = vmatpush1.msra.mxu0 0.0
    %731 = vmatprep.subr.mxu0 0.0
    %732 = vmatpush1.msra.mxu0 0.0
    %733 = vmatprep.subr.mxu0 0.0
    %734 = vmatpush1.msra.mxu0 0.0
    %735 = vmatprep.subr.mxu0 0.0
    %736 = vmatpush1.msra.mxu0 0.0
    %737 = vmatprep.subr.mxu0 0.0
    %738 = vmatpush1.msra.mxu0 0.0
    %739 = vmatprep.subr.mxu0 0.0
    %740 = vmatpush1.msra.mxu0 0.0
    %741 = vmatprep.subr.mxu0 0.0
    %742 = vmatpush1.msra.mxu0 0.0
    %743 = vmatprep.subr.mxu0 0.0
    %744 = vmatpush1.msra.mxu0 0.0
    %745 = vmatprep.subr.mxu0 0.0
    %746 = vmatpush1.msra.mxu0 0.0
    %747 = vmatprep.subr.mxu0 0.0
    %748 = vmatpush1.msra.mxu0 0.0
    %749 = vmatprep.subr.mxu0 0.0
    %750 = vmatpush1.msra.mxu0 0.0
    %751 = vmatprep.subr.mxu0 0.0
    %752 = vmatpush1.msra.mxu0 0.0
    %753 = vmatprep.subr.mxu0 0.0
    %754 = vmatpush1.msra.mxu0 0.0
    %755 = vmatprep.subr.mxu0 0.0
    %756 = vmatpush1.msra.mxu0 0.0
    %757 = vmatprep.subr.mxu0 0.0
    %758 = vmatpush1.msra.mxu0 0.0
    %759 = vmatprep.subr.mxu0 0.0
    %760 = vmatpush1.msra.mxu0 0.0
    %761 = vmatprep.mubr.f32.mxu0 0.0
    %762 = vmatmul.mubr.f32.gmra.mrb[0].mxu0 %v695
    %v763 = vpop.f32.mrb[0].mxu0
    %v764 = vadd.f32 0.0, %v763
    %v765 = vpop.f32.mrb[0].mxu0
    %766 = vdwg.mxu0
    %v767 = vadd.f32 %v694, %v764
    %v768 = vxor.u32 %v767, 2147483648
    %v769 = vmul.f32 %v768, 1.442695
    %v770 = vpow.pop %v769
    %v771 = vadd.f32 %v770, 1.0
    %v772 = vrcp.pop %v771
    %v773 = vmul.f32 1.0, %v772
    %v774 = vtanh.pop %v767
    %v775 = vmul.f32 %v773, %v680
    %777 = vrot.lane.b32.xlu0 %v774, 32
    %v778 = vpop.permute.xlu0 %777
    %v780 = vmul.f32 %v773, %v778
    %782 = vrot.lane.b32.xlu0 %v780, 32
    %v783 = vpop.permute.xlu0 %782
    %v785 = vadd.f32 %v775, %v783
    %v786 = vtanh.pop %v785
    %788 = vrot.lane.b32.xlu0 %v786, 32
    %v789 = vpop.permute.xlu0 %788
    %v791 = vmul.f32 %v773, %v789
    %793 = vrot.lane.b32.xlu0 %v791, 64
    %v794 = vpop.permute.xlu0 %793
    %s796 = scalar_lea.vmem [#allocation3], 32
    %797 = vst.msk [vmem:[%s796] sm:$0xff] %vm274, %v794
    %s798 = scalar_lea.vmem [#allocation2], 40
    %v799 = vld [vmem:[%s798] sm:$0xff]
    %v800 = vsel %vm274, %v794, 0
    %802 = vmatprep.subr.mxu0 0.0
    %803 = vmatpush1.msra.mxu0 %v269
    %804 = vmatprep.subr.mxu0 0.0
    %805 = vmatpush1.msra.mxu0 %v270
    %806 = vmatprep.subr.mxu0 0.0
    %807 = vmatpush1.msra.mxu0 %v271
    %808 = vmatprep.subr.mxu0 0.0
    %809 = vmatpush1.msra.mxu0 %v272
    %810 = vmatprep.subr.mxu0 0.0
    %811 = vmatpush1.msra.mxu0 0.0
    %812 = vmatprep.subr.mxu0 0.0
    %813 = vmatpush1.msra.mxu0 0.0
    %814 = vmatprep.subr.mxu0 0.0
    %815 = vmatpush1.msra.mxu0 0.0
    %816 = vmatprep.subr.mxu0 0.0
    %817 = vmatpush1.msra.mxu0 0.0
    %818 = vmatprep.subr.mxu0 0.0
    %819 = vmatpush1.msra.mxu0 0.0
    %820 = vmatprep.subr.mxu0 0.0
    %821 = vmatpush1.msra.mxu0 0.0
    %822 = vmatprep.subr.mxu0 0.0
    %823 = vmatpush1.msra.mxu0 0.0
    %824 = vmatprep.subr.mxu0 0.0
    %825 = vmatpush1.msra.mxu0 0.0
    %826 = vmatprep.subr.mxu0 0.0
    %827 = vmatpush1.msra.mxu0 0.0
    %828 = vmatprep.subr.mxu0 0.0
    %829 = vmatpush1.msra.mxu0 0.0
    %830 = vmatprep.subr.mxu0 0.0
    %831 = vmatpush1.msra.mxu0 0.0
    %832 = vmatprep.subr.mxu0 0.0
    %833 = vmatpush1.msra.mxu0 0.0
    %834 = vmatprep.subr.mxu0 0.0
    %835 = vmatpush1.msra.mxu0 0.0
    %836 = vmatprep.subr.mxu0 0.0
    %837 = vmatpush1.msra.mxu0 0.0
    %838 = vmatprep.subr.mxu0 0.0
    %839 = vmatpush1.msra.mxu0 0.0
    %840 = vmatprep.subr.mxu0 0.0
    %841 = vmatpush1.msra.mxu0 0.0
    %842 = vmatprep.subr.mxu0 0.0
    %843 = vmatpush1.msra.mxu0 0.0
    %844 = vmatprep.subr.mxu0 0.0
    %845 = vmatpush1.msra.mxu0 0.0
    %846 = vmatprep.subr.mxu0 0.0
    %847 = vmatpush1.msra.mxu0 0.0
    %848 = vmatprep.subr.mxu0 0.0
    %849 = vmatpush1.msra.mxu0 0.0
    %850 = vmatprep.subr.mxu0 0.0
    %851 = vmatpush1.msra.mxu0 0.0
    %852 = vmatprep.subr.mxu0 0.0
    %853 = vmatpush1.msra.mxu0 0.0
    %854 = vmatprep.subr.mxu0 0.0
    %855 = vmatpush1.msra.mxu0 0.0
    %856 = vmatprep.subr.mxu0 0.0
    %857 = vmatpush1.msra.mxu0 0.0
    %858 = vmatprep.subr.mxu0 0.0
    %859 = vmatpush1.msra.mxu0 0.0
    %860 = vmatprep.subr.mxu0 0.0
    %861 = vmatpush1.msra.mxu0 0.0
    %862 = vmatprep.subr.mxu0 0.0
    %863 = vmatpush1.msra.mxu0 0.0
    %864 = vmatprep.subr.mxu0 0.0
    %865 = vmatpush1.msra.mxu0 0.0
    %866 = vmatprep.mubr.f32.mxu0 0.0
    %867 = vmatmul.mubr.f32.gmra.mrb[0].mxu0 %v800
    %v868 = vpop.f32.mrb[0].mxu0
    %v869 = vadd.f32 0.0, %v868
    %v870 = vpop.f32.mrb[0].mxu0
    %871 = vdwg.mxu0
    %v872 = vadd.f32 %v799, %v869
    %v873 = vxor.u32 %v872, 2147483648
    %v874 = vmul.f32 %v873, 1.442695
    %v875 = vpow.pop %v874
    %v876 = vadd.f32 %v875, 1.0
    %v877 = vrcp.pop %v876
    %v878 = vmul.f32 1.0, %v877
    %v879 = vtanh.pop %v872
    %v880 = vmul.f32 %v878, %v785
    %882 = vrot.lane.b32.xlu0 %v879, 32
    %v883 = vpop.permute.xlu0 %882
    %v885 = vmul.f32 %v878, %v883
    %887 = vrot.lane.b32.xlu0 %v885, 32
    %v888 = vpop.permute.xlu0 %887
    %v890 = vadd.f32 %v880, %v888
    %v891 = vtanh.pop %v890
    %893 = vrot.lane.b32.xlu0 %v891, 32
    %v894 = vpop.permute.xlu0 %893
    %v896 = vmul.f32 %v878, %v894
    %898 = vrot.lane.b32.xlu0 %v896, 64
    %v899 = vpop.permute.xlu0 %898
    %s901 = scalar_lea.vmem [#allocation3], 40
    %902 = vst.msk [vmem:[%s901] sm:$0xff] %vm274, %v899
    %s903 = scalar_lea.vmem [#allocation2], 48
    %v904 = vld [vmem:[%s903] sm:$0xff]
    %v905 = vsel %vm274, %v899, 0
    %907 = vmatprep.subr.mxu0 0.0
    %908 = vmatpush1.msra.mxu0 %v269
    %909 = vmatprep.subr.mxu0 0.0
    %910 = vmatpush1.msra.mxu0 %v270
    %911 = vmatprep.subr.mxu0 0.0
    %912 = vmatpush1.msra.mxu0 %v271
    %913 = vmatprep.subr.mxu0 0.0
    %914 = vmatpush1.msra.mxu0 %v272
    %915 = vmatprep.subr.mxu0 0.0
    %916 = vmatpush1.msra.mxu0 0.0
    %917 = vmatprep.subr.mxu0 0.0
    %918 = vmatpush1.msra.mxu0 0.0
    %919 = vmatprep.subr.mxu0 0.0
    %920 = vmatpush1.msra.mxu0 0.0
    %921 = vmatprep.subr.mxu0 0.0
    %922 = vmatpush1.msra.mxu0 0.0
    %923 = vmatprep.subr.mxu0 0.0
    %924 = vmatpush1.msra.mxu0 0.0
    %925 = vmatprep.subr.mxu0 0.0
    %926 = vmatpush1.msra.mxu0 0.0
    %927 = vmatprep.subr.mxu0 0.0
    %928 = vmatpush1.msra.mxu0 0.0
    %929 = vmatprep.subr.mxu0 0.0
    %930 = vmatpush1.msra.mxu0 0.0
    %931 = vmatprep.subr.mxu0 0.0
    %932 = vmatpush1.msra.mxu0 0.0
    %933 = vmatprep.subr.mxu0 0.0
    %934 = vmatpush1.msra.mxu0 0.0
    %935 = vmatprep.subr.mxu0 0.0
    %936 = vmatpush1.msra.mxu0 0.0
    %937 = vmatprep.subr.mxu0 0.0
    %938 = vmatpush1.msra.mxu0 0.0
    %939 = vmatprep.subr.mxu0 0.0
    %940 = vmatpush1.msra.mxu0 0.0
    %941 = vmatprep.subr.mxu0 0.0
    %942 = vmatpush1.msra.mxu0 0.0
    %943 = vmatprep.subr.mxu0 0.0
    %944 = vmatpush1.msra.mxu0 0.0
    %945 = vmatprep.subr.mxu0 0.0
    %946 = vmatpush1.msra.mxu0 0.0
    %947 = vmatprep.subr.mxu0 0.0
    %948 = vmatpush1.msra.mxu0 0.0
    %949 = vmatprep.subr.mxu0 0.0
    %950 = vmatpush1.msra.mxu0 0.0
    %951 = vmatprep.subr.mxu0 0.0
    %952 = vmatpush1.msra.mxu0 0.0
    %953 = vmatprep.subr.mxu0 0.0
    %954 = vmatpush1.msra.mxu0 0.0
    %955 = vmatprep.subr.mxu0 0.0
    %956 = vmatpush1.msra.mxu0 0.0
    %957 = vmatprep.subr.mxu0 0.0
    %958 = vmatpush1.msra.mxu0 0.0
    %959 = vmatprep.subr.mxu0 0.0
    %960 = vmatpush1.msra.mxu0 0.0
    %961 = vmatprep.subr.mxu0 0.0
    %962 = vmatpush1.msra.mxu0 0.0
    %963 = vmatprep.subr.mxu0 0.0
    %964 = vmatpush1.msra.mxu0 0.0
    %965 = vmatprep.subr.mxu0 0.0
    %966 = vmatpush1.msra.mxu0 0.0
    %967 = vmatprep.subr.mxu0 0.0
    %968 = vmatpush1.msra.mxu0 0.0
    %969 = vmatprep.subr.mxu0 0.0
    %970 = vmatpush1.msra.mxu0 0.0
    %971 = vmatprep.mubr.f32.mxu0 0.0
    %972 = vmatmul.mubr.f32.gmra.mrb[0].mxu0 %v905
    %v973 = vpop.f32.mrb[0].mxu0
    %v974 = vadd.f32 0.0, %v973
    %v975 = vpop.f32.mrb[0].mxu0
    %976 = vdwg.mxu0
    %v977 = vadd.f32 %v904, %v974
    %v978 = vxor.u32 %v977, 2147483648
    %v979 = vmul.f32 %v978, 1.442695
    %v980 = vpow.pop %v979
    %v981 = vadd.f32 %v980, 1.0
    %v982 = vrcp.pop %v981
    %v983 = vmul.f32 1.0, %v982
    %v984 = vtanh.pop %v977
    %v985 = vmul.f32 %v983, %v890
    %987 = vrot.lane.b32.xlu0 %v984, 32
    %v988 = vpop.permute.xlu0 %987
    %v990 = vmul.f32 %v983, %v988
    %992 = vrot.lane.b32.xlu0 %v990, 32
    %v993 = vpop.permute.xlu0 %992
    %v995 = vadd.f32 %v985, %v993
    %v996 = vtanh.pop %v995
    %998 = vrot.lane.b32.xlu0 %v996, 32
    %v999 = vpop.permute.xlu0 %998
    %v1001 = vmul.f32 %v983, %v999
    %1003 = vrot.lane.b32.xlu0 %v1001, 64
    %v1004 = vpop.permute.xlu0 %1003
    %s1006 = scalar_lea.vmem [#allocation3], 48
    %1007 = vst.msk [vmem:[%s1006] sm:$0xff] %vm274, %v1004
    %s1008 = scalar_lea.vmem [#allocation2], 56
    %v1009 = vld [vmem:[%s1008] sm:$0xff]
    %v1010 = vsel %vm274, %v1004, 0
    %1012 = vmatprep.subr.mxu0 0.0
    %1013 = vmatpush1.msra.mxu0 %v269
    %1014 = vmatprep.subr.mxu0 0.0
    %1015 = vmatpush1.msra.mxu0 %v270
    %1016 = vmatprep.subr.mxu0 0.0
    %1017 = vmatpush1.msra.mxu0 %v271
    %1018 = vmatprep.subr.mxu0 0.0
    %1019 = vmatpush1.msra.mxu0 %v272
    %1020 = vmatprep.subr.mxu0 0.0
    %1021 = vmatpush1.msra.mxu0 0.0
    %1022 = vmatprep.subr.mxu0 0.0
    %1023 = vmatpush1.msra.mxu0 0.0
    %1024 = vmatprep.subr.mxu0 0.0
    %1025 = vmatpush1.msra.mxu0 0.0
    %1026 = vmatprep.subr.mxu0 0.0
    %1027 = vmatpush1.msra.mxu0 0.0
    %1028 = vmatprep.subr.mxu0 0.0
    %1029 = vmatpush1.msra.mxu0 0.0
    %1030 = vmatprep.subr.mxu0 0.0
    %1031 = vmatpush1.msra.mxu0 0.0
    %1032 = vmatprep.subr.mxu0 0.0
    %1033 = vmatpush1.msra.mxu0 0.0
    %1034 = vmatprep.subr.mxu0 0.0
    %1035 = vmatpush1.msra.mxu0 0.0
    %1036 = vmatprep.subr.mxu0 0.0
    %1037 = vmatpush1.msra.mxu0 0.0
    %1038 = vmatprep.subr.mxu0 0.0
    %1039 = vmatpush1.msra.mxu0 0.0
    %1040 = vmatprep.subr.mxu0 0.0
    %1041 = vmatpush1.msra.mxu0 0.0
    %1042 = vmatprep.subr.mxu0 0.0
    %1043 = vmatpush1.msra.mxu0 0.0
    %1044 = vmatprep.subr.mxu0 0.0
    %1045 = vmatpush1.msra.mxu0 0.0
    %1046 = vmatprep.subr.mxu0 0.0
    %1047 = vmatpush1.msra.mxu0 0.0
    %1048 = vmatprep.subr.mxu0 0.0
    %1049 = vmatpush1.msra.mxu0 0.0
    %1050 = vmatprep.subr.mxu0 0.0
    %1051 = vmatpush1.msra.mxu0 0.0
    %1052 = vmatprep.subr.mxu0 0.0
    %1053 = vmatpush1.msra.mxu0 0.0
    %1054 = vmatprep.subr.mxu0 0.0
    %1055 = vmatpush1.msra.mxu0 0.0
    %1056 = vmatprep.subr.mxu0 0.0
    %1057 = vmatpush1.msra.mxu0 0.0
    %1058 = vmatprep.subr.mxu0 0.0
    %1059 = vmatpush1.msra.mxu0 0.0
    %1060 = vmatprep.subr.mxu0 0.0
    %1061 = vmatpush1.msra.mxu0 0.0
    %1062 = vmatprep.subr.mxu0 0.0
    %1063 = vmatpush1.msra.mxu0 0.0
    %1064 = vmatprep.subr.mxu0 0.0
    %1065 = vmatpush1.msra.mxu0 0.0
    %1066 = vmatprep.subr.mxu0 0.0
    %1067 = vmatpush1.msra.mxu0 0.0
    %1068 = vmatprep.subr.mxu0 0.0
    %1069 = vmatpush1.msra.mxu0 0.0
    %1070 = vmatprep.subr.mxu0 0.0
    %1071 = vmatpush1.msra.mxu0 0.0
    %1072 = vmatprep.subr.mxu0 0.0
    %1073 = vmatpush1.msra.mxu0 0.0
    %1074 = vmatprep.subr.mxu0 0.0
    %1075 = vmatpush1.msra.mxu0 0.0
    %1076 = vmatprep.mubr.f32.mxu0 0.0
    %1077 = vmatmul.mubr.f32.gmra.mrb[0].mxu0 %v1010
    %v1078 = vpop.f32.mrb[0].mxu0
    %v1079 = vadd.f32 0.0, %v1078
    %v1080 = vpop.f32.mrb[0].mxu0
    %1081 = vdwg.mxu0
    %v1082 = vadd.f32 %v1009, %v1079
    %v1083 = vxor.u32 %v1082, 2147483648
    %v1084 = vmul.f32 %v1083, 1.442695
    %v1085 = vpow.pop %v1084
    %v1086 = vadd.f32 %v1085, 1.0
    %v1087 = vrcp.pop %v1086
    %v1088 = vmul.f32 1.0, %v1087
    %v1089 = vtanh.pop %v1082
    %v1090 = vmul.f32 %v1088, %v995
    %1092 = vrot.lane.b32.xlu0 %v1089, 32
    %v1093 = vpop.permute.xlu0 %1092
    %v1095 = vmul.f32 %v1088, %v1093
    %1097 = vrot.lane.b32.xlu0 %v1095, 32
    %v1098 = vpop.permute.xlu0 %1097
    %v1100 = vadd.f32 %v1090, %v1098
    %v1101 = vtanh.pop %v1100
    %1103 = vrot.lane.b32.xlu0 %v1101, 32
    %v1104 = vpop.permute.xlu0 %1103
    %v1106 = vmul.f32 %v1088, %v1104
    %1108 = vrot.lane.b32.xlu0 %v1106, 64
    %v1109 = vpop.permute.xlu0 %1108
    %s1111 = scalar_lea.vmem [#allocation3], 56
    %1112 = vst.msk [vmem:[%s1111] sm:$0xff] %vm274, %v1109
    %v1113 = vld [vmem:[#allocation3] sm:$0xff]
    %v1114 = vld [vmem:[#allocation3 + $0x8] sm:$0xff]
    %v1115 = vld [vmem:[#allocation3 + $0x10] sm:$0xff]
    %v1116 = vld [vmem:[#allocation3 + $0x18] sm:$0xff]
    %v1117 = vld [vmem:[#allocation3 + $0x20] sm:$0xff]
    %v1118 = vld [vmem:[#allocation3 + $0x28] sm:$0xff]
    %v1119 = vld [vmem:[#allocation3 + $0x30] sm:$0xff]
    %v1120 = vld [vmem:[#allocation3 + $0x38] sm:$0xff]
    %v1121 = vld [vmem:[%s5] sm:$0xff]
    %v1122 = vld [vmem:[%s5 + $0x8] sm:$0xff]
    %v1123 = vld [vmem:[%s5 + $0x10] sm:$0xff]
    %v1124 = vld [vmem:[%s5 + $0x18] sm:$0xff]
    %v1125 = vld [vmem:[%s7] sm:$0x1]
    %v1127 = vlaneseq
    %v1128 = vshrl.u32 %v1127, 7
    %v1129 = vsub.s32 0, %v1128
    %v1130 = vrot.slane %v1125, %v1129
    %v1133 = vsel %vm274, %v1113, 0
    %v1136 = vsel %vm274, %v1114, 0
    %v1139 = vsel %vm274, %v1115, 0
    %v1142 = vsel %vm274, %v1116, 0
    %v1145 = vsel %vm274, %v1117, 0
    %v1148 = vsel %vm274, %v1118, 0
    %v1151 = vsel %vm274, %v1119, 0
    %v1154 = vsel %vm274, %v1120, 0
    %1156 = vmatprep.subr.mxu0 0.0
    %1157 = vmatpush1.msra.mxu0 %v1121
    %1158 = vmatprep.subr.mxu0 0.0
    %1159 = vmatpush1.msra.mxu0 %v1122
    %1160 = vmatprep.subr.mxu0 0.0
    %1161 = vmatpush1.msra.mxu0 %v1123
    %1162 = vmatprep.subr.mxu0 0.0
    %1163 = vmatpush1.msra.mxu0 %v1124
    %1164 = vmatprep.subr.mxu0 0.0
    %1165 = vmatpush1.msra.mxu0 0.0
    %1166 = vmatprep.subr.mxu0 0.0
    %1167 = vmatpush1.msra.mxu0 0.0
    %1168 = vmatprep.subr.mxu0 0.0
    %1169 = vmatpush1.msra.mxu0 0.0
    %1170 = vmatprep.subr.mxu0 0.0
    %1171 = vmatpush1.msra.mxu0 0.0
    %1172 = vmatprep.subr.mxu0 0.0
    %1173 = vmatpush1.msra.mxu0 0.0
    %1174 = vmatprep.subr.mxu0 0.0
    %1175 = vmatpush1.msra.mxu0 0.0
    %1176 = vmatprep.subr.mxu0 0.0
    %1177 = vmatpush1.msra.mxu0 0.0
    %1178 = vmatprep.subr.mxu0 0.0
    %1179 = vmatpush1.msra.mxu0 0.0
    %1180 = vmatprep.subr.mxu0 0.0
    %1181 = vmatpush1.msra.mxu0 0.0
    %1182 = vmatprep.subr.mxu0 0.0
    %1183 = vmatpush1.msra.mxu0 0.0
    %1184 = vmatprep.subr.mxu0 0.0
    %1185 = vmatpush1.msra.mxu0 0.0
    %1186 = vmatprep.subr.mxu0 0.0
    %1187 = vmatpush1.msra.mxu0 0.0
    %1188 = vmatprep.subr.mxu0 0.0
    %1189 = vmatpush1.msra.mxu0 0.0
    %1190 = vmatprep.subr.mxu0 0.0
    %1191 = vmatpush1.msra.mxu0 0.0
    %1192 = vmatprep.subr.mxu0 0.0
    %1193 = vmatpush1.msra.mxu0 0.0
    %1194 = vmatprep.subr.mxu0 0.0
    %1195 = vmatpush1.msra.mxu0 0.0
    %1196 = vmatprep.subr.mxu0 0.0
    %1197 = vmatpush1.msra.mxu0 0.0
    %1198 = vmatprep.subr.mxu0 0.0
    %1199 = vmatpush1.msra.mxu0 0.0
    %1200 = vmatprep.subr.mxu0 0.0
    %1201 = vmatpush1.msra.mxu0 0.0
    %1202 = vmatprep.subr.mxu0 0.0
    %1203 = vmatpush1.msra.mxu0 0.0
    %1204 = vmatprep.subr.mxu0 0.0
    %1205 = vmatpush1.msra.mxu0 0.0
    %1206 = vmatprep.subr.mxu0 0.0
    %1207 = vmatpush1.msra.mxu0 0.0
    %1208 = vmatprep.subr.mxu0 0.0
    %1209 = vmatpush1.msra.mxu0 0.0
    %1210 = vmatprep.subr.mxu0 0.0
    %1211 = vmatpush1.msra.mxu0 0.0
    %1212 = vmatprep.subr.mxu0 0.0
    %1213 = vmatpush1.msra.mxu0 0.0
    %1214 = vmatprep.subr.mxu0 0.0
    %1215 = vmatpush1.msra.mxu0 0.0
    %1216 = vmatprep.subr.mxu0 0.0
    %1217 = vmatpush1.msra.mxu0 0.0
    %1218 = vmatprep.subr.mxu0 0.0
    %1219 = vmatpush1.msra.mxu0 0.0
    %1220 = vmatprep.mubr.f32.mxu0 0.0
    %1221 = vmatmul.mubr.f32.gmra.mrb[0].mxu0 %v1133
    %v1222 = vpop.f32.mrb[0].mxu0
    %v1223 = vadd.f32 %v1130, %v1222
    %v1224 = vpop.f32.mrb[0].mxu0
    %1225 = vmatprep.mubr.f32.mxu0 0.0
    %1226 = vmatmul.mubr.f32.gmra.mrb[0].mxu0 %v1136
    %v1227 = vpop.f32.mrb[0].mxu0
    %v1228 = vadd.f32 %v1130, %v1227
    %v1229 = vpop.f32.mrb[0].mxu0
    %1230 = vmatprep.mubr.f32.mxu0 0.0
    %1231 = vmatmul.mubr.f32.gmra.mrb[0].mxu0 %v1139
    %v1232 = vpop.f32.mrb[0].mxu0
    %v1233 = vadd.f32 %v1130, %v1232
    %v1234 = vpop.f32.mrb[0].mxu0
    %1235 = vmatprep.mubr.f32.mxu0 0.0
    %1236 = vmatmul.mubr.f32.gmra.mrb[0].mxu0 %v1142
    %v1237 = vpop.f32.mrb[0].mxu0
    %v1238 = vadd.f32 %v1130, %v1237
    %v1239 = vpop.f32.mrb[0].mxu0
    %1240 = vmatprep.mubr.f32.mxu0 0.0
    %1241 = vmatmul.mubr.f32.gmra.mrb[0].mxu0 %v1145
    %v1242 = vpop.f32.mrb[0].mxu0
    %v1243 = vadd.f32 %v1130, %v1242
    %v1244 = vpop.f32.mrb[0].mxu0
    %1245 = vmatprep.mubr.f32.mxu0 0.0
    %1246 = vmatmul.mubr.f32.gmra.mrb[0].mxu0 %v1148
    %v1247 = vpop.f32.mrb[0].mxu0
    %v1248 = vadd.f32 %v1130, %v1247
    %v1249 = vpop.f32.mrb[0].mxu0
    %1250 = vmatprep.mubr.f32.mxu0 0.0
    %1251 = vmatmul.mubr.f32.gmra.mrb[0].mxu0 %v1151
    %v1252 = vpop.f32.mrb[0].mxu0
    %v1253 = vadd.f32 %v1130, %v1252
    %v1254 = vpop.f32.mrb[0].mxu0
    %1255 = vmatprep.mubr.f32.mxu0 0.0
    %1256 = vmatmul.mubr.f32.gmra.mrb[0].mxu0 %v1154
    %v1257 = vpop.f32.mrb[0].mxu0
    %v1258 = vadd.f32 %v1130, %v1257
    %v1259 = vpop.f32.mrb[0].mxu0
    %1260 = vdwg.mxu0
    %1261 = vst [vmem:[#allocation2] sm:$0xff] %v1223
    %1262 = vst [vmem:[#allocation2 + $0x8] sm:$0xff] %v1228
    %1263 = vst [vmem:[#allocation2 + $0x10] sm:$0xff] %v1233
    %1264 = vst [vmem:[#allocation2 + $0x18] sm:$0xff] %v1238
    %1265 = vst [vmem:[#allocation2 + $0x20] sm:$0xff] %v1243
    %1266 = vst [vmem:[#allocation2 + $0x28] sm:$0xff] %v1248
    %1267 = vst [vmem:[#allocation2 + $0x30] sm:$0xff] %v1253
    %1268 = vst [vmem:[#allocation2 + $0x38] sm:$0xff] %v1258
    %v1269 = vld [vmem:[#allocation4] sm:$0xff]
    %v1270 = vld [vmem:[#allocation4 + $0x8] sm:$0xff]
    %v1271 = vld [vmem:[#allocation4 + $0x10] sm:$0xff]
    %v1272 = vld [vmem:[#allocation4 + $0x18] sm:$0xff]
    %v1273 = vld [vmem:[#allocation2] sm:$0xff]
    %1274 = vmatprep.subr.mxu0 0.0
    %1275 = vmatpush1.msra.mxu0 %v1269
    %1276 = vmatprep.subr.mxu0 0.0
    %1277 = vmatpush1.msra.mxu0 %v1270
    %1278 = vmatprep.subr.mxu0 0.0
    %1279 = vmatpush1.msra.mxu0 %v1271
    %1280 = vmatprep.subr.mxu0 0.0
    %1281 = vmatpush1.msra.mxu0 %v1272
    %1282 = vmatprep.subr.mxu0 0.0
    %1283 = vmatpush1.msra.mxu0 0.0
    %1284 = vmatprep.subr.mxu0 0.0
    %1285 = vmatpush1.msra.mxu0 0.0
    %1286 = vmatprep.subr.mxu0 0.0
    %1287 = vmatpush1.msra.mxu0 0.0
    %1288 = vmatprep.subr.mxu0 0.0
    %1289 = vmatpush1.msra.mxu0 0.0
    %1290 = vmatprep.subr.mxu0 0.0
    %1291 = vmatpush1.msra.mxu0 0.0
    %1292 = vmatprep.subr.mxu0 0.0
    %1293 = vmatpush1.msra.mxu0 0.0
    %1294 = vmatprep.subr.mxu0 0.0
    %1295 = vmatpush1.msra.mxu0 0.0
    %1296 = vmatprep.subr.mxu0 0.0
    %1297 = vmatpush1.msra.mxu0 0.0
    %1298 = vmatprep.subr.mxu0 0.0
    %1299 = vmatpush1.msra.mxu0 0.0
    %1300 = vmatprep.subr.mxu0 0.0
    %1301 = vmatpush1.msra.mxu0 0.0
    %1302 = vmatprep.subr.mxu0 0.0
    %1303 = vmatpush1.msra.mxu0 0.0
    %1304 = vmatprep.subr.mxu0 0.0
    %1305 = vmatpush1.msra.mxu0 0.0
    %1306 = vmatprep.subr.mxu0 0.0
    %1307 = vmatpush1.msra.mxu0 0.0
    %1308 = vmatprep.subr.mxu0 0.0
    %1309 = vmatpush1.msra.mxu0 0.0
    %1310 = vmatprep.subr.mxu0 0.0
    %1311 = vmatpush1.msra.mxu0 0.0
    %1312 = vmatprep.subr.mxu0 0.0
    %1313 = vmatpush1.msra.mxu0 0.0
    %1314 = vmatprep.subr.mxu0 0.0
    %1315 = vmatpush1.msra.mxu0 0.0
    %1316 = vmatprep.subr.mxu0 0.0
    %1317 = vmatpush1.msra.mxu0 0.0
    %1318 = vmatprep.subr.mxu0 0.0
    %1319 = vmatpush1.msra.mxu0 0.0
    %1320 = vmatprep.subr.mxu0 0.0
    %1321 = vmatpush1.msra.mxu0 0.0
    %1322 = vmatprep.subr.mxu0 0.0
    %1323 = vmatpush1.msra.mxu0 0.0
    %1324 = vmatprep.subr.mxu0 0.0
    %1325 = vmatpush1.msra.mxu0 0.0
    %1326 = vmatprep.subr.mxu0 0.0
    %1327 = vmatpush1.msra.mxu0 0.0
    %1328 = vmatprep.subr.mxu0 0.0
    %1329 = vmatpush1.msra.mxu0 0.0
    %1330 = vmatprep.subr.mxu0 0.0
    %1331 = vmatpush1.msra.mxu0 0.0
    %1332 = vmatprep.subr.mxu0 0.0
    %1333 = vmatpush1.msra.mxu0 0.0
    %1334 = vmatprep.subr.mxu0 0.0
    %1335 = vmatpush1.msra.mxu0 0.0
    %1336 = vmatprep.subr.mxu0 0.0
    %1337 = vmatpush1.msra.mxu0 0.0
    %1338 = vmatprep.mubr.f32.mxu0 0.0
    %1339 = vmatmul.mubr.f32.gmra.mrb[0].mxu0 %v276
    %v1340 = vpop.f32.mrb[0].mxu0
    %v1341 = vadd.f32 0.0, %v1340
    %v1342 = vpop.f32.mrb[0].mxu0
    %1343 = vdwg.mxu0
    %v1344 = vadd.f32 %v1273, %v1341
    %v1345 = vxor.u32 %v1344, 2147483648
    %v1346 = vmul.f32 %v1345, 1.442695
    %v1347 = vpow.pop %v1346
    %v1348 = vadd.f32 %v1347, 1.0
    %v1349 = vrcp.pop %v1348
    %v1350 = vmul.f32 1.0, %v1349
    %v1351 = vtanh.pop %v1344
    %v1352 = vmul.f32 %v1350, 0.0
    %1354 = vrot.lane.b32.xlu0 %v1351, 32
    %v1355 = vpop.permute.xlu0 %1354
    %v1357 = vmul.f32 %v1350, %v1355
    %1359 = vrot.lane.b32.xlu0 %v1357, 32
    %v1360 = vpop.permute.xlu0 %1359
    %v1362 = vadd.f32 %v1352, %v1360
    %v1363 = vtanh.pop %v1362
    %1365 = vrot.lane.b32.xlu0 %v1363, 32
    %v1366 = vpop.permute.xlu0 %1365
    %v1368 = vmul.f32 %v1350, %v1366
    %1370 = vrot.lane.b32.xlu0 %v1368, 64
    %v1371 = vpop.permute.xlu0 %1370
    %1373 = vst.msk [vmem:[#allocation3] sm:$0xff] %vm274, %v1371
    %v1374 = vld [vmem:[%s378] sm:$0xff]
    %v1375 = vsel %vm274, %v1371, 0
    %1377 = vmatprep.subr.mxu0 0.0
    %1378 = vmatpush1.msra.mxu0 %v1269
    %1379 = vmatprep.subr.mxu0 0.0
    %1380 = vmatpush1.msra.mxu0 %v1270
    %1381 = vmatprep.subr.mxu0 0.0
    %1382 = vmatpush1.msra.mxu0 %v1271
    %1383 = vmatprep.subr.mxu0 0.0
    %1384 = vmatpush1.msra.mxu0 %v1272
    %1385 = vmatprep.subr.mxu0 0.0
    %1386 = vmatpush1.msra.mxu0 0.0
    %1387 = vmatprep.subr.mxu0 0.0
    %1388 = vmatpush1.msra.mxu0 0.0
    %1389 = vmatprep.subr.mxu0 0.0
    %1390 = vmatpush1.msra.mxu0 0.0
    %1391 = vmatprep.subr.mxu0 0.0
    %1392 = vmatpush1.msra.mxu0 0.0
    %1393 = vmatprep.subr.mxu0 0.0
    %1394 = vmatpush1.msra.mxu0 0.0
    %1395 = vmatprep.subr.mxu0 0.0
    %1396 = vmatpush1.msra.mxu0 0.0
    %1397 = vmatprep.subr.mxu0 0.0
    %1398 = vmatpush1.msra.mxu0 0.0
    %1399 = vmatprep.subr.mxu0 0.0
    %1400 = vmatpush1.msra.mxu0 0.0
    %1401 = vmatprep.subr.mxu0 0.0
    %1402 = vmatpush1.msra.mxu0 0.0
    %1403 = vmatprep.subr.mxu0 0.0
    %1404 = vmatpush1.msra.mxu0 0.0
    %1405 = vmatprep.subr.mxu0 0.0
    %1406 = vmatpush1.msra.mxu0 0.0
    %1407 = vmatprep.subr.mxu0 0.0
    %1408 = vmatpush1.msra.mxu0 0.0
    %1409 = vmatprep.subr.mxu0 0.0
    %1410 = vmatpush1.msra.mxu0 0.0
    %1411 = vmatprep.subr.mxu0 0.0
    %1412 = vmatpush1.msra.mxu0 0.0
    %1413 = vmatprep.subr.mxu0 0.0
    %1414 = vmatpush1.msra.mxu0 0.0
    %1415 = vmatprep.subr.mxu0 0.0
    %1416 = vmatpush1.msra.mxu0 0.0
    %1417 = vmatprep.subr.mxu0 0.0
    %1418 = vmatpush1.msra.mxu0 0.0
    %1419 = vmatprep.subr.mxu0 0.0
    %1420 = vmatpush1.msra.mxu0 0.0
    %1421 = vmatprep.subr.mxu0 0.0
    %1422 = vmatpush1.msra.mxu0 0.0
    %1423 = vmatprep.subr.mxu0 0.0
    %1424 = vmatpush1.msra.mxu0 0.0
    %1425 = vmatprep.subr.mxu0 0.0
    %1426 = vmatpush1.msra.mxu0 0.0
    %1427 = vmatprep.subr.mxu0 0.0
    %1428 = vmatpush1.msra.mxu0 0.0
    %1429 = vmatprep.subr.mxu0 0.0
    %1430 = vmatpush1.msra.mxu0 0.0
    %1431 = vmatprep.subr.mxu0 0.0
    %1432 = vmatpush1.msra.mxu0 0.0
    %1433 = vmatprep.subr.mxu0 0.0
    %1434 = vmatpush1.msra.mxu0 0.0
    %1435 = vmatprep.subr.mxu0 0.0
    %1436 = vmatpush1.msra.mxu0 0.0
    %1437 = vmatprep.subr.mxu0 0.0
    %1438 = vmatpush1.msra.mxu0 0.0
    %1439 = vmatprep.subr.mxu0 0.0
    %1440 = vmatpush1.msra.mxu0 0.0
    %1441 = vmatprep.mubr.f32.mxu0 0.0
    %1442 = vmatmul.mubr.f32.gmra.mrb[0].mxu0 %v1375
    %v1443 = vpop.f32.mrb[0].mxu0
    %v1444 = vadd.f32 0.0, %v1443
    %v1445 = vpop.f32.mrb[0].mxu0
    %1446 = vdwg.mxu0
    %v1447 = vadd.f32 %v1374, %v1444
    %v1448 = vxor.u32 %v1447, 2147483648
    %v1449 = vmul.f32 %v1448, 1.442695
    %v1450 = vpow.pop %v1449
    %v1451 = vadd.f32 %v1450, 1.0
    %v1452 = vrcp.pop %v1451
    %v1453 = vmul.f32 1.0, %v1452
    %v1454 = vtanh.pop %v1447
    %v1455 = vmul.f32 %v1453, %v1362
    %1457 = vrot.lane.b32.xlu0 %v1454, 32
    %v1458 = vpop.permute.xlu0 %1457
    %v1460 = vmul.f32 %v1453, %v1458
    %1462 = vrot.lane.b32.xlu0 %v1460, 32
    %v1463 = vpop.permute.xlu0 %1462
    %v1465 = vadd.f32 %v1455, %v1463
    %v1466 = vtanh.pop %v1465
    %1468 = vrot.lane.b32.xlu0 %v1466, 32
    %v1469 = vpop.permute.xlu0 %1468
    %v1471 = vmul.f32 %v1453, %v1469
    %1473 = vrot.lane.b32.xlu0 %v1471, 64
    %v1474 = vpop.permute.xlu0 %1473
    %1476 = vst.msk [vmem:[%s481] sm:$0xff] %vm274, %v1474
    %v1477 = vld [vmem:[%s483] sm:$0xff]
    %v1478 = vsel %vm274, %v1474, 0
    %1480 = vmatprep.subr.mxu0 0.0
    %1481 = vmatpush1.msra.mxu0 %v1269
    %1482 = vmatprep.subr.mxu0 0.0
    %1483 = vmatpush1.msra.mxu0 %v1270
    %1484 = vmatprep.subr.mxu0 0.0
    %1485 = vmatpush1.msra.mxu0 %v1271
    %1486 = vmatprep.subr.mxu0 0.0
    %1487 = vmatpush1.msra.mxu0 %v1272
    %1488 = vmatprep.subr.mxu0 0.0
    %1489 = vmatpush1.msra.mxu0 0.0
    %1490 = vmatprep.subr.mxu0 0.0
    %1491 = vmatpush1.msra.mxu0 0.0
    %1492 = vmatprep.subr.mxu0 0.0
    %1493 = vmatpush1.msra.mxu0 0.0
    %1494 = vmatprep.subr.mxu0 0.0
    %1495 = vmatpush1.msra.mxu0 0.0
    %1496 = vmatprep.subr.mxu0 0.0
    %1497 = vmatpush1.msra.mxu0 0.0
    %1498 = vmatprep.subr.mxu0 0.0
    %1499 = vmatpush1.msra.mxu0 0.0
    %1500 = vmatprep.subr.mxu0 0.0
    %1501 = vmatpush1.msra.mxu0 0.0
    %1502 = vmatprep.subr.mxu0 0.0
    %1503 = vmatpush1.msra.mxu0 0.0
    %1504 = vmatprep.subr.mxu0 0.0
    %1505 = vmatpush1.msra.mxu0 0.0
    %1506 = vmatprep.subr.mxu0 0.0
    %1507 = vmatpush1.msra.mxu0 0.0
    %1508 = vmatprep.subr.mxu0 0.0
    %1509 = vmatpush1.msra.mxu0 0.0
    %1510 = vmatprep.subr.mxu0 0.0
    %1511 = vmatpush1.msra.mxu0 0.0
    %1512 = vmatprep.subr.mxu0 0.0
    %1513 = vmatpush1.msra.mxu0 0.0
    %1514 = vmatprep.subr.mxu0 0.0
    %1515 = vmatpush1.msra.mxu0 0.0
    %1516 = vmatprep.subr.mxu0 0.0
    %1517 = vmatpush1.msra.mxu0 0.0
    %1518 = vmatprep.subr.mxu0 0.0
    %1519 = vmatpush1.msra.mxu0 0.0
    %1520 = vmatprep.subr.mxu0 0.0
    %1521 = vmatpush1.msra.mxu0 0.0
    %1522 = vmatprep.subr.mxu0 0.0
    %1523 = vmatpush1.msra.mxu0 0.0
    %1524 = vmatprep.subr.mxu0 0.0
    %1525 = vmatpush1.msra.mxu0 0.0
    %1526 = vmatprep.subr.mxu0 0.0
    %1527 = vmatpush1.msra.mxu0 0.0
    %1528 = vmatprep.subr.mxu0 0.0
    %1529 = vmatpush1.msra.mxu0 0.0
    %1530 = vmatprep.subr.mxu0 0.0
    %1531 = vmatpush1.msra.mxu0 0.0
    %1532 = vmatprep.subr.mxu0 0.0
    %1533 = vmatpush1.msra.mxu0 0.0
    %1534 = vmatprep.subr.mxu0 0.0
    %1535 = vmatpush1.msra.mxu0 0.0
    %1536 = vmatprep.subr.mxu0 0.0
    %1537 = vmatpush1.msra.mxu0 0.0
    %1538 = vmatprep.subr.mxu0 0.0
    %1539 = vmatpush1.msra.mxu0 0.0
    %1540 = vmatprep.subr.mxu0 0.0
    %1541 = vmatpush1.msra.mxu0 0.0
    %1542 = vmatprep.subr.mxu0 0.0
    %1543 = vmatpush1.msra.mxu0 0.0
    %1544 = vmatprep.mubr.f32.mxu0 0.0
    %1545 = vmatmul.mubr.f32.gmra.mrb[0].mxu0 %v1478
    %v1546 = vpop.f32.mrb[0].mxu0
    %v1547 = vadd.f32 0.0, %v1546
    %v1548 = vpop.f32.mrb[0].mxu0
    %1549 = vdwg.mxu0
    %v1550 = vadd.f32 %v1477, %v1547
    %v1551 = vxor.u32 %v1550, 2147483648
    %v1552 = vmul.f32 %v1551, 1.442695
    %v1553 = vpow.pop %v1552
    %v1554 = vadd.f32 %v1553, 1.0
    %v1555 = vrcp.pop %v1554
    %v1556 = vmul.f32 1.0, %v1555
    %v1557 = vtanh.pop %v1550
    %v1558 = vmul.f32 %v1556, %v1465
    %1560 = vrot.lane.b32.xlu0 %v1557, 32
    %v1561 = vpop.permute.xlu0 %1560
    %v1563 = vmul.f32 %v1556, %v1561
    %1565 = vrot.lane.b32.xlu0 %v1563, 32
    %v1566 = vpop.permute.xlu0 %1565
    %v1568 = vadd.f32 %v1558, %v1566
    %v1569 = vtanh.pop %v1568
    %1571 = vrot.lane.b32.xlu0 %v1569, 32
    %v1572 = vpop.permute.xlu0 %1571
    %v1574 = vmul.f32 %v1556, %v1572
    %1576 = vrot.lane.b32.xlu0 %v1574, 64
    %v1577 = vpop.permute.xlu0 %1576
    %1579 = vst.msk [vmem:[%s586] sm:$0xff] %vm274, %v1577
    %v1580 = vld [vmem:[%s588] sm:$0xff]
    %v1581 = vsel %vm274, %v1577, 0
    %1583 = vmatprep.subr.mxu0 0.0
    %1584 = vmatpush1.msra.mxu0 %v1269
    %1585 = vmatprep.subr.mxu0 0.0
    %1586 = vmatpush1.msra.mxu0 %v1270
    %1587 = vmatprep.subr.mxu0 0.0
    %1588 = vmatpush1.msra.mxu0 %v1271
    %1589 = vmatprep.subr.mxu0 0.0
    %1590 = vmatpush1.msra.mxu0 %v1272
    %1591 = vmatprep.subr.mxu0 0.0
    %1592 = vmatpush1.msra.mxu0 0.0
    %1593 = vmatprep.subr.mxu0 0.0
    %1594 = vmatpush1.msra.mxu0 0.0
    %1595 = vmatprep.subr.mxu0 0.0
    %1596 = vmatpush1.msra.mxu0 0.0
    %1597 = vmatprep.subr.mxu0 0.0
    %1598 = vmatpush1.msra.mxu0 0.0
    %1599 = vmatprep.subr.mxu0 0.0
    %1600 = vmatpush1.msra.mxu0 0.0
    %1601 = vmatprep.subr.mxu0 0.0
    %1602 = vmatpush1.msra.mxu0 0.0
    %1603 = vmatprep.subr.mxu0 0.0
    %1604 = vmatpush1.msra.mxu0 0.0
    %1605 = vmatprep.subr.mxu0 0.0
    %1606 = vmatpush1.msra.mxu0 0.0
    %1607 = vmatprep.subr.mxu0 0.0
    %1608 = vmatpush1.msra.mxu0 0.0
    %1609 = vmatprep.subr.mxu0 0.0
    %1610 = vmatpush1.msra.mxu0 0.0
    %1611 = vmatprep.subr.mxu0 0.0
    %1612 = vmatpush1.msra.mxu0 0.0
    %1613 = vmatprep.subr.mxu0 0.0
    %1614 = vmatpush1.msra.mxu0 0.0
    %1615 = vmatprep.subr.mxu0 0.0
    %1616 = vmatpush1.msra.mxu0 0.0
    %1617 = vmatprep.subr.mxu0 0.0
    %1618 = vmatpush1.msra.mxu0 0.0
    %1619 = vmatprep.subr.mxu0 0.0
    %1620 = vmatpush1.msra.mxu0 0.0
    %1621 = vmatprep.subr.mxu0 0.0
    %1622 = vmatpush1.msra.mxu0 0.0
    %1623 = vmatprep.subr.mxu0 0.0
    %1624 = vmatpush1.msra.mxu0 0.0
    %1625 = vmatprep.subr.mxu0 0.0
    %1626 = vmatpush1.msra.mxu0 0.0
    %1627 = vmatprep.subr.mxu0 0.0
    %1628 = vmatpush1.msra.mxu0 0.0
    %1629 = vmatprep.subr.mxu0 0.0
    %1630 = vmatpush1.msra.mxu0 0.0
    %1631 = vmatprep.subr.mxu0 0.0
    %1632 = vmatpush1.msra.mxu0 0.0
    %1633 = vmatprep.subr.mxu0 0.0
    %1634 = vmatpush1.msra.mxu0 0.0
    %1635 = vmatprep.subr.mxu0 0.0
    %1636 = vmatpush1.msra.mxu0 0.0
    %1637 = vmatprep.subr.mxu0 0.0
    %1638 = vmatpush1.msra.mxu0 0.0
    %1639 = vmatprep.subr.mxu0 0.0
    %1640 = vmatpush1.msra.mxu0 0.0
    %1641 = vmatprep.subr.mxu0 0.0
    %1642 = vmatpush1.msra.mxu0 0.0
    %1643 = vmatprep.subr.mxu0 0.0
    %1644 = vmatpush1.msra.mxu0 0.0
    %1645 = vmatprep.subr.mxu0 0.0
    %1646 = vmatpush1.msra.mxu0 0.0
    %1647 = vmatprep.mubr.f32.mxu0 0.0
    %1648 = vmatmul.mubr.f32.gmra.mrb[0].mxu0 %v1581
    %v1649 = vpop.f32.mrb[0].mxu0
    %v1650 = vadd.f32 0.0, %v1649
    %v1651 = vpop.f32.mrb[0].mxu0
    %1652 = vdwg.mxu0
    %v1653 = vadd.f32 %v1580, %v1650
    %v1654 = vxor.u32 %v1653, 2147483648
    %v1655 = vmul.f32 %v1654, 1.442695
    %v1656 = vpow.pop %v1655
    %v1657 = vadd.f32 %v1656, 1.0
    %v1658 = vrcp.pop %v1657
    %v1659 = vmul.f32 1.0, %v1658
    %v1660 = vtanh.pop %v1653
    %v1661 = vmul.f32 %v1659, %v1568
    %1663 = vrot.lane.b32.xlu0 %v1660, 32
    %v1664 = vpop.permute.xlu0 %1663
    %v1666 = vmul.f32 %v1659, %v1664
    %1668 = vrot.lane.b32.xlu0 %v1666, 32
    %v1669 = vpop.permute.xlu0 %1668
    %v1671 = vadd.f32 %v1661, %v1669
    %v1672 = vtanh.pop %v1671
    %1674 = vrot.lane.b32.xlu0 %v1672, 32
    %v1675 = vpop.permute.xlu0 %1674
    %v1677 = vmul.f32 %v1659, %v1675
    %1679 = vrot.lane.b32.xlu0 %v1677, 64
    %v1680 = vpop.permute.xlu0 %1679
    %1682 = vst.msk [vmem:[%s691] sm:$0xff] %vm274, %v1680
    %v1683 = vld [vmem:[%s693] sm:$0xff]
    %v1684 = vsel %vm274, %v1680, 0
    %1686 = vmatprep.subr.mxu0 0.0
    %1687 = vmatpush1.msra.mxu0 %v1269
    %1688 = vmatprep.subr.mxu0 0.0
    %1689 = vmatpush1.msra.mxu0 %v1270
    %1690 = vmatprep.subr.mxu0 0.0
    %1691 = vmatpush1.msra.mxu0 %v1271
    %1692 = vmatprep.subr.mxu0 0.0
    %1693 = vmatpush1.msra.mxu0 %v1272
    %1694 = vmatprep.subr.mxu0 0.0
    %1695 = vmatpush1.msra.mxu0 0.0
    %1696 = vmatprep.subr.mxu0 0.0
    %1697 = vmatpush1.msra.mxu0 0.0
    %1698 = vmatprep.subr.mxu0 0.0
    %1699 = vmatpush1.msra.mxu0 0.0
    %1700 = vmatprep.subr.mxu0 0.0
    %1701 = vmatpush1.msra.mxu0 0.0
    %1702 = vmatprep.subr.mxu0 0.0
    %1703 = vmatpush1.msra.mxu0 0.0
    %1704 = vmatprep.subr.mxu0 0.0
    %1705 = vmatpush1.msra.mxu0 0.0
    %1706 = vmatprep.subr.mxu0 0.0
    %1707 = vmatpush1.msra.mxu0 0.0
    %1708 = vmatprep.subr.mxu0 0.0
    %1709 = vmatpush1.msra.mxu0 0.0
    %1710 = vmatprep.subr.mxu0 0.0
    %1711 = vmatpush1.msra.mxu0 0.0
    %1712 = vmatprep.subr.mxu0 0.0
    %1713 = vmatpush1.msra.mxu0 0.0
    %1714 = vmatprep.subr.mxu0 0.0
    %1715 = vmatpush1.msra.mxu0 0.0
    %1716 = vmatprep.subr.mxu0 0.0
    %1717 = vmatpush1.msra.mxu0 0.0
    %1718 = vmatprep.subr.mxu0 0.0
    %1719 = vmatpush1.msra.mxu0 0.0
    %1720 = vmatprep.subr.mxu0 0.0
    %1721 = vmatpush1.msra.mxu0 0.0
    %1722 = vmatprep.subr.mxu0 0.0
    %1723 = vmatpush1.msra.mxu0 0.0
    %1724 = vmatprep.subr.mxu0 0.0
    %1725 = vmatpush1.msra.mxu0 0.0
    %1726 = vmatprep.subr.mxu0 0.0
    %1727 = vmatpush1.msra.mxu0 0.0
    %1728 = vmatprep.subr.mxu0 0.0
    %1729 = vmatpush1.msra.mxu0 0.0
    %1730 = vmatprep.subr.mxu0 0.0
    %1731 = vmatpush1.msra.mxu0 0.0
    %1732 = vmatprep.subr.mxu0 0.0
    %1733 = vmatpush1.msra.mxu0 0.0
    %1734 = vmatprep.subr.mxu0 0.0
    %1735 = vmatpush1.msra.mxu0 0.0
    %1736 = vmatprep.subr.mxu0 0.0
    %1737 = vmatpush1.msra.mxu0 0.0
    %1738 = vmatprep.subr.mxu0 0.0
    %1739 = vmatpush1.msra.mxu0 0.0
    %1740 = vmatprep.subr.mxu0 0.0
    %1741 = vmatpush1.msra.mxu0 0.0
    %1742 = vmatprep.subr.mxu0 0.0
    %1743 = vmatpush1.msra.mxu0 0.0
    %1744 = vmatprep.subr.mxu0 0.0
    %1745 = vmatpush1.msra.mxu0 0.0
    %1746 = vmatprep.subr.mxu0 0.0
    %1747 = vmatpush1.msra.mxu0 0.0
    %1748 = vmatprep.subr.mxu0 0.0
    %1749 = vmatpush1.msra.mxu0 0.0
    %1750 = vmatprep.mubr.f32.mxu0 0.0
    %1751 = vmatmul.mubr.f32.gmra.mrb[0].mxu0 %v1684
    %v1752 = vpop.f32.mrb[0].mxu0
    %v1753 = vadd.f32 0.0, %v1752
    %v1754 = vpop.f32.mrb[0].mxu0
    %1755 = vdwg.mxu0
    %v1756 = vadd.f32 %v1683, %v1753
    %v1757 = vxor.u32 %v1756, 2147483648
    %v1758 = vmul.f32 %v1757, 1.442695
    %v1759 = vpow.pop %v1758
    %v1760 = vadd.f32 %v1759, 1.0
    %v1761 = vrcp.pop %v1760
    %v1762 = vmul.f32 1.0, %v1761
    %v1763 = vtanh.pop %v1756
    %v1764 = vmul.f32 %v1762, %v1671
    %1766 = vrot.lane.b32.xlu0 %v1763, 32
    %v1767 = vpop.permute.xlu0 %1766
    %v1769 = vmul.f32 %v1762, %v1767
    %1771 = vrot.lane.b32.xlu0 %v1769, 32
    %v1772 = vpop.permute.xlu0 %1771
    %v1774 = vadd.f32 %v1764, %v1772
    %v1775 = vtanh.pop %v1774
    %1777 = vrot.lane.b32.xlu0 %v1775, 32
    %v1778 = vpop.permute.xlu0 %1777
    %v1780 = vmul.f32 %v1762, %v1778
    %1782 = vrot.lane.b32.xlu0 %v1780, 64
    %v1783 = vpop.permute.xlu0 %1782
    %1785 = vst.msk [vmem:[%s796] sm:$0xff] %vm274, %v1783
    %v1786 = vld [vmem:[%s798] sm:$0xff]
    %v1787 = vsel %vm274, %v1783, 0
    %1789 = vmatprep.subr.mxu0 0.0
    %1790 = vmatpush1.msra.mxu0 %v1269
    %1791 = vmatprep.subr.mxu0 0.0
    %1792 = vmatpush1.msra.mxu0 %v1270
    %1793 = vmatprep.subr.mxu0 0.0
    %1794 = vmatpush1.msra.mxu0 %v1271
    %1795 = vmatprep.subr.mxu0 0.0
    %1796 = vmatpush1.msra.mxu0 %v1272
    %1797 = vmatprep.subr.mxu0 0.0
    %1798 = vmatpush1.msra.mxu0 0.0
    %1799 = vmatprep.subr.mxu0 0.0
    %1800 = vmatpush1.msra.mxu0 0.0
    %1801 = vmatprep.subr.mxu0 0.0
    %1802 = vmatpush1.msra.mxu0 0.0
    %1803 = vmatprep.subr.mxu0 0.0
    %1804 = vmatpush1.msra.mxu0 0.0
    %1805 = vmatprep.subr.mxu0 0.0
    %1806 = vmatpush1.msra.mxu0 0.0
    %1807 = vmatprep.subr.mxu0 0.0
    %1808 = vmatpush1.msra.mxu0 0.0
    %1809 = vmatprep.subr.mxu0 0.0
    %1810 = vmatpush1.msra.mxu0 0.0
    %1811 = vmatprep.subr.mxu0 0.0
    %1812 = vmatpush1.msra.mxu0 0.0
    %1813 = vmatprep.subr.mxu0 0.0
    %1814 = vmatpush1.msra.mxu0 0.0
    %1815 = vmatprep.subr.mxu0 0.0
    %1816 = vmatpush1.msra.mxu0 0.0
    %1817 = vmatprep.subr.mxu0 0.0
    %1818 = vmatpush1.msra.mxu0 0.0
    %1819 = vmatprep.subr.mxu0 0.0
    %1820 = vmatpush1.msra.mxu0 0.0
    %1821 = vmatprep.subr.mxu0 0.0
    %1822 = vmatpush1.msra.mxu0 0.0
    %1823 = vmatprep.subr.mxu0 0.0
    %1824 = vmatpush1.msra.mxu0 0.0
    %1825 = vmatprep.subr.mxu0 0.0
    %1826 = vmatpush1.msra.mxu0 0.0
    %1827 = vmatprep.subr.mxu0 0.0
    %1828 = vmatpush1.msra.mxu0 0.0
    %1829 = vmatprep.subr.mxu0 0.0
    %1830 = vmatpush1.msra.mxu0 0.0
    %1831 = vmatprep.subr.mxu0 0.0
    %1832 = vmatpush1.msra.mxu0 0.0
    %1833 = vmatprep.subr.mxu0 0.0
    %1834 = vmatpush1.msra.mxu0 0.0
    %1835 = vmatprep.subr.mxu0 0.0
    %1836 = vmatpush1.msra.mxu0 0.0
    %1837 = vmatprep.subr.mxu0 0.0
    %1838 = vmatpush1.msra.mxu0 0.0
    %1839 = vmatprep.subr.mxu0 0.0
    %1840 = vmatpush1.msra.mxu0 0.0
    %1841 = vmatprep.subr.mxu0 0.0
    %1842 = vmatpush1.msra.mxu0 0.0
    %1843 = vmatprep.subr.mxu0 0.0
    %1844 = vmatpush1.msra.mxu0 0.0
    %1845 = vmatprep.subr.mxu0 0.0
    %1846 = vmatpush1.msra.mxu0 0.0
    %1847 = vmatprep.subr.mxu0 0.0
    %1848 = vmatpush1.msra.mxu0 0.0
    %1849 = vmatprep.subr.mxu0 0.0
    %1850 = vmatpush1.msra.mxu0 0.0
    %1851 = vmatprep.subr.mxu0 0.0
    %1852 = vmatpush1.msra.mxu0 0.0
    %1853 = vmatprep.mubr.f32.mxu0 0.0
    %1854 = vmatmul.mubr.f32.gmra.mrb[0].mxu0 %v1787
    %v1855 = vpop.f32.mrb[0].mxu0
    %v1856 = vadd.f32 0.0, %v1855
    %v1857 = vpop.f32.mrb[0].mxu0
    %1858 = vdwg.mxu0
    %v1859 = vadd.f32 %v1786, %v1856
    %v1860 = vxor.u32 %v1859, 2147483648
    %v1861 = vmul.f32 %v1860, 1.442695
    %v1862 = vpow.pop %v1861
    %v1863 = vadd.f32 %v1862, 1.0
    %v1864 = vrcp.pop %v1863
    %v1865 = vmul.f32 1.0, %v1864
    %v1866 = vtanh.pop %v1859
    %v1867 = vmul.f32 %v1865, %v1774
    %1869 = vrot.lane.b32.xlu0 %v1866, 32
    %v1870 = vpop.permute.xlu0 %1869
    %v1872 = vmul.f32 %v1865, %v1870
    %1874 = vrot.lane.b32.xlu0 %v1872, 32
    %v1875 = vpop.permute.xlu0 %1874
    %v1877 = vadd.f32 %v1867, %v1875
    %v1878 = vtanh.pop %v1877
    %1880 = vrot.lane.b32.xlu0 %v1878, 32
    %v1881 = vpop.permute.xlu0 %1880
    %v1883 = vmul.f32 %v1865, %v1881
    %1885 = vrot.lane.b32.xlu0 %v1883, 64
    %v1886 = vpop.permute.xlu0 %1885
    %1888 = vst.msk [vmem:[%s901] sm:$0xff] %vm274, %v1886
    %v1889 = vld [vmem:[%s903] sm:$0xff]
    %v1890 = vsel %vm274, %v1886, 0
    %1892 = vmatprep.subr.mxu0 0.0
    %1893 = vmatpush1.msra.mxu0 %v1269
    %1894 = vmatprep.subr.mxu0 0.0
    %1895 = vmatpush1.msra.mxu0 %v1270
    %1896 = vmatprep.subr.mxu0 0.0
    %1897 = vmatpush1.msra.mxu0 %v1271
    %1898 = vmatprep.subr.mxu0 0.0
    %1899 = vmatpush1.msra.mxu0 %v1272
    %1900 = vmatprep.subr.mxu0 0.0
    %1901 = vmatpush1.msra.mxu0 0.0
    %1902 = vmatprep.subr.mxu0 0.0
    %1903 = vmatpush1.msra.mxu0 0.0
    %1904 = vmatprep.subr.mxu0 0.0
    %1905 = vmatpush1.msra.mxu0 0.0
    %1906 = vmatprep.subr.mxu0 0.0
    %1907 = vmatpush1.msra.mxu0 0.0
    %1908 = vmatprep.subr.mxu0 0.0
    %1909 = vmatpush1.msra.mxu0 0.0
    %1910 = vmatprep.subr.mxu0 0.0
    %1911 = vmatpush1.msra.mxu0 0.0
    %1912 = vmatprep.subr.mxu0 0.0
    %1913 = vmatpush1.msra.mxu0 0.0
    %1914 = vmatprep.subr.mxu0 0.0
    %1915 = vmatpush1.msra.mxu0 0.0
    %1916 = vmatprep.subr.mxu0 0.0
    %1917 = vmatpush1.msra.mxu0 0.0
    %1918 = vmatprep.subr.mxu0 0.0
    %1919 = vmatpush1.msra.mxu0 0.0
    %1920 = vmatprep.subr.mxu0 0.0
    %1921 = vmatpush1.msra.mxu0 0.0
    %1922 = vmatprep.subr.mxu0 0.0
    %1923 = vmatpush1.msra.mxu0 0.0
    %1924 = vmatprep.subr.mxu0 0.0
    %1925 = vmatpush1.msra.mxu0 0.0
    %1926 = vmatprep.subr.mxu0 0.0
    %1927 = vmatpush1.msra.mxu0 0.0
    %1928 = vmatprep.subr.mxu0 0.0
    %1929 = vmatpush1.msra.mxu0 0.0
    %1930 = vmatprep.subr.mxu0 0.0
    %1931 = vmatpush1.msra.mxu0 0.0
    %1932 = vmatprep.subr.mxu0 0.0
    %1933 = vmatpush1.msra.mxu0 0.0
    %1934 = vmatprep.subr.mxu0 0.0
    %1935 = vmatpush1.msra.mxu0 0.0
    %1936 = vmatprep.subr.mxu0 0.0
    %1937 = vmatpush1.msra.mxu0 0.0
    %1938 = vmatprep.subr.mxu0 0.0
    %1939 = vmatpush1.msra.mxu0 0.0
    %1940 = vmatprep.subr.mxu0 0.0
    %1941 = vmatpush1.msra.mxu0 0.0
    %1942 = vmatprep.subr.mxu0 0.0
    %1943 = vmatpush1.msra.mxu0 0.0
    %1944 = vmatprep.subr.mxu0 0.0
    %1945 = vmatpush1.msra.mxu0 0.0
    %1946 = vmatprep.subr.mxu0 0.0
    %1947 = vmatpush1.msra.mxu0 0.0
    %1948 = vmatprep.subr.mxu0 0.0
    %1949 = vmatpush1.msra.mxu0 0.0
    %1950 = vmatprep.subr.mxu0 0.0
    %1951 = vmatpush1.msra.mxu0 0.0
    %1952 = vmatprep.subr.mxu0 0.0
    %1953 = vmatpush1.msra.mxu0 0.0
    %1954 = vmatprep.subr.mxu0 0.0
    %1955 = vmatpush1.msra.mxu0 0.0
    %1956 = vmatprep.mubr.f32.mxu0 0.0
    %1957 = vmatmul.mubr.f32.gmra.mrb[0].mxu0 %v1890
    %v1958 = vpop.f32.mrb[0].mxu0
    %v1959 = vadd.f32 0.0, %v1958
    %v1960 = vpop.f32.mrb[0].mxu0
    %1961 = vdwg.mxu0
    %v1962 = vadd.f32 %v1889, %v1959
    %v1963 = vxor.u32 %v1962, 2147483648
    %v1964 = vmul.f32 %v1963, 1.442695
    %v1965 = vpow.pop %v1964
    %v1966 = vadd.f32 %v1965, 1.0
    %v1967 = vrcp.pop %v1966
    %v1968 = vmul.f32 1.0, %v1967
    %v1969 = vtanh.pop %v1962
    %v1970 = vmul.f32 %v1968, %v1877
    %1972 = vrot.lane.b32.xlu0 %v1969, 32
    %v1973 = vpop.permute.xlu0 %1972
    %v1975 = vmul.f32 %v1968, %v1973
    %1977 = vrot.lane.b32.xlu0 %v1975, 32
    %v1978 = vpop.permute.xlu0 %1977
    %v1980 = vadd.f32 %v1970, %v1978
    %v1981 = vtanh.pop %v1980
    %1983 = vrot.lane.b32.xlu0 %v1981, 32
    %v1984 = vpop.permute.xlu0 %1983
    %v1986 = vmul.f32 %v1968, %v1984
    %1988 = vrot.lane.b32.xlu0 %v1986, 64
    %v1989 = vpop.permute.xlu0 %1988
    %1991 = vst.msk [vmem:[%s1006] sm:$0xff] %vm274, %v1989
    %v1992 = vld [vmem:[%s1008] sm:$0xff]
    %v1993 = vsel %vm274, %v1989, 0
    %1995 = vmatprep.subr.mxu0 0.0
    %1996 = vmatpush1.msra.mxu0 %v1269
    %1997 = vmatprep.subr.mxu0 0.0
    %1998 = vmatpush1.msra.mxu0 %v1270
    %1999 = vmatprep.subr.mxu0 0.0
    %2000 = vmatpush1.msra.mxu0 %v1271
    %2001 = vmatprep.subr.mxu0 0.0
    %2002 = vmatpush1.msra.mxu0 %v1272
    %2003 = vmatprep.subr.mxu0 0.0
    %2004 = vmatpush1.msra.mxu0 0.0
    %2005 = vmatprep.subr.mxu0 0.0
    %2006 = vmatpush1.msra.mxu0 0.0
    %2007 = vmatprep.subr.mxu0 0.0
    %2008 = vmatpush1.msra.mxu0 0.0
    %2009 = vmatprep.subr.mxu0 0.0
    %2010 = vmatpush1.msra.mxu0 0.0
    %2011 = vmatprep.subr.mxu0 0.0
    %2012 = vmatpush1.msra.mxu0 0.0
    %2013 = vmatprep.subr.mxu0 0.0
    %2014 = vmatpush1.msra.mxu0 0.0
    %2015 = vmatprep.subr.mxu0 0.0
    %2016 = vmatpush1.msra.mxu0 0.0
    %2017 = vmatprep.subr.mxu0 0.0
    %2018 = vmatpush1.msra.mxu0 0.0
    %2019 = vmatprep.subr.mxu0 0.0
    %2020 = vmatpush1.msra.mxu0 0.0
    %2021 = vmatprep.subr.mxu0 0.0
    %2022 = vmatpush1.msra.mxu0 0.0
    %2023 = vmatprep.subr.mxu0 0.0
    %2024 = vmatpush1.msra.mxu0 0.0
    %2025 = vmatprep.subr.mxu0 0.0
    %2026 = vmatpush1.msra.mxu0 0.0
    %2027 = vmatprep.subr.mxu0 0.0
    %2028 = vmatpush1.msra.mxu0 0.0
    %2029 = vmatprep.subr.mxu0 0.0
    %2030 = vmatpush1.msra.mxu0 0.0
    %2031 = vmatprep.subr.mxu0 0.0
    %2032 = vmatpush1.msra.mxu0 0.0
    %2033 = vmatprep.subr.mxu0 0.0
    %2034 = vmatpush1.msra.mxu0 0.0
    %2035 = vmatprep.subr.mxu0 0.0
    %2036 = vmatpush1.msra.mxu0 0.0
    %2037 = vmatprep.subr.mxu0 0.0
    %2038 = vmatpush1.msra.mxu0 0.0
    %2039 = vmatprep.subr.mxu0 0.0
    %2040 = vmatpush1.msra.mxu0 0.0
    %2041 = vmatprep.subr.mxu0 0.0
    %2042 = vmatpush1.msra.mxu0 0.0
    %2043 = vmatprep.subr.mxu0 0.0
    %2044 = vmatpush1.msra.mxu0 0.0
    %2045 = vmatprep.subr.mxu0 0.0
    %2046 = vmatpush1.msra.mxu0 0.0
    %2047 = vmatprep.subr.mxu0 0.0
    %2048 = vmatpush1.msra.mxu0 0.0
    %2049 = vmatprep.subr.mxu0 0.0
    %2050 = vmatpush1.msra.mxu0 0.0
    %2051 = vmatprep.subr.mxu0 0.0
    %2052 = vmatpush1.msra.mxu0 0.0
    %2053 = vmatprep.subr.mxu0 0.0
    %2054 = vmatpush1.msra.mxu0 0.0
    %2055 = vmatprep.subr.mxu0 0.0
    %2056 = vmatpush1.msra.mxu0 0.0
    %2057 = vmatprep.subr.mxu0 0.0
    %2058 = vmatpush1.msra.mxu0 0.0
    %2059 = vmatprep.mubr.f32.mxu0 0.0
    %2060 = vmatmul.mubr.f32.gmra.mrb[0].mxu0 %v1993
    %v2061 = vpop.f32.mrb[0].mxu0
    %v2062 = vadd.f32 0.0, %v2061
    %v2063 = vpop.f32.mrb[0].mxu0
    %2064 = vdwg.mxu0
    %v2065 = vadd.f32 %v1992, %v2062
    %v2066 = vxor.u32 %v2065, 2147483648
    %v2067 = vmul.f32 %v2066, 1.442695
    %v2068 = vpow.pop %v2067
    %v2069 = vadd.f32 %v2068, 1.0
    %v2070 = vrcp.pop %v2069
    %v2071 = vmul.f32 1.0, %v2070
    %v2072 = vtanh.pop %v2065
    %v2073 = vmul.f32 %v2071, %v1980
    %2075 = vrot.lane.b32.xlu0 %v2072, 32
    %v2076 = vpop.permute.xlu0 %2075
    %v2078 = vmul.f32 %v2071, %v2076
    %2080 = vrot.lane.b32.xlu0 %v2078, 32
    %v2081 = vpop.permute.xlu0 %2080
    %v2083 = vadd.f32 %v2073, %v2081
    %v2084 = vtanh.pop %v2083
    %2086 = vrot.lane.b32.xlu0 %v2084, 32
    %v2087 = vpop.permute.xlu0 %2086
    %v2089 = vmul.f32 %v2071, %v2087
    %2091 = vrot.lane.b32.xlu0 %v2089, 64
    %v2092 = vpop.permute.xlu0 %2091
    %2094 = vst.msk [vmem:[%s1111] sm:$0xff] %vm274, %v2092
    %v2095 = vld [vmem:[#allocation3] sm:$0xff]
    %v2096 = vld [vmem:[#allocation3 + $0x8] sm:$0xff]
    %v2097 = vld [vmem:[#allocation3 + $0x10] sm:$0xff]
    %v2098 = vld [vmem:[#allocation3 + $0x18] sm:$0xff]
    %v2099 = vld [vmem:[#allocation3 + $0x20] sm:$0xff]
    %v2100 = vld [vmem:[#allocation3 + $0x28] sm:$0xff]
    %v2101 = vld [vmem:[#allocation3 + $0x30] sm:$0xff]
    %v2102 = vld [vmem:[#allocation3 + $0x38] sm:$0xff]
    %v2103 = vld [vmem:[#allocation6] sm:$0xff]
    %v2104 = vld [vmem:[#allocation6 + $0x8] sm:$0xff]
    %v2105 = vld [vmem:[#allocation6 + $0x10] sm:$0xff]
    %v2106 = vld [vmem:[#allocation6 + $0x18] sm:$0xff]
    %v2107 = vld [vmem:[%s10] sm:$0x1]
    %v2109 = vlaneseq
    %v2110 = vshrl.u32 %v2109, 7
    %v2111 = vsub.s32 0, %v2110
    %v2112 = vrot.slane %v2107, %v2111
    %v2115 = vsel %vm274, %v2095, 0
    %v2118 = vsel %vm274, %v2096, 0
    %v2121 = vsel %vm274, %v2097, 0
    %v2124 = vsel %vm274, %v2098, 0
    %v2127 = vsel %vm274, %v2099, 0
    %v2130 = vsel %vm274, %v2100, 0
    %v2133 = vsel %vm274, %v2101, 0
    %v2136 = vsel %vm274, %v2102, 0
    %2138 = vmatprep.subr.mxu0 0.0
    %2139 = vmatpush1.msra.mxu0 %v2103
    %2140 = vmatprep.subr.mxu0 0.0
    %2141 = vmatpush1.msra.mxu0 %v2104
    %2142 = vmatprep.subr.mxu0 0.0
    %2143 = vmatpush1.msra.mxu0 %v2105
    %2144 = vmatprep.subr.mxu0 0.0
    %2145 = vmatpush1.msra.mxu0 %v2106
    %2146 = vmatprep.subr.mxu0 0.0
    %2147 = vmatpush1.msra.mxu0 0.0
    %2148 = vmatprep.subr.mxu0 0.0
    %2149 = vmatpush1.msra.mxu0 0.0
    %2150 = vmatprep.subr.mxu0 0.0
    %2151 = vmatpush1.msra.mxu0 0.0
    %2152 = vmatprep.subr.mxu0 0.0
    %2153 = vmatpush1.msra.mxu0 0.0
    %2154 = vmatprep.subr.mxu0 0.0
    %2155 = vmatpush1.msra.mxu0 0.0
    %2156 = vmatprep.subr.mxu0 0.0
    %2157 = vmatpush1.msra.mxu0 0.0
    %2158 = vmatprep.subr.mxu0 0.0
    %2159 = vmatpush1.msra.mxu0 0.0
    %2160 = vmatprep.subr.mxu0 0.0
    %2161 = vmatpush1.msra.mxu0 0.0
    %2162 = vmatprep.subr.mxu0 0.0
    %2163 = vmatpush1.msra.mxu0 0.0
    %2164 = vmatprep.subr.mxu0 0.0
    %2165 = vmatpush1.msra.mxu0 0.0
    %2166 = vmatprep.subr.mxu0 0.0
    %2167 = vmatpush1.msra.mxu0 0.0
    %2168 = vmatprep.subr.mxu0 0.0
    %2169 = vmatpush1.msra.mxu0 0.0
    %2170 = vmatprep.subr.mxu0 0.0
    %2171 = vmatpush1.msra.mxu0 0.0
    %2172 = vmatprep.subr.mxu0 0.0
    %2173 = vmatpush1.msra.mxu0 0.0
    %2174 = vmatprep.subr.mxu0 0.0
    %2175 = vmatpush1.msra.mxu0 0.0
    %2176 = vmatprep.subr.mxu0 0.0
    %2177 = vmatpush1.msra.mxu0 0.0
    %2178 = vmatprep.subr.mxu0 0.0
    %2179 = vmatpush1.msra.mxu0 0.0
    %2180 = vmatprep.subr.mxu0 0.0
    %2181 = vmatpush1.msra.mxu0 0.0
    %2182 = vmatprep.subr.mxu0 0.0
    %2183 = vmatpush1.msra.mxu0 0.0
    %2184 = vmatprep.subr.mxu0 0.0
    %2185 = vmatpush1.msra.mxu0 0.0
    %2186 = vmatprep.subr.mxu0 0.0
    %2187 = vmatpush1.msra.mxu0 0.0
    %2188 = vmatprep.subr.mxu0 0.0
    %2189 = vmatpush1.msra.mxu0 0.0
    %2190 = vmatprep.subr.mxu0 0.0
    %2191 = vmatpush1.msra.mxu0 0.0
    %2192 = vmatprep.subr.mxu0 0.0
    %2193 = vmatpush1.msra.mxu0 0.0
    %2194 = vmatprep.subr.mxu0 0.0
    %2195 = vmatpush1.msra.mxu0 0.0
    %2196 = vmatprep.subr.mxu0 0.0
    %2197 = vmatpush1.msra.mxu0 0.0
    %2198 = vmatprep.subr.mxu0 0.0
    %2199 = vmatpush1.msra.mxu0 0.0
    %2200 = vmatprep.subr.mxu0 0.0
    %2201 = vmatpush1.msra.mxu0 0.0
    %2202 = vmatprep.mubr.f32.mxu0 0.0
    %2203 = vmatmul.mubr.f32.gmra.mrb[0].mxu0 %v2115
    %v2204 = vpop.f32.mrb[0].mxu0
    %v2205 = vadd.f32 %v2112, %v2204
    %v2206 = vpop.f32.mrb[0].mxu0
    %2207 = vmatprep.mubr.f32.mxu0 0.0
    %2208 = vmatmul.mubr.f32.gmra.mrb[0].mxu0 %v2118
    %v2209 = vpop.f32.mrb[0].mxu0
    %v2210 = vadd.f32 %v2112, %v2209
    %v2211 = vpop.f32.mrb[0].mxu0
    %2212 = vmatprep.mubr.f32.mxu0 0.0
    %2213 = vmatmul.mubr.f32.gmra.mrb[0].mxu0 %v2121
    %v2214 = vpop.f32.mrb[0].mxu0
    %v2215 = vadd.f32 %v2112, %v2214
    %v2216 = vpop.f32.mrb[0].mxu0
    %2217 = vmatprep.mubr.f32.mxu0 0.0
    %2218 = vmatmul.mubr.f32.gmra.mrb[0].mxu0 %v2124
    %v2219 = vpop.f32.mrb[0].mxu0
    %v2220 = vadd.f32 %v2112, %v2219
    %v2221 = vpop.f32.mrb[0].mxu0
    %2222 = vmatprep.mubr.f32.mxu0 0.0
    %2223 = vmatmul.mubr.f32.gmra.mrb[0].mxu0 %v2127
    %v2224 = vpop.f32.mrb[0].mxu0
    %v2225 = vadd.f32 %v2112, %v2224
    %v2226 = vpop.f32.mrb[0].mxu0
    %2227 = vmatprep.mubr.f32.mxu0 0.0
    %2228 = vmatmul.mubr.f32.gmra.mrb[0].mxu0 %v2130
    %v2229 = vpop.f32.mrb[0].mxu0
    %v2230 = vadd.f32 %v2112, %v2229
    %v2231 = vpop.f32.mrb[0].mxu0
    %2232 = vmatprep.mubr.f32.mxu0 0.0
    %2233 = vmatmul.mubr.f32.gmra.mrb[0].mxu0 %v2133
    %v2234 = vpop.f32.mrb[0].mxu0
    %v2235 = vadd.f32 %v2112, %v2234
    %v2236 = vpop.f32.mrb[0].mxu0
    %2237 = vmatprep.mubr.f32.mxu0 0.0
    %2238 = vmatmul.mubr.f32.gmra.mrb[0].mxu0 %v2136
    %v2239 = vpop.f32.mrb[0].mxu0
    %v2240 = vadd.f32 %v2112, %v2239
    %v2241 = vpop.f32.mrb[0].mxu0
    %2242 = vdwg.mxu0
    %2243 = vst [vmem:[#allocation2] sm:$0xff] %v2205
    %2244 = vst [vmem:[#allocation2 + $0x8] sm:$0xff] %v2210
    %2245 = vst [vmem:[#allocation2 + $0x10] sm:$0xff] %v2215
    %2246 = vst [vmem:[#allocation2 + $0x18] sm:$0xff] %v2220
    %2247 = vst [vmem:[#allocation2 + $0x20] sm:$0xff] %v2225
    %2248 = vst [vmem:[#allocation2 + $0x28] sm:$0xff] %v2230
    %2249 = vst [vmem:[#allocation2 + $0x30] sm:$0xff] %v2235
    %2250 = vst [vmem:[#allocation2 + $0x38] sm:$0xff] %v2240
    %v2251 = vld [vmem:[#allocation8] sm:$0xff]
    %v2252 = vld [vmem:[#allocation8 + $0x8] sm:$0xff]
    %v2253 = vld [vmem:[#allocation8 + $0x10] sm:$0xff]
    %v2254 = vld [vmem:[#allocation8 + $0x18] sm:$0xff]
    %v2255 = vld [vmem:[#allocation2] sm:$0xff]
    %2256 = vmatprep.subr.mxu0 0.0
    %2257 = vmatpush1.msra.mxu0 %v2251
    %2258 = vmatprep.subr.mxu0 0.0
    %2259 = vmatpush1.msra.mxu0 %v2252
    %2260 = vmatprep.subr.mxu0 0.0
    %2261 = vmatpush1.msra.mxu0 %v2253
    %2262 = vmatprep.subr.mxu0 0.0
    %2263 = vmatpush1.msra.mxu0 %v2254
    %2264 = vmatprep.subr.mxu0 0.0
    %2265 = vmatpush1.msra.mxu0 0.0
    %2266 = vmatprep.subr.mxu0 0.0
    %2267 = vmatpush1.msra.mxu0 0.0
    %2268 = vmatprep.subr.mxu0 0.0
    %2269 = vmatpush1.msra.mxu0 0.0
    %2270 = vmatprep.subr.mxu0 0.0
    %2271 = vmatpush1.msra.mxu0 0.0
    %2272 = vmatprep.subr.mxu0 0.0
    %2273 = vmatpush1.msra.mxu0 0.0
    %2274 = vmatprep.subr.mxu0 0.0
    %2275 = vmatpush1.msra.mxu0 0.0
    %2276 = vmatprep.subr.mxu0 0.0
    %2277 = vmatpush1.msra.mxu0 0.0
    %2278 = vmatprep.subr.mxu0 0.0
    %2279 = vmatpush1.msra.mxu0 0.0
    %2280 = vmatprep.subr.mxu0 0.0
    %2281 = vmatpush1.msra.mxu0 0.0
    %2282 = vmatprep.subr.mxu0 0.0
    %2283 = vmatpush1.msra.mxu0 0.0
    %2284 = vmatprep.subr.mxu0 0.0
    %2285 = vmatpush1.msra.mxu0 0.0
    %2286 = vmatprep.subr.mxu0 0.0
    %2287 = vmatpush1.msra.mxu0 0.0
    %2288 = vmatprep.subr.mxu0 0.0
    %2289 = vmatpush1.msra.mxu0 0.0
    %2290 = vmatprep.subr.mxu0 0.0
    %2291 = vmatpush1.msra.mxu0 0.0
    %2292 = vmatprep.subr.mxu0 0.0
    %2293 = vmatpush1.msra.mxu0 0.0
    %2294 = vmatprep.subr.mxu0 0.0
    %2295 = vmatpush1.msra.mxu0 0.0
    %2296 = vmatprep.subr.mxu0 0.0
    %2297 = vmatpush1.msra.mxu0 0.0
    %2298 = vmatprep.subr.mxu0 0.0
    %2299 = vmatpush1.msra.mxu0 0.0
    %2300 = vmatprep.subr.mxu0 0.0
    %2301 = vmatpush1.msra.mxu0 0.0
    %2302 = vmatprep.subr.mxu0 0.0
    %2303 = vmatpush1.msra.mxu0 0.0
    %2304 = vmatprep.subr.mxu0 0.0
    %2305 = vmatpush1.msra.mxu0 0.0
    %2306 = vmatprep.subr.mxu0 0.0
    %2307 = vmatpush1.msra.mxu0 0.0
    %2308 = vmatprep.subr.mxu0 0.0
    %2309 = vmatpush1.msra.mxu0 0.0
    %2310 = vmatprep.subr.mxu0 0.0
    %2311 = vmatpush1.msra.mxu0 0.0
    %2312 = vmatprep.subr.mxu0 0.0
    %2313 = vmatpush1.msra.mxu0 0.0
    %2314 = vmatprep.subr.mxu0 0.0
    %2315 = vmatpush1.msra.mxu0 0.0
    %2316 = vmatprep.subr.mxu0 0.0
    %2317 = vmatpush1.msra.mxu0 0.0
    %2318 = vmatprep.subr.mxu0 0.0
    %2319 = vmatpush1.msra.mxu0 0.0
    %2320 = vmatprep.mubr.f32.mxu0 0.0
    %2321 = vmatmul.mubr.f32.gmra.mrb[0].mxu0 %v276
    %v2322 = vpop.f32.mrb[0].mxu0
    %v2323 = vadd.f32 0.0, %v2322
    %v2324 = vpop.f32.mrb[0].mxu0
    %2325 = vdwg.mxu0
    %v2326 = vadd.f32 %v2255, %v2323
    %v2327 = vxor.u32 %v2326, 2147483648
    %v2328 = vmul.f32 %v2327, 1.442695
    %v2329 = vpow.pop %v2328
    %v2330 = vadd.f32 %v2329, 1.0
    %v2331 = vrcp.pop %v2330
    %v2332 = vmul.f32 1.0, %v2331
    %v2333 = vtanh.pop %v2326
    %v2334 = vmul.f32 %v2332, 0.0
    %2336 = vrot.lane.b32.xlu0 %v2333, 32
    %v2337 = vpop.permute.xlu0 %2336
    %v2339 = vmul.f32 %v2332, %v2337
    %2341 = vrot.lane.b32.xlu0 %v2339, 32
    %v2342 = vpop.permute.xlu0 %2341
    %v2344 = vadd.f32 %v2334, %v2342
    %v2345 = vtanh.pop %v2344
    %2347 = vrot.lane.b32.xlu0 %v2345, 32
    %v2348 = vpop.permute.xlu0 %2347
    %v2350 = vmul.f32 %v2332, %v2348
    %vm2351 = vcmp.gt.s32.totalorder %v110, 0
    %v2352 = vsel %vm2351, 1, 0
    %2353 = vset.pattern.permute.xlu0 0
    %2354 = vperm.xlu0 %2353, %v2352
    %v2355 = vpop.permute.xlu0 %2354
    %vm2356 = vcmp.eq.s32.totalorder %v2355, 1
    %v2357 = vsel %vm2356, %v2350, 0.0
    %2359 = vrot.lane.b32.xlu0 %v2357, 64
    %v2360 = vpop.permute.xlu0 %2359
    %2362 = vst.msk [vmem:[#allocation3] sm:$0xff] %vm274, %v2360
    %v2363 = vld [vmem:[%s378] sm:$0xff]
    %2365 = vrot.lane.b32.xlu0 %v2350, 64
    %v2366 = vpop.permute.xlu0 %2365
    %v2367 = vsel %vm274, %v2366, 0
    %2369 = vmatprep.subr.mxu0 0.0
    %2370 = vmatpush1.msra.mxu0 %v2251
    %2371 = vmatprep.subr.mxu0 0.0
    %2372 = vmatpush1.msra.mxu0 %v2252
    %2373 = vmatprep.subr.mxu0 0.0
    %2374 = vmatpush1.msra.mxu0 %v2253
    %2375 = vmatprep.subr.mxu0 0.0
    %2376 = vmatpush1.msra.mxu0 %v2254
    %2377 = vmatprep.subr.mxu0 0.0
    %2378 = vmatpush1.msra.mxu0 0.0
    %2379 = vmatprep.subr.mxu0 0.0
    %2380 = vmatpush1.msra.mxu0 0.0
    %2381 = vmatprep.subr.mxu0 0.0
    %2382 = vmatpush1.msra.mxu0 0.0
    %2383 = vmatprep.subr.mxu0 0.0
    %2384 = vmatpush1.msra.mxu0 0.0
    %2385 = vmatprep.subr.mxu0 0.0
    %2386 = vmatpush1.msra.mxu0 0.0
    %2387 = vmatprep.subr.mxu0 0.0
    %2388 = vmatpush1.msra.mxu0 0.0
    %2389 = vmatprep.subr.mxu0 0.0
    %2390 = vmatpush1.msra.mxu0 0.0
    %2391 = vmatprep.subr.mxu0 0.0
    %2392 = vmatpush1.msra.mxu0 0.0
    %2393 = vmatprep.subr.mxu0 0.0
    %2394 = vmatpush1.msra.mxu0 0.0
    %2395 = vmatprep.subr.mxu0 0.0
    %2396 = vmatpush1.msra.mxu0 0.0
    %2397 = vmatprep.subr.mxu0 0.0
    %2398 = vmatpush1.msra.mxu0 0.0
    %2399 = vmatprep.subr.mxu0 0.0
    %2400 = vmatpush1.msra.mxu0 0.0
    %2401 = vmatprep.subr.mxu0 0.0
    %2402 = vmatpush1.msra.mxu0 0.0
    %2403 = vmatprep.subr.mxu0 0.0
    %2404 = vmatpush1.msra.mxu0 0.0
    %2405 = vmatprep.subr.mxu0 0.0
    %2406 = vmatpush1.msra.mxu0 0.0
    %2407 = vmatprep.subr.mxu0 0.0
    %2408 = vmatpush1.msra.mxu0 0.0
    %2409 = vmatprep.subr.mxu0 0.0
    %2410 = vmatpush1.msra.mxu0 0.0
    %2411 = vmatprep.subr.mxu0 0.0
    %2412 = vmatpush1.msra.mxu0 0.0
    %2413 = vmatprep.subr.mxu0 0.0
    %2414 = vmatpush1.msra.mxu0 0.0
    %2415 = vmatprep.subr.mxu0 0.0
    %2416 = vmatpush1.msra.mxu0 0.0
    %2417 = vmatprep.subr.mxu0 0.0
    %2418 = vmatpush1.msra.mxu0 0.0
    %2419 = vmatprep.subr.mxu0 0.0
    %2420 = vmatpush1.msra.mxu0 0.0
    %2421 = vmatprep.subr.mxu0 0.0
    %2422 = vmatpush1.msra.mxu0 0.0
    %2423 = vmatprep.subr.mxu0 0.0
    %2424 = vmatpush1.msra.mxu0 0.0
    %2425 = vmatprep.subr.mxu0 0.0
    %2426 = vmatpush1.msra.mxu0 0.0
    %2427 = vmatprep.subr.mxu0 0.0
    %2428 = vmatpush1.msra.mxu0 0.0
    %2429 = vmatprep.subr.mxu0 0.0
    %2430 = vmatpush1.msra.mxu0 0.0
    %2431 = vmatprep.subr.mxu0 0.0
    %2432 = vmatpush1.msra.mxu0 0.0
    %2433 = vmatprep.mubr.f32.mxu0 0.0
    %2434 = vmatmul.mubr.f32.gmra.mrb[0].mxu0 %v2367
    %v2435 = vpop.f32.mrb[0].mxu0
    %v2436 = vadd.f32 0.0, %v2435
    %v2437 = vpop.f32.mrb[0].mxu0
    %2438 = vdwg.mxu0
    %v2439 = vadd.f32 %v2363, %v2436
    %v2440 = vxor.u32 %v2439, 2147483648
    %v2441 = vmul.f32 %v2440, 1.442695
    %v2442 = vpow.pop %v2441
    %v2443 = vadd.f32 %v2442, 1.0
    %v2444 = vrcp.pop %v2443
    %v2445 = vmul.f32 1.0, %v2444
    %v2446 = vtanh.pop %v2439
    %v2447 = vmul.f32 %v2445, %v2344
    %2449 = vrot.lane.b32.xlu0 %v2446, 32
    %v2450 = vpop.permute.xlu0 %2449
    %v2452 = vmul.f32 %v2445, %v2450
    %2454 = vrot.lane.b32.xlu0 %v2452, 32
    %v2455 = vpop.permute.xlu0 %2454
    %v2457 = vadd.f32 %v2447, %v2455
    %v2458 = vtanh.pop %v2457
    %2460 = vrot.lane.b32.xlu0 %v2458, 32
    %v2461 = vpop.permute.xlu0 %2460
    %v2463 = vmul.f32 %v2445, %v2461
    %vm2464 = vcmp.gt.s32.totalorder %v110, 1
    %v2465 = vsel %vm2464, 1, 0
    %2466 = vset.pattern.permute.xlu0 0
    %2467 = vperm.xlu0 %2466, %v2465
    %v2468 = vpop.permute.xlu0 %2467
    %vm2469 = vcmp.eq.s32.totalorder %v2468, 1
    %v2470 = vsel %vm2469, %v2463, 0.0
    %2472 = vrot.lane.b32.xlu0 %v2470, 64
    %v2473 = vpop.permute.xlu0 %2472
    %2475 = vst.msk [vmem:[%s481] sm:$0xff] %vm274, %v2473
    %v2476 = vld [vmem:[%s483] sm:$0xff]
    %2478 = vrot.lane.b32.xlu0 %v2463, 64
    %v2479 = vpop.permute.xlu0 %2478
    %v2480 = vsel %vm274, %v2479, 0
    %2482 = vmatprep.subr.mxu0 0.0
    %2483 = vmatpush1.msra.mxu0 %v2251
    %2484 = vmatprep.subr.mxu0 0.0
    %2485 = vmatpush1.msra.mxu0 %v2252
    %2486 = vmatprep.subr.mxu0 0.0
    %2487 = vmatpush1.msra.mxu0 %v2253
    %2488 = vmatprep.subr.mxu0 0.0
    %2489 = vmatpush1.msra.mxu0 %v2254
    %2490 = vmatprep.subr.mxu0 0.0
    %2491 = vmatpush1.msra.mxu0 0.0
    %2492 = vmatprep.subr.mxu0 0.0
    %2493 = vmatpush1.msra.mxu0 0.0
    %2494 = vmatprep.subr.mxu0 0.0
    %2495 = vmatpush1.msra.mxu0 0.0
    %2496 = vmatprep.subr.mxu0 0.0
    %2497 = vmatpush1.msra.mxu0 0.0
    %2498 = vmatprep.subr.mxu0 0.0
    %2499 = vmatpush1.msra.mxu0 0.0
    %2500 = vmatprep.subr.mxu0 0.0
    %2501 = vmatpush1.msra.mxu0 0.0
    %2502 = vmatprep.subr.mxu0 0.0
    %2503 = vmatpush1.msra.mxu0 0.0
    %2504 = vmatprep.subr.mxu0 0.0
    %2505 = vmatpush1.msra.mxu0 0.0
    %2506 = vmatprep.subr.mxu0 0.0
    %2507 = vmatpush1.msra.mxu0 0.0
    %2508 = vmatprep.subr.mxu0 0.0
    %2509 = vmatpush1.msra.mxu0 0.0
    %2510 = vmatprep.subr.mxu0 0.0
    %2511 = vmatpush1.msra.mxu0 0.0
    %2512 = vmatprep.subr.mxu0 0.0
    %2513 = vmatpush1.msra.mxu0 0.0
    %2514 = vmatprep.subr.mxu0 0.0
    %2515 = vmatpush1.msra.mxu0 0.0
    %2516 = vmatprep.subr.mxu0 0.0
    %2517 = vmatpush1.msra.mxu0 0.0
    %2518 = vmatprep.subr.mxu0 0.0
    %2519 = vmatpush1.msra.mxu0 0.0
    %2520 = vmatprep.subr.mxu0 0.0
    %2521 = vmatpush1.msra.mxu0 0.0
    %2522 = vmatprep.subr.mxu0 0.0
    %2523 = vmatpush1.msra.mxu0 0.0
    %2524 = vmatprep.subr.mxu0 0.0
    %2525 = vmatpush1.msra.mxu0 0.0
    %2526 = vmatprep.subr.mxu0 0.0
    %2527 = vmatpush1.msra.mxu0 0.0
    %2528 = vmatprep.subr.mxu0 0.0
    %2529 = vmatpush1.msra.mxu0 0.0
    %2530 = vmatprep.subr.mxu0 0.0
    %2531 = vmatpush1.msra.mxu0 0.0
    %2532 = vmatprep.subr.mxu0 0.0
    %2533 = vmatpush1.msra.mxu0 0.0
    %2534 = vmatprep.subr.mxu0 0.0
    %2535 = vmatpush1.msra.mxu0 0.0
    %2536 = vmatprep.subr.mxu0 0.0
    %2537 = vmatpush1.msra.mxu0 0.0
    %2538 = vmatprep.subr.mxu0 0.0
    %2539 = vmatpush1.msra.mxu0 0.0
    %2540 = vmatprep.subr.mxu0 0.0
    %2541 = vmatpush1.msra.mxu0 0.0
    %2542 = vmatprep.subr.mxu0 0.0
    %2543 = vmatpush1.msra.mxu0 0.0
    %2544 = vmatprep.subr.mxu0 0.0
    %2545 = vmatpush1.msra.mxu0 0.0
    %2546 = vmatprep.mubr.f32.mxu0 0.0
    %2547 = vmatmul.mubr.f32.gmra.mrb[0].mxu0 %v2480
    %v2548 = vpop.f32.mrb[0].mxu0
    %v2549 = vadd.f32 0.0, %v2548
    %v2550 = vpop.f32.mrb[0].mxu0
    %2551 = vdwg.mxu0
    %v2552 = vadd.f32 %v2476, %v2549
    %v2553 = vxor.u32 %v2552, 2147483648
    %v2554 = vmul.f32 %v2553, 1.442695
    %v2555 = vpow.pop %v2554
    %v2556 = vadd.f32 %v2555, 1.0
    %v2557 = vrcp.pop %v2556
    %v2558 = vmul.f32 1.0, %v2557
    %v2559 = vtanh.pop %v2552
    %v2560 = vmul.f32 %v2558, %v2457
    %2562 = vrot.lane.b32.xlu0 %v2559, 32
    %v2563 = vpop.permute.xlu0 %2562
    %v2565 = vmul.f32 %v2558, %v2563
    %2567 = vrot.lane.b32.xlu0 %v2565, 32
    %v2568 = vpop.permute.xlu0 %2567
    %v2570 = vadd.f32 %v2560, %v2568
    %v2571 = vtanh.pop %v2570
    %2573 = vrot.lane.b32.xlu0 %v2571, 32
    %v2574 = vpop.permute.xlu0 %2573
    %v2576 = vmul.f32 %v2558, %v2574
    %vm2577 = vcmp.gt.s32.totalorder %v110, 2
    %v2578 = vsel %vm2577, 1, 0
    %2579 = vset.pattern.permute.xlu0 0
    %2580 = vperm.xlu0 %2579, %v2578
    %v2581 = vpop.permute.xlu0 %2580
    %vm2582 = vcmp.eq.s32.totalorder %v2581, 1
    %v2583 = vsel %vm2582, %v2576, 0.0
    %2585 = vrot.lane.b32.xlu0 %v2583, 64
    %v2586 = vpop.permute.xlu0 %2585
    %2588 = vst.msk [vmem:[%s586] sm:$0xff] %vm274, %v2586
    %v2589 = vld [vmem:[%s588] sm:$0xff]
    %2591 = vrot.lane.b32.xlu0 %v2576, 64
    %v2592 = vpop.permute.xlu0 %2591
    %v2593 = vsel %vm274, %v2592, 0
    %2595 = vmatprep.subr.mxu0 0.0
    %2596 = vmatpush1.msra.mxu0 %v2251
    %2597 = vmatprep.subr.mxu0 0.0
    %2598 = vmatpush1.msra.mxu0 %v2252
    %2599 = vmatprep.subr.mxu0 0.0
    %2600 = vmatpush1.msra.mxu0 %v2253
    %2601 = vmatprep.subr.mxu0 0.0
    %2602 = vmatpush1.msra.mxu0 %v2254
    %2603 = vmatprep.subr.mxu0 0.0
    %2604 = vmatpush1.msra.mxu0 0.0
    %2605 = vmatprep.subr.mxu0 0.0
    %2606 = vmatpush1.msra.mxu0 0.0
    %2607 = vmatprep.subr.mxu0 0.0
    %2608 = vmatpush1.msra.mxu0 0.0
    %2609 = vmatprep.subr.mxu0 0.0
    %2610 = vmatpush1.msra.mxu0 0.0
    %2611 = vmatprep.subr.mxu0 0.0
    %2612 = vmatpush1.msra.mxu0 0.0
    %2613 = vmatprep.subr.mxu0 0.0
    %2614 = vmatpush1.msra.mxu0 0.0
    %2615 = vmatprep.subr.mxu0 0.0
    %2616 = vmatpush1.msra.mxu0 0.0
    %2617 = vmatprep.subr.mxu0 0.0
    %2618 = vmatpush1.msra.mxu0 0.0
    %2619 = vmatprep.subr.mxu0 0.0
    %2620 = vmatpush1.msra.mxu0 0.0
    %2621 = vmatprep.subr.mxu0 0.0
    %2622 = vmatpush1.msra.mxu0 0.0
    %2623 = vmatprep.subr.mxu0 0.0
    %2624 = vmatpush1.msra.mxu0 0.0
    %2625 = vmatprep.subr.mxu0 0.0
    %2626 = vmatpush1.msra.mxu0 0.0
    %2627 = vmatprep.subr.mxu0 0.0
    %2628 = vmatpush1.msra.mxu0 0.0
    %2629 = vmatprep.subr.mxu0 0.0
    %2630 = vmatpush1.msra.mxu0 0.0
    %2631 = vmatprep.subr.mxu0 0.0
    %2632 = vmatpush1.msra.mxu0 0.0
    %2633 = vmatprep.subr.mxu0 0.0
    %2634 = vmatpush1.msra.mxu0 0.0
    %2635 = vmatprep.subr.mxu0 0.0
    %2636 = vmatpush1.msra.mxu0 0.0
    %2637 = vmatprep.subr.mxu0 0.0
    %2638 = vmatpush1.msra.mxu0 0.0
    %2639 = vmatprep.subr.mxu0 0.0
    %2640 = vmatpush1.msra.mxu0 0.0
    %2641 = vmatprep.subr.mxu0 0.0
    %2642 = vmatpush1.msra.mxu0 0.0
    %2643 = vmatprep.subr.mxu0 0.0
    %2644 = vmatpush1.msra.mxu0 0.0
    %2645 = vmatprep.subr.mxu0 0.0
    %2646 = vmatpush1.msra.mxu0 0.0
    %2647 = vmatprep.subr.mxu0 0.0
    %2648 = vmatpush1.msra.mxu0 0.0
    %2649 = vmatprep.subr.mxu0 0.0
    %2650 = vmatpush1.msra.mxu0 0.0
    %2651 = vmatprep.subr.mxu0 0.0
    %2652 = vmatpush1.msra.mxu0 0.0
    %2653 = vmatprep.subr.mxu0 0.0
    %2654 = vmatpush1.msra.mxu0 0.0
    %2655 = vmatprep.subr.mxu0 0.0
    %2656 = vmatpush1.msra.mxu0 0.0
    %2657 = vmatprep.subr.mxu0 0.0
    %2658 = vmatpush1.msra.mxu0 0.0
    %2659 = vmatprep.mubr.f32.mxu0 0.0
    %2660 = vmatmul.mubr.f32.gmra.mrb[0].mxu0 %v2593
    %v2661 = vpop.f32.mrb[0].mxu0
    %v2662 = vadd.f32 0.0, %v2661
    %v2663 = vpop.f32.mrb[0].mxu0
    %2664 = vdwg.mxu0
    %v2665 = vadd.f32 %v2589, %v2662
    %v2666 = vxor.u32 %v2665, 2147483648
    %v2667 = vmul.f32 %v2666, 1.442695
    %v2668 = vpow.pop %v2667
    %v2669 = vadd.f32 %v2668, 1.0
    %v2670 = vrcp.pop %v2669
    %v2671 = vmul.f32 1.0, %v2670
    %v2672 = vtanh.pop %v2665
    %v2673 = vmul.f32 %v2671, %v2570
    %2675 = vrot.lane.b32.xlu0 %v2672, 32
    %v2676 = vpop.permute.xlu0 %2675
    %v2678 = vmul.f32 %v2671, %v2676
    %2680 = vrot.lane.b32.xlu0 %v2678, 32
    %v2681 = vpop.permute.xlu0 %2680
    %v2683 = vadd.f32 %v2673, %v2681
    %v2684 = vtanh.pop %v2683
    %2686 = vrot.lane.b32.xlu0 %v2684, 32
    %v2687 = vpop.permute.xlu0 %2686
    %v2689 = vmul.f32 %v2671, %v2687
    %vm2690 = vcmp.gt.s32.totalorder %v110, 3
    %v2691 = vsel %vm2690, 1, 0
    %2692 = vset.pattern.permute.xlu0 0
    %2693 = vperm.xlu0 %2692, %v2691
    %v2694 = vpop.permute.xlu0 %2693
    %vm2695 = vcmp.eq.s32.totalorder %v2694, 1
    %v2696 = vsel %vm2695, %v2689, 0.0
    %2698 = vrot.lane.b32.xlu0 %v2696, 64
    %v2699 = vpop.permute.xlu0 %2698
    %2701 = vst.msk [vmem:[%s691] sm:$0xff] %vm274, %v2699
    %v2702 = vld [vmem:[%s693] sm:$0xff]
    %2704 = vrot.lane.b32.xlu0 %v2689, 64
    %v2705 = vpop.permute.xlu0 %2704
    %v2706 = vsel %vm274, %v2705, 0
    %2708 = vmatprep.subr.mxu0 0.0
    %2709 = vmatpush1.msra.mxu0 %v2251
    %2710 = vmatprep.subr.mxu0 0.0
    %2711 = vmatpush1.msra.mxu0 %v2252
    %2712 = vmatprep.subr.mxu0 0.0
    %2713 = vmatpush1.msra.mxu0 %v2253
    %2714 = vmatprep.subr.mxu0 0.0
    %2715 = vmatpush1.msra.mxu0 %v2254
    %2716 = vmatprep.subr.mxu0 0.0
    %2717 = vmatpush1.msra.mxu0 0.0
    %2718 = vmatprep.subr.mxu0 0.0
    %2719 = vmatpush1.msra.mxu0 0.0
    %2720 = vmatprep.subr.mxu0 0.0
    %2721 = vmatpush1.msra.mxu0 0.0
    %2722 = vmatprep.subr.mxu0 0.0
    %2723 = vmatpush1.msra.mxu0 0.0
    %2724 = vmatprep.subr.mxu0 0.0
    %2725 = vmatpush1.msra.mxu0 0.0
    %2726 = vmatprep.subr.mxu0 0.0
    %2727 = vmatpush1.msra.mxu0 0.0
    %2728 = vmatprep.subr.mxu0 0.0
    %2729 = vmatpush1.msra.mxu0 0.0
    %2730 = vmatprep.subr.mxu0 0.0
    %2731 = vmatpush1.msra.mxu0 0.0
    %2732 = vmatprep.subr.mxu0 0.0
    %2733 = vmatpush1.msra.mxu0 0.0
    %2734 = vmatprep.subr.mxu0 0.0
    %2735 = vmatpush1.msra.mxu0 0.0
    %2736 = vmatprep.subr.mxu0 0.0
    %2737 = vmatpush1.msra.mxu0 0.0
    %2738 = vmatprep.subr.mxu0 0.0
    %2739 = vmatpush1.msra.mxu0 0.0
    %2740 = vmatprep.subr.mxu0 0.0
    %2741 = vmatpush1.msra.mxu0 0.0
    %2742 = vmatprep.subr.mxu0 0.0
    %2743 = vmatpush1.msra.mxu0 0.0
    %2744 = vmatprep.subr.mxu0 0.0
    %2745 = vmatpush1.msra.mxu0 0.0
    %2746 = vmatprep.subr.mxu0 0.0
    %2747 = vmatpush1.msra.mxu0 0.0
    %2748 = vmatprep.subr.mxu0 0.0
    %2749 = vmatpush1.msra.mxu0 0.0
    %2750 = vmatprep.subr.mxu0 0.0
    %2751 = vmatpush1.msra.mxu0 0.0
    %2752 = vmatprep.subr.mxu0 0.0
    %2753 = vmatpush1.msra.mxu0 0.0
    %2754 = vmatprep.subr.mxu0 0.0
    %2755 = vmatpush1.msra.mxu0 0.0
    %2756 = vmatprep.subr.mxu0 0.0
    %2757 = vmatpush1.msra.mxu0 0.0
    %2758 = vmatprep.subr.mxu0 0.0
    %2759 = vmatpush1.msra.mxu0 0.0
    %2760 = vmatprep.subr.mxu0 0.0
    %2761 = vmatpush1.msra.mxu0 0.0
    %2762 = vmatprep.subr.mxu0 0.0
    %2763 = vmatpush1.msra.mxu0 0.0
    %2764 = vmatprep.subr.mxu0 0.0
    %2765 = vmatpush1.msra.mxu0 0.0
    %2766 = vmatprep.subr.mxu0 0.0
    %2767 = vmatpush1.msra.mxu0 0.0
    %2768 = vmatprep.subr.mxu0 0.0
    %2769 = vmatpush1.msra.mxu0 0.0
    %2770 = vmatprep.subr.mxu0 0.0
    %2771 = vmatpush1.msra.mxu0 0.0
    %2772 = vmatprep.mubr.f32.mxu0 0.0
    %2773 = vmatmul.mubr.f32.gmra.mrb[0].mxu0 %v2706
    %v2774 = vpop.f32.mrb[0].mxu0
    %v2775 = vadd.f32 0.0, %v2774
    %v2776 = vpop.f32.mrb[0].mxu0
    %2777 = vdwg.mxu0
    %v2778 = vadd.f32 %v2702, %v2775
    %v2779 = vxor.u32 %v2778, 2147483648
    %v2780 = vmul.f32 %v2779, 1.442695
    %v2781 = vpow.pop %v2780
    %v2782 = vadd.f32 %v2781, 1.0
    %v2783 = vrcp.pop %v2782
    %v2784 = vmul.f32 1.0, %v2783
    %v2785 = vtanh.pop %v2778
    %v2786 = vmul.f32 %v2784, %v2683
    %2788 = vrot.lane.b32.xlu0 %v2785, 32
    %v2789 = vpop.permute.xlu0 %2788
    %v2791 = vmul.f32 %v2784, %v2789
    %2793 = vrot.lane.b32.xlu0 %v2791, 32
    %v2794 = vpop.permute.xlu0 %2793
    %v2796 = vadd.f32 %v2786, %v2794
    %v2797 = vtanh.pop %v2796
    %2799 = vrot.lane.b32.xlu0 %v2797, 32
    %v2800 = vpop.permute.xlu0 %2799
    %v2802 = vmul.f32 %v2784, %v2800
    %vm2803 = vcmp.gt.s32.totalorder %v110, 4
    %v2804 = vsel %vm2803, 1, 0
    %2805 = vset.pattern.permute.xlu0 0
    %2806 = vperm.xlu0 %2805, %v2804
    %v2807 = vpop.permute.xlu0 %2806
    %vm2808 = vcmp.eq.s32.totalorder %v2807, 1
    %v2809 = vsel %vm2808, %v2802, 0.0
    %2811 = vrot.lane.b32.xlu0 %v2809, 64
    %v2812 = vpop.permute.xlu0 %2811
    %2814 = vst.msk [vmem:[%s796] sm:$0xff] %vm274, %v2812
    %v2815 = vld [vmem:[%s798] sm:$0xff]
    %2817 = vrot.lane.b32.xlu0 %v2802, 64
    %v2818 = vpop.permute.xlu0 %2817
    %v2819 = vsel %vm274, %v2818, 0
    %2821 = vmatprep.subr.mxu0 0.0
    %2822 = vmatpush1.msra.mxu0 %v2251
    %2823 = vmatprep.subr.mxu0 0.0
    %2824 = vmatpush1.msra.mxu0 %v2252
    %2825 = vmatprep.subr.mxu0 0.0
    %2826 = vmatpush1.msra.mxu0 %v2253
    %2827 = vmatprep.subr.mxu0 0.0
    %2828 = vmatpush1.msra.mxu0 %v2254
    %2829 = vmatprep.subr.mxu0 0.0
    %2830 = vmatpush1.msra.mxu0 0.0
    %2831 = vmatprep.subr.mxu0 0.0
    %2832 = vmatpush1.msra.mxu0 0.0
    %2833 = vmatprep.subr.mxu0 0.0
    %2834 = vmatpush1.msra.mxu0 0.0
    %2835 = vmatprep.subr.mxu0 0.0
    %2836 = vmatpush1.msra.mxu0 0.0
    %2837 = vmatprep.subr.mxu0 0.0
    %2838 = vmatpush1.msra.mxu0 0.0
    %2839 = vmatprep.subr.mxu0 0.0
    %2840 = vmatpush1.msra.mxu0 0.0
    %2841 = vmatprep.subr.mxu0 0.0
    %2842 = vmatpush1.msra.mxu0 0.0
    %2843 = vmatprep.subr.mxu0 0.0
    %2844 = vmatpush1.msra.mxu0 0.0
    %2845 = vmatprep.subr.mxu0 0.0
    %2846 = vmatpush1.msra.mxu0 0.0
    %2847 = vmatprep.subr.mxu0 0.0
    %2848 = vmatpush1.msra.mxu0 0.0
    %2849 = vmatprep.subr.mxu0 0.0
    %2850 = vmatpush1.msra.mxu0 0.0
    %2851 = vmatprep.subr.mxu0 0.0
    %2852 = vmatpush1.msra.mxu0 0.0
    %2853 = vmatprep.subr.mxu0 0.0
    %2854 = vmatpush1.msra.mxu0 0.0
    %2855 = vmatprep.subr.mxu0 0.0
    %2856 = vmatpush1.msra.mxu0 0.0
    %2857 = vmatprep.subr.mxu0 0.0
    %2858 = vmatpush1.msra.mxu0 0.0
    %2859 = vmatprep.subr.mxu0 0.0
    %2860 = vmatpush1.msra.mxu0 0.0
    %2861 = vmatprep.subr.mxu0 0.0
    %2862 = vmatpush1.msra.mxu0 0.0
    %2863 = vmatprep.subr.mxu0 0.0
    %2864 = vmatpush1.msra.mxu0 0.0
    %2865 = vmatprep.subr.mxu0 0.0
    %2866 = vmatpush1.msra.mxu0 0.0
    %2867 = vmatprep.subr.mxu0 0.0
    %2868 = vmatpush1.msra.mxu0 0.0
    %2869 = vmatprep.subr.mxu0 0.0
    %2870 = vmatpush1.msra.mxu0 0.0
    %2871 = vmatprep.subr.mxu0 0.0
    %2872 = vmatpush1.msra.mxu0 0.0
    %2873 = vmatprep.subr.mxu0 0.0
    %2874 = vmatpush1.msra.mxu0 0.0
    %2875 = vmatprep.subr.mxu0 0.0
    %2876 = vmatpush1.msra.mxu0 0.0
    %2877 = vmatprep.subr.mxu0 0.0
    %2878 = vmatpush1.msra.mxu0 0.0
    %2879 = vmatprep.subr.mxu0 0.0
    %2880 = vmatpush1.msra.mxu0 0.0
    %2881 = vmatprep.subr.mxu0 0.0
    %2882 = vmatpush1.msra.mxu0 0.0
    %2883 = vmatprep.subr.mxu0 0.0
    %2884 = vmatpush1.msra.mxu0 0.0
    %2885 = vmatprep.mubr.f32.mxu0 0.0
    %2886 = vmatmul.mubr.f32.gmra.mrb[0].mxu0 %v2819
    %v2887 = vpop.f32.mrb[0].mxu0
    %v2888 = vadd.f32 0.0, %v2887
    %v2889 = vpop.f32.mrb[0].mxu0
    %2890 = vdwg.mxu0
    %v2891 = vadd.f32 %v2815, %v2888
    %v2892 = vxor.u32 %v2891, 2147483648
    %v2893 = vmul.f32 %v2892, 1.442695
    %v2894 = vpow.pop %v2893
    %v2895 = vadd.f32 %v2894, 1.0
    %v2896 = vrcp.pop %v2895
    %v2897 = vmul.f32 1.0, %v2896
    %v2898 = vtanh.pop %v2891
    %v2899 = vmul.f32 %v2897, %v2796
    %2901 = vrot.lane.b32.xlu0 %v2898, 32
    %v2902 = vpop.permute.xlu0 %2901
    %v2904 = vmul.f32 %v2897, %v2902
    %2906 = vrot.lane.b32.xlu0 %v2904, 32
    %v2907 = vpop.permute.xlu0 %2906
    %v2909 = vadd.f32 %v2899, %v2907
    %v2910 = vtanh.pop %v2909
    %2912 = vrot.lane.b32.xlu0 %v2910, 32
    %v2913 = vpop.permute.xlu0 %2912
    %v2915 = vmul.f32 %v2897, %v2913
    %vm2916 = vcmp.gt.s32.totalorder %v110, 5
    %v2917 = vsel %vm2916, 1, 0
    %2918 = vset.pattern.permute.xlu0 0
    %2919 = vperm.xlu0 %2918, %v2917
    %v2920 = vpop.permute.xlu0 %2919
    %vm2921 = vcmp.eq.s32.totalorder %v2920, 1
    %v2922 = vsel %vm2921, %v2915, 0.0
    %2924 = vrot.lane.b32.xlu0 %v2922, 64
    %v2925 = vpop.permute.xlu0 %2924
    %2927 = vst.msk [vmem:[%s901] sm:$0xff] %vm274, %v2925
    %v2928 = vld [vmem:[%s903] sm:$0xff]
    %2930 = vrot.lane.b32.xlu0 %v2915, 64
    %v2931 = vpop.permute.xlu0 %2930
    %v2932 = vsel %vm274, %v2931, 0
    %2934 = vmatprep.subr.mxu0 0.0
    %2935 = vmatpush1.msra.mxu0 %v2251
    %2936 = vmatprep.subr.mxu0 0.0
    %2937 = vmatpush1.msra.mxu0 %v2252
    %2938 = vmatprep.subr.mxu0 0.0
    %2939 = vmatpush1.msra.mxu0 %v2253
    %2940 = vmatprep.subr.mxu0 0.0
    %2941 = vmatpush1.msra.mxu0 %v2254
    %2942 = vmatprep.subr.mxu0 0.0
    %2943 = vmatpush1.msra.mxu0 0.0
    %2944 = vmatprep.subr.mxu0 0.0
    %2945 = vmatpush1.msra.mxu0 0.0
    %2946 = vmatprep.subr.mxu0 0.0
    %2947 = vmatpush1.msra.mxu0 0.0
    %2948 = vmatprep.subr.mxu0 0.0
    %2949 = vmatpush1.msra.mxu0 0.0
    %2950 = vmatprep.subr.mxu0 0.0
    %2951 = vmatpush1.msra.mxu0 0.0
    %2952 = vmatprep.subr.mxu0 0.0
    %2953 = vmatpush1.msra.mxu0 0.0
    %2954 = vmatprep.subr.mxu0 0.0
    %2955 = vmatpush1.msra.mxu0 0.0
    %2956 = vmatprep.subr.mxu0 0.0
    %2957 = vmatpush1.msra.mxu0 0.0
    %2958 = vmatprep.subr.mxu0 0.0
    %2959 = vmatpush1.msra.mxu0 0.0
    %2960 = vmatprep.subr.mxu0 0.0
    %2961 = vmatpush1.msra.mxu0 0.0
    %2962 = vmatprep.subr.mxu0 0.0
    %2963 = vmatpush1.msra.mxu0 0.0
    %2964 = vmatprep.subr.mxu0 0.0
    %2965 = vmatpush1.msra.mxu0 0.0
    %2966 = vmatprep.subr.mxu0 0.0
    %2967 = vmatpush1.msra.mxu0 0.0
    %2968 = vmatprep.subr.mxu0 0.0
    %2969 = vmatpush1.msra.mxu0 0.0
    %2970 = vmatprep.subr.mxu0 0.0
    %2971 = vmatpush1.msra.mxu0 0.0
    %2972 = vmatprep.subr.mxu0 0.0
    %2973 = vmatpush1.msra.mxu0 0.0
    %2974 = vmatprep.subr.mxu0 0.0
    %2975 = vmatpush1.msra.mxu0 0.0
    %2976 = vmatprep.subr.mxu0 0.0
    %2977 = vmatpush1.msra.mxu0 0.0
    %2978 = vmatprep.subr.mxu0 0.0
    %2979 = vmatpush1.msra.mxu0 0.0
    %2980 = vmatprep.subr.mxu0 0.0
    %2981 = vmatpush1.msra.mxu0 0.0
    %2982 = vmatprep.subr.mxu0 0.0
    %2983 = vmatpush1.msra.mxu0 0.0
    %2984 = vmatprep.subr.mxu0 0.0
    %2985 = vmatpush1.msra.mxu0 0.0
    %2986 = vmatprep.subr.mxu0 0.0
    %2987 = vmatpush1.msra.mxu0 0.0
    %2988 = vmatprep.subr.mxu0 0.0
    %2989 = vmatpush1.msra.mxu0 0.0
    %2990 = vmatprep.subr.mxu0 0.0
    %2991 = vmatpush1.msra.mxu0 0.0
    %2992 = vmatprep.subr.mxu0 0.0
    %2993 = vmatpush1.msra.mxu0 0.0
    %2994 = vmatprep.subr.mxu0 0.0
    %2995 = vmatpush1.msra.mxu0 0.0
    %2996 = vmatprep.subr.mxu0 0.0
    %2997 = vmatpush1.msra.mxu0 0.0
    %2998 = vmatprep.mubr.f32.mxu0 0.0
    %2999 = vmatmul.mubr.f32.gmra.mrb[0].mxu0 %v2932
    %v3000 = vpop.f32.mrb[0].mxu0
    %v3001 = vadd.f32 0.0, %v3000
    %v3002 = vpop.f32.mrb[0].mxu0
    %3003 = vdwg.mxu0
    %v3004 = vadd.f32 %v2928, %v3001
    %v3005 = vxor.u32 %v3004, 2147483648
    %v3006 = vmul.f32 %v3005, 1.442695
    %v3007 = vpow.pop %v3006
    %v3008 = vadd.f32 %v3007, 1.0
    %v3009 = vrcp.pop %v3008
    %v3010 = vmul.f32 1.0, %v3009
    %v3011 = vtanh.pop %v3004
    %v3012 = vmul.f32 %v3010, %v2909
    %3014 = vrot.lane.b32.xlu0 %v3011, 32
    %v3015 = vpop.permute.xlu0 %3014
    %v3017 = vmul.f32 %v3010, %v3015
    %3019 = vrot.lane.b32.xlu0 %v3017, 32
    %v3020 = vpop.permute.xlu0 %3019
    %v3022 = vadd.f32 %v3012, %v3020
    %v3023 = vtanh.pop %v3022
    %3025 = vrot.lane.b32.xlu0 %v3023, 32
    %v3026 = vpop.permute.xlu0 %3025
    %v3028 = vmul.f32 %v3010, %v3026
    %vm3029 = vcmp.gt.s32.totalorder %v110, 6
    %v3030 = vsel %vm3029, 1, 0
    %3031 = vset.pattern.permute.xlu0 0
    %3032 = vperm.xlu0 %3031, %v3030
    %v3033 = vpop.permute.xlu0 %3032
    %vm3034 = vcmp.eq.s32.totalorder %v3033, 1
    %v3035 = vsel %vm3034, %v3028, 0.0
    %3037 = vrot.lane.b32.xlu0 %v3035, 64
    %v3038 = vpop.permute.xlu0 %3037
    %3040 = vst.msk [vmem:[%s1006] sm:$0xff] %vm274, %v3038
    %v3041 = vld [vmem:[%s1008] sm:$0xff]
    %3043 = vrot.lane.b32.xlu0 %v3028, 64
    %v3044 = vpop.permute.xlu0 %3043
    %v3045 = vsel %vm274, %v3044, 0
    %3047 = vmatprep.subr.mxu0 0.0
    %3048 = vmatpush1.msra.mxu0 %v2251
    %3049 = vmatprep.subr.mxu0 0.0
    %3050 = vmatpush1.msra.mxu0 %v2252
    %3051 = vmatprep.subr.mxu0 0.0
    %3052 = vmatpush1.msra.mxu0 %v2253
    %3053 = vmatprep.subr.mxu0 0.0
    %3054 = vmatpush1.msra.mxu0 %v2254
    %3055 = vmatprep.subr.mxu0 0.0
    %3056 = vmatpush1.msra.mxu0 0.0
    %3057 = vmatprep.subr.mxu0 0.0
    %3058 = vmatpush1.msra.mxu0 0.0
    %3059 = vmatprep.subr.mxu0 0.0
    %3060 = vmatpush1.msra.mxu0 0.0
    %3061 = vmatprep.subr.mxu0 0.0
    %3062 = vmatpush1.msra.mxu0 0.0
    %3063 = vmatprep.subr.mxu0 0.0
    %3064 = vmatpush1.msra.mxu0 0.0
    %3065 = vmatprep.subr.mxu0 0.0
    %3066 = vmatpush1.msra.mxu0 0.0
    %3067 = vmatprep.subr.mxu0 0.0
    %3068 = vmatpush1.msra.mxu0 0.0
    %3069 = vmatprep.subr.mxu0 0.0
    %3070 = vmatpush1.msra.mxu0 0.0
    %3071 = vmatprep.subr.mxu0 0.0
    %3072 = vmatpush1.msra.mxu0 0.0
    %3073 = vmatprep.subr.mxu0 0.0
    %3074 = vmatpush1.msra.mxu0 0.0
    %3075 = vmatprep.subr.mxu0 0.0
    %3076 = vmatpush1.msra.mxu0 0.0
    %3077 = vmatprep.subr.mxu0 0.0
    %3078 = vmatpush1.msra.mxu0 0.0
    %3079 = vmatprep.subr.mxu0 0.0
    %3080 = vmatpush1.msra.mxu0 0.0
    %3081 = vmatprep.subr.mxu0 0.0
    %3082 = vmatpush1.msra.mxu0 0.0
    %3083 = vmatprep.subr.mxu0 0.0
    %3084 = vmatpush1.msra.mxu0 0.0
    %3085 = vmatprep.subr.mxu0 0.0
    %3086 = vmatpush1.msra.mxu0 0.0
    %3087 = vmatprep.subr.mxu0 0.0
    %3088 = vmatpush1.msra.mxu0 0.0
    %3089 = vmatprep.subr.mxu0 0.0
    %3090 = vmatpush1.msra.mxu0 0.0
    %3091 = vmatprep.subr.mxu0 0.0
    %3092 = vmatpush1.msra.mxu0 0.0
    %3093 = vmatprep.subr.mxu0 0.0
    %3094 = vmatpush1.msra.mxu0 0.0
    %3095 = vmatprep.subr.mxu0 0.0
    %3096 = vmatpush1.msra.mxu0 0.0
    %3097 = vmatprep.subr.mxu0 0.0
    %3098 = vmatpush1.msra.mxu0 0.0
    %3099 = vmatprep.subr.mxu0 0.0
    %3100 = vmatpush1.msra.mxu0 0.0
    %3101 = vmatprep.subr.mxu0 0.0
    %3102 = vmatpush1.msra.mxu0 0.0
    %3103 = vmatprep.subr.mxu0 0.0
    %3104 = vmatpush1.msra.mxu0 0.0
    %3105 = vmatprep.subr.mxu0 0.0
    %3106 = vmatpush1.msra.mxu0 0.0
    %3107 = vmatprep.subr.mxu0 0.0
    %3108 = vmatpush1.msra.mxu0 0.0
    %3109 = vmatprep.subr.mxu0 0.0
    %3110 = vmatpush1.msra.mxu0 0.0
    %3111 = vmatprep.mubr.f32.mxu0 0.0
    %3112 = vmatmul.mubr.f32.gmra.mrb[0].mxu0 %v3045
    %v3113 = vpop.f32.mrb[0].mxu0
    %v3114 = vadd.f32 0.0, %v3113
    %v3115 = vpop.f32.mrb[0].mxu0
    %3116 = vdwg.mxu0
    %v3117 = vadd.f32 %v3041, %v3114
    %v3118 = vxor.u32 %v3117, 2147483648
    %v3119 = vmul.f32 %v3118, 1.442695
    %v3120 = vpow.pop %v3119
    %v3121 = vadd.f32 %v3120, 1.0
    %v3122 = vrcp.pop %v3121
    %v3123 = vmul.f32 1.0, %v3122
    %v3124 = vtanh.pop %v3117
    %v3125 = vmul.f32 %v3123, %v3022
    %3127 = vrot.lane.b32.xlu0 %v3124, 32
    %v3128 = vpop.permute.xlu0 %3127
    %v3130 = vmul.f32 %v3123, %v3128
    %3132 = vrot.lane.b32.xlu0 %v3130, 32
    %v3133 = vpop.permute.xlu0 %3132
    %v3135 = vadd.f32 %v3125, %v3133
    %v3136 = vtanh.pop %v3135
    %3138 = vrot.lane.b32.xlu0 %v3136, 32
    %v3139 = vpop.permute.xlu0 %3138
    %v3141 = vmul.f32 %v3123, %v3139
    %vm3142 = vcmp.gt.s32.totalorder %v110, 7
    %v3143 = vsel %vm3142, 1, 0
    %3144 = vset.pattern.permute.xlu0 0
    %3145 = vperm.xlu0 %3144, %v3143
    %v3146 = vpop.permute.xlu0 %3145
    %vm3147 = vcmp.eq.s32.totalorder %v3146, 1
    %v3148 = vsel %vm3147, %v3141, 0.0
    %3150 = vrot.lane.b32.xlu0 %v3148, 64
    %v3151 = vpop.permute.xlu0 %3150
    %3153 = vst.msk [vmem:[%s1111] sm:$0xff] %vm274, %v3151
    %v3154 = vld [vmem:[#allocation3] sm:$0xff]
    %v3155 = vld [vmem:[#allocation3 + $0x8] sm:$0xff]
    %v3156 = vld [vmem:[#allocation3 + $0x10] sm:$0xff]
    %v3157 = vld [vmem:[#allocation3 + $0x18] sm:$0xff]
    %v3158 = vld [vmem:[#allocation3 + $0x20] sm:$0xff]
    %v3159 = vld [vmem:[#allocation3 + $0x28] sm:$0xff]
    %v3160 = vld [vmem:[#allocation3 + $0x30] sm:$0xff]
    %v3161 = vld [vmem:[#allocation3 + $0x38] sm:$0xff]
    %v3162 = vld [vmem:[#allocation9] sm:$0xff]
    %v3163 = vld [vmem:[#allocation9 + $0x8] sm:$0xff]
    %v3164 = vld [vmem:[#allocation9 + $0x10] sm:$0xff]
    %v3165 = vld [vmem:[#allocation9 + $0x18] sm:$0xff]
    %v3166 = vld [vmem:[#allocation11] sm:$0x1]
    %v3168 = vlaneseq
    %v3169 = vshrl.u32 %v3168, 7
    %v3170 = vsub.s32 0, %v3169
    %v3171 = vrot.slane %v3166, %v3170
    %v3174 = vsel %vm274, %v3154, 0
    %v3177 = vsel %vm274, %v3155, 0
    %v3180 = vsel %vm274, %v3156, 0
    %v3183 = vsel %vm274, %v3157, 0
    %v3186 = vsel %vm274, %v3158, 0
    %v3189 = vsel %vm274, %v3159, 0
    %v3192 = vsel %vm274, %v3160, 0
    %v3195 = vsel %vm274, %v3161, 0
    %3197 = vmatprep.subr.mxu0 0.0
    %3198 = vmatpush1.msra.mxu0 %v3162
    %3199 = vmatprep.subr.mxu0 0.0
    %3200 = vmatpush1.msra.mxu0 %v3163
    %3201 = vmatprep.subr.mxu0 0.0
    %3202 = vmatpush1.msra.mxu0 %v3164
    %3203 = vmatprep.subr.mxu0 0.0
    %3204 = vmatpush1.msra.mxu0 %v3165
    %3205 = vmatprep.subr.mxu0 0.0
    %3206 = vmatpush1.msra.mxu0 0.0
    %3207 = vmatprep.subr.mxu0 0.0
    %3208 = vmatpush1.msra.mxu0 0.0
    %3209 = vmatprep.subr.mxu0 0.0
    %3210 = vmatpush1.msra.mxu0 0.0
    %3211 = vmatprep.subr.mxu0 0.0
    %3212 = vmatpush1.msra.mxu0 0.0
    %3213 = vmatprep.subr.mxu0 0.0
    %3214 = vmatpush1.msra.mxu0 0.0
    %3215 = vmatprep.subr.mxu0 0.0
    %3216 = vmatpush1.msra.mxu0 0.0
    %3217 = vmatprep.subr.mxu0 0.0
    %3218 = vmatpush1.msra.mxu0 0.0
    %3219 = vmatprep.subr.mxu0 0.0
    %3220 = vmatpush1.msra.mxu0 0.0
    %3221 = vmatprep.subr.mxu0 0.0
    %3222 = vmatpush1.msra.mxu0 0.0
    %3223 = vmatprep.subr.mxu0 0.0
    %3224 = vmatpush1.msra.mxu0 0.0
    %3225 = vmatprep.subr.mxu0 0.0
    %3226 = vmatpush1.msra.mxu0 0.0
    %3227 = vmatprep.subr.mxu0 0.0
    %3228 = vmatpush1.msra.mxu0 0.0
    %3229 = vmatprep.subr.mxu0 0.0
    %3230 = vmatpush1.msra.mxu0 0.0
    %3231 = vmatprep.subr.mxu0 0.0
    %3232 = vmatpush1.msra.mxu0 0.0
    %3233 = vmatprep.subr.mxu0 0.0
    %3234 = vmatpush1.msra.mxu0 0.0
    %3235 = vmatprep.subr.mxu0 0.0
    %3236 = vmatpush1.msra.mxu0 0.0
    %3237 = vmatprep.subr.mxu0 0.0
    %3238 = vmatpush1.msra.mxu0 0.0
    %3239 = vmatprep.subr.mxu0 0.0
    %3240 = vmatpush1.msra.mxu0 0.0
    %3241 = vmatprep.subr.mxu0 0.0
    %3242 = vmatpush1.msra.mxu0 0.0
    %3243 = vmatprep.subr.mxu0 0.0
    %3244 = vmatpush1.msra.mxu0 0.0
    %3245 = vmatprep.subr.mxu0 0.0
    %3246 = vmatpush1.msra.mxu0 0.0
    %3247 = vmatprep.subr.mxu0 0.0
    %3248 = vmatpush1.msra.mxu0 0.0
    %3249 = vmatprep.subr.mxu0 0.0
    %3250 = vmatpush1.msra.mxu0 0.0
    %3251 = vmatprep.subr.mxu0 0.0
    %3252 = vmatpush1.msra.mxu0 0.0
    %3253 = vmatprep.subr.mxu0 0.0
    %3254 = vmatpush1.msra.mxu0 0.0
    %3255 = vmatprep.subr.mxu0 0.0
    %3256 = vmatpush1.msra.mxu0 0.0
    %3257 = vmatprep.subr.mxu0 0.0
    %3258 = vmatpush1.msra.mxu0 0.0
    %3259 = vmatprep.subr.mxu0 0.0
    %3260 = vmatpush1.msra.mxu0 0.0
    %3261 = vmatprep.mubr.f32.mxu0 0.0
    %3262 = vmatmul.mubr.f32.gmra.mrb[0].mxu0 %v3174
    %v3263 = vpop.f32.mrb[0].mxu0
    %v3264 = vadd.f32 %v3171, %v3263
    %v3265 = vpop.f32.mrb[0].mxu0
    %3266 = vmatprep.mubr.f32.mxu0 0.0
    %3267 = vmatmul.mubr.f32.gmra.mrb[0].mxu0 %v3177
    %v3268 = vpop.f32.mrb[0].mxu0
    %v3269 = vadd.f32 %v3171, %v3268
    %v3270 = vpop.f32.mrb[0].mxu0
    %3271 = vmatprep.mubr.f32.mxu0 0.0
    %3272 = vmatmul.mubr.f32.gmra.mrb[0].mxu0 %v3180
    %v3273 = vpop.f32.mrb[0].mxu0
    %v3274 = vadd.f32 %v3171, %v3273
    %v3275 = vpop.f32.mrb[0].mxu0
    %3276 = vmatprep.mubr.f32.mxu0 0.0
    %3277 = vmatmul.mubr.f32.gmra.mrb[0].mxu0 %v3183
    %v3278 = vpop.f32.mrb[0].mxu0
    %v3279 = vadd.f32 %v3171, %v3278
    %v3280 = vpop.f32.mrb[0].mxu0
    %3281 = vmatprep.mubr.f32.mxu0 0.0
    %3282 = vmatmul.mubr.f32.gmra.mrb[0].mxu0 %v3186
    %v3283 = vpop.f32.mrb[0].mxu0
    %v3284 = vadd.f32 %v3171, %v3283
    %v3285 = vpop.f32.mrb[0].mxu0
    %3286 = vmatprep.mubr.f32.mxu0 0.0
    %3287 = vmatmul.mubr.f32.gmra.mrb[0].mxu0 %v3189
    %v3288 = vpop.f32.mrb[0].mxu0
    %v3289 = vadd.f32 %v3171, %v3288
    %v3290 = vpop.f32.mrb[0].mxu0
    %3291 = vmatprep.mubr.f32.mxu0 0.0
    %3292 = vmatmul.mubr.f32.gmra.mrb[0].mxu0 %v3192
    %v3293 = vpop.f32.mrb[0].mxu0
    %v3294 = vadd.f32 %v3171, %v3293
    %v3295 = vpop.f32.mrb[0].mxu0
    %3296 = vmatprep.mubr.f32.mxu0 0.0
    %3297 = vmatmul.mubr.f32.gmra.mrb[0].mxu0 %v3195
    %v3298 = vpop.f32.mrb[0].mxu0
    %v3299 = vadd.f32 %v3171, %v3298
    %v3300 = vpop.f32.mrb[0].mxu0
    %3301 = vdwg.mxu0
    %3302 = vst [vmem:[%s13] sm:$0xff] %v3264
    %3303 = vst [vmem:[%s13 + $0x8] sm:$0xff] %v3269
    %3304 = vst [vmem:[%s13 + $0x10] sm:$0xff] %v3274
    %3305 = vst [vmem:[%s13 + $0x18] sm:$0xff] %v3279
    %3306 = vst [vmem:[%s13 + $0x20] sm:$0xff] %v3284
    %3307 = vst [vmem:[%s13 + $0x28] sm:$0xff] %v3289
    %3308 = vst [vmem:[%s13 + $0x30] sm:$0xff] %v3294
    %3309 = vst [vmem:[%s13 + $0x38] sm:$0xff] %v3299
    // Predicated region
    $region74: #{wsj_forward.1} parent=1 // pred_check
      _
    $region75: #{wsj_forward.1} parent=1 // pred_check_branch
      %3311 = sbr.rel (0) target = $region77
    $region76: #{wsj_forward.1} parent=1 // pred_region
      _
    $region77: #{wsj_forward.1} parent=1 // pred_fallthru
      _
    // Predicated region
    $region78: #{wsj_forward.1} parent=1 // pred_check
      _
    $region79: #{wsj_forward.1} parent=1 // pred_check_branch
      %3313 = sbr.rel (0) target = $region81
    $region80: #{wsj_forward.1} parent=1 // pred_region
      _
    $region81: #{wsj_forward.1} parent=1 // pred_fallthru
      _
    %3314 = vsyncpa [#allocation5], 1
    %3315 = vsyncpa [#allocation7], 1
    %3316 = vsyncpa [#allocation10], 1

</llo_original>
